<compile_context>
chip_gen: v7x
topology: tpu7x:2x2x1
jax: 0.10.0
libtpu: 0.0.40
codegen_flags: <defaults>
</compile_context>

<pallas_src>
import math
import functools

import jax
import jax.numpy as jnp
from jax.experimental import pallas as pl
from jax.experimental.pallas import tpu as pltpu


def _layernorm(x, g, b, eps):
    mu = jnp.mean(x, axis=-1, keepdims=True)
    var = jnp.mean(jnp.square(x - mu), axis=-1, keepdims=True)
    return (x - mu) * jax.lax.rsqrt(var + eps) * g + b


# --------------------------------------------------------------------------------------
# Single fused kernel: embed + LN(1e-8) + num_layers x (MHA + ReLU-FFN, post-norm 1e-5).
# Grid over batch only; all weights resident (stacked over layers on a leading axis).
# --------------------------------------------------------------------------------------
def fused_forward_kernel(x_ref, emb_ref, embg_ref, embb_ref,
                         wqkv_ref, bqkv_ref, wo_ref, bo_ref,
                         ln1g_ref, ln1b_ref, w1_ref, b1_ref,
                         w2_ref, b2_ref, ln2g_ref, ln2b_ref,
                         o_ref, hbuf, qkvbuf,
                         *, S, T, Tp, D, H, hd, num_layers):
    f32 = jnp.float32

    # ---- (cls || x) + positional embedding, padded to Tp rows, LayerNorm(eps=1e-8) ----
    # emb_ref: row 0 = cls + pos[0]; rows 1..S = pos[1..S]; rows T..Tp-1 = 0 (host-precomp).
    hbuf[...] = emb_ref[...]
    hbuf[pl.ds(1, S), :] = hbuf[pl.ds(1, S), :] + x_ref[0].astype(f32)
    h = _layernorm(hbuf[...], embg_ref[...], embb_ref[...], 1e-8)
    # TODO(synk): dropout is inference-mode identity.

    # Key-padding bias: padded key columns (>= T) contribute ~0 after softmax.
    key_col = jax.lax.broadcasted_iota(jnp.int32, (Tp, Tp), 1)
    key_bias = jnp.where(key_col < T, 0.0, -1e30).astype(f32)
    lane_id = jax.lax.broadcasted_iota(jnp.int32, (Tp, D), 1)

    for l in range(num_layers):                       # static unroll over layers (L=2)
        # Fused QKV projection (Tp, D) x (D, 3D); 1/sqrt(hd) pre-folded into Wq / bq.
        qkvbuf[...] = (jnp.dot(h, wqkv_ref[l], preferred_element_type=f32)
                       + bqkv_ref[l])
        q = qkvbuf[:, 0:D]
        k = qkvbuf[:, D:2 * D]
        v = qkvbuf[:, 2 * D:3 * D]

        # Per-head attention via lane masks: masked K/V keep matmuls lane-dense and the
        # per-head PV results land directly in their output lanes (no concat needed).
        attn = jnp.zeros((Tp, D), f32)
        for hh in range(H):                            # static unroll over heads
            head_mask = jnp.logical_and(lane_id >= hh * hd, lane_id < (hh + 1) * hd)
            k_h = jnp.where(head_mask, k, 0.0)
            v_h = jnp.where(head_mask, v, 0.0)
            s = jax.lax.dot_general(q, k_h, (((1,), (1,)), ((), ())),
                                    preferred_element_type=f32)          # (Tp, Tp)
            s = s + key_bias
            p = jnp.exp(s - jnp.max(s, axis=-1, keepdims=True))
            denom = jnp.sum(p, axis=-1, keepdims=True)
            p = p * pl.reciprocal(denom, approx=True)
            attn = attn + jnp.dot(p, v_h, preferred_element_type=f32)     # (Tp, D)
        attn = jnp.dot(attn, wo_ref[l], preferred_element_type=f32) + bo_ref[l]

        h1 = _layernorm(h + attn, ln1g_ref[l], ln1b_ref[l], 1e-5)
        mid = jnp.maximum(
            jnp.dot(h1, w1_ref[l], preferred_element_type=f32) + b1_ref[l], 0.0)
        ff = jnp.dot(mid, w2_ref[l], preferred_element_type=f32) + b2_ref[l]
        h = _layernorm(h1 + ff, ln2g_ref[l], ln2b_ref[l], 1e-5)

    o_ref[0] = h.astype(o_ref.dtype)


# --------------------------------------------------------------------------------------
# Pallas-based forward
# --------------------------------------------------------------------------------------
def fusion_transformer_forward(x, cls_tok, pos_table, emb_g, emb_b, stacked, num_heads):
    B, S, D = x.shape
    T = S + 1
    Tp = max(8, ((T + 7) // 8) * 8)                   # pad seq to f32 sublane multiple
    L = stacked["wqkv"].shape[0]
    Fdim = stacked["w1"].shape[2]
    H = num_heads
    hd = D // H

    # Constant (w.r.t. x) embedding addend: cls goes to row 0, pos table rows 0..T-1.
    pos = pos_table[:T].astype(jnp.float32)
    emb = jnp.zeros((Tp, D), jnp.float32).at[:T].set(pos).at[0].add(cls_tok.reshape(D))

    kernel = functools.partial(fused_forward_kernel,
                               S=S, T=T, Tp=Tp, D=D, H=H, hd=hd, num_layers=L)

    def rep(shape):                                   # full-array resident block
        nd = len(shape)
        return pl.BlockSpec(shape, lambda b, _nd=nd: (0,) * _nd)

    out = pl.pallas_call(
        kernel,
        out_shape=jax.ShapeDtypeStruct((B, Tp, D), x.dtype),
        grid=(B,),
        in_specs=[
            pl.BlockSpec((1, S, D), lambda b: (b, 0, 0)),   # x
            rep((Tp, D)),                                   # cls+pos addend (padded)
            rep((1, D)), rep((1, D)),                       # embed LN gamma/beta
            rep((L, D, 3 * D)), rep((L, 1, 3 * D)),         # fused QKV W, b
            rep((L, D, D)), rep((L, 1, D)),                 # Wo, bo
            rep((L, 1, D)), rep((L, 1, D)),                 # ln1 gamma/beta
            rep((L, D, Fdim)), rep((L, 1, Fdim)),           # W1, b1
            rep((L, Fdim, D)), rep((L, 1, D)),              # W2, b2
            rep((L, 1, D)), rep((L, 1, D)),                 # ln2 gamma/beta
        ],
        out_specs=pl.BlockSpec((1, Tp, D), lambda b: (b, 0, 0)),
        scratch_shapes=[
            pltpu.VMEM((Tp, D), jnp.float32),               # padded activation buffer
            pltpu.VMEM((Tp, 3 * D), jnp.float32),           # fused QKV buffer
        ],
        compiler_params=pltpu.CompilerParams(dimension_semantics=("parallel",)),
    )(x, emb, emb_g.reshape(1, D), emb_b.reshape(1, D),
      stacked["wqkv"], stacked["bqkv"], stacked["wo"], stacked["bo"],
      stacked["ln1_g"], stacked["ln1_b"], stacked["w1"], stacked["b1"],
      stacked["w2"], stacked["b2"], stacked["ln2_g"], stacked["ln2_b"])

    return out[:, 0, :], out[:, 1:T, :]


# --------------------------------------------------------------------------------------
# Parameter construction (deterministic) and a pure-JAX reference for verification.
# --------------------------------------------------------------------------------------
def make_layer_params(key, D, H, F):
    hd = D // H
    scale = 1.0 / math.sqrt(hd)
    ks = jax.random.split(key, 16)
    s = 0.1
    Wq = jax.random.normal(ks[0], (D, D), jnp.float32) * s
    Wk = jax.random.normal(ks[1], (D, D), jnp.float32) * s
    Wv = jax.random.normal(ks[2], (D, D), jnp.float32) * s
    Wo = jax.random.normal(ks[3], (D, D), jnp.float32) * s
    bq = jax.random.normal(ks[4], (D,), jnp.float32) * s
    bk = jax.random.normal(ks[5], (D,), jnp.float32) * s
    bv = jax.random.normal(ks[6], (D,), jnp.float32) * s
    bo = jax.random.normal(ks[7], (D,), jnp.float32) * s
    W1 = jax.random.normal(ks[8], (F, D), jnp.float32) * s
    b1 = jax.random.normal(ks[9], (F,), jnp.float32) * s
    W2 = jax.random.normal(ks[10], (D, F), jnp.float32) * s
    b2 = jax.random.normal(ks[11], (D,), jnp.float32) * s
    ln1_g = 1.0 + 0.1 * jax.random.normal(ks[12], (D,), jnp.float32)
    ln1_b = 0.1 * jax.random.normal(ks[13], (D,), jnp.float32)
    ln2_g = 1.0 + 0.1 * jax.random.normal(ks[14], (D,), jnp.float32)
    ln2_b = 0.1 * jax.random.normal(ks[15], (D,), jnp.float32)

    raw = dict(Wq=Wq, Wk=Wk, Wv=Wv, Wo=Wo, bq=bq, bk=bk, bv=bv, bo=bo,
               W1=W1, b1=b1, W2=W2, b2=b2,
               ln1_g=ln1_g, ln1_b=ln1_b, ln2_g=ln2_g, ln2_b=ln2_b)
    kern = dict(
        wqkv=jnp.concatenate([Wq.T * scale, Wk.T, Wv.T], axis=1),       # (D, 3D)
        bqkv=jnp.concatenate([bq * scale, bk, bv]).reshape(1, 3 * D),   # (1, 3D)
        wo=Wo.T, bo=bo.reshape(1, D),
        ln1_g=ln1_g.reshape(1, D), ln1_b=ln1_b.reshape(1, D),
        w1=W1.T, b1=b1.reshape(1, F),
        w2=W2.T, b2=b2.reshape(1, D),
        ln2_g=ln2_g.reshape(1, D), ln2_b=ln2_b.reshape(1, D),
    )
    return raw, kern


def stack_layers(kern_list):
    return {k: jnp.stack([kp[k] for kp in kern_list], axis=0) for k in kern_list[0]}


def ref_forward(x, cls_tok, pos_table, emb_g, emb_b, raw_layers, H):
    B, S, D = x.shape
    T = S + 1
    hd = D // H
    pos = pos_table[:T]
    h = jnp.concatenate([jnp.broadcast_to(cls_tok, (B, 1, D)), x], axis=1) + pos[None]
    h = _layernorm(h, emb_g, emb_b, 1e-8)
    for L in raw_layers:
        q = h @ L["Wq"].T + L["bq"]
        k = h @ L["Wk"].T + L["bk"]
        v = h @ L["Wv"].T + L["bv"]
        qh = q.reshape(B, T, H, hd).transpose(0, 2, 1, 3)
        kh = k.reshape(B, T, H, hd).transpose(0, 2, 1, 3)
        vh = v.reshape(B, T, H, hd).transpose(0, 2, 1, 3)
        s = jnp.einsum("bhqd,bhkd->bhqk", qh, kh) / math.sqrt(hd)
        p = jax.nn.softmax(s, axis=-1)
        o = jnp.einsum("bhqk,bhkd->bhqd", p, vh).transpose(0, 2, 1, 3).reshape(B, T, D)
        attn = o @ L["Wo"].T + L["bo"]
        h1 = _layernorm(h + attn, L["ln1_g"], L["ln1_b"], 1e-5)
        ff = jnp.maximum(h1 @ L["W1"].T + L["b1"], 0.0) @ L["W2"].T + L["b2"]
        h = _layernorm(h1 + ff, L["ln2_g"], L["ln2_b"], 1e-5)
    return h[:, 0, :], h[:, 1:, :]


if __name__ == "__main__":
    # small config consistent with the module: embed_dim=32, depth=2, heads=8, ffn=64
    B, S, D, H, F, DEPTH = 2, 8, 32, 8, 64, 2
    key = jax.random.PRNGKey(0)
    k_x, k_cls, k_pos, k_l0, k_l1, k_g, k_b = jax.random.split(key, 7)

    x = jax.random.normal(k_x, (B, S, D), jnp.float32)
    cls_tok = jax.random.normal(k_cls, (1, 1, D), jnp.float32)
    pos_table = jax.random.normal(k_pos, (512, D), jnp.float32) * 0.02  # nn.Embedding(512, D)
    emb_g = 1.0 + 0.1 * jax.random.normal(k_g, (D,), jnp.float32)
    emb_b = 0.1 * jax.random.normal(k_b, (D,), jnp.float32)

    raw0, ker0 = make_layer_params(k_l0, D, H, F)
    raw1, ker1 = make_layer_params(k_l1, D, H, F)
    stacked = stack_layers([ker0, ker1])

    cls_out, tok_out = fusion_transformer_forward(
        x, cls_tok, pos_table, emb_g, emb_b, stacked, H)
    jax.block_until_ready((cls_out, tok_out))

    ref_cls, ref_tok = ref_forward(x, cls_tok, pos_table, emb_g, emb_b, [raw0, raw1], H)
    assert cls_out.shape == (B, D) and tok_out.shape == (B, S, D)
    assert jnp.allclose(cls_out, ref_cls, atol=2e-3, rtol=2e-3)
    assert jnp.allclose(tok_out, ref_tok, atol=2e-3, rtol=2e-3)

    print("KERNEL_OK")
</pallas_src>

<mosaic_0001>
module attributes {stable_mosaic.version = 11 : i64} {
  func.func @fused_forward_kernel(%arg0: i32, %arg1: memref<1x8x32xf32, #tpu.memory_space<vmem>>, %arg2: memref<16x32xf32, #tpu.memory_space<vmem>>, %arg3: memref<1x32xf32, #tpu.memory_space<vmem>>, %arg4: memref<1x32xf32, #tpu.memory_space<vmem>>, %arg5: memref<2x32x96xf32, #tpu.memory_space<vmem>>, %arg6: memref<2x1x96xf32, #tpu.memory_space<vmem>>, %arg7: memref<2x32x32xf32, #tpu.memory_space<vmem>>, %arg8: memref<2x1x32xf32, #tpu.memory_space<vmem>>, %arg9: memref<2x1x32xf32, #tpu.memory_space<vmem>>, %arg10: memref<2x1x32xf32, #tpu.memory_space<vmem>>, %arg11: memref<2x32x64xf32, #tpu.memory_space<vmem>>, %arg12: memref<2x1x64xf32, #tpu.memory_space<vmem>>, %arg13: memref<2x64x32xf32, #tpu.memory_space<vmem>>, %arg14: memref<2x1x32xf32, #tpu.memory_space<vmem>>, %arg15: memref<2x1x32xf32, #tpu.memory_space<vmem>>, %arg16: memref<2x1x32xf32, #tpu.memory_space<vmem>>, %arg17: memref<1x16x32xf32, #tpu.memory_space<vmem>>, %arg18: memref<16x32xf32, #tpu.memory_space<vmem>>, %arg19: memref<16x96xf32, #tpu.memory_space<vmem>>) attributes {dimension_semantics = [#tpu.dimension_semantics<parallel>], iteration_bounds = array<i64: 2>, scalar_prefetch = 0 : i64, scratch_operands = 2 : i64, tpu.core_type = #tpu.core_type<tc>, window_params = [{transform_indices = @transform_0, window_bounds = array<i64: 1, 8, 32>}, {pipeline_mode = #tpu.pipeline_mode<synchronous>, transform_indices = @transform_1, window_bounds = array<i64: 16, 32>}, {pipeline_mode = #tpu.pipeline_mode<synchronous>, transform_indices = @transform_2, window_bounds = array<i64: 1, 32>}, {pipeline_mode = #tpu.pipeline_mode<synchronous>, transform_indices = @transform_3, window_bounds = array<i64: 1, 32>}, {pipeline_mode = #tpu.pipeline_mode<synchronous>, transform_indices = @transform_4, window_bounds = array<i64: 2, 32, 96>}, {pipeline_mode = #tpu.pipeline_mode<synchronous>, transform_indices = @transform_5, window_bounds = array<i64: 2, 1, 96>}, {pipeline_mode = #tpu.pipeline_mode<synchronous>, transform_indices = @transform_6, window_bounds = array<i64: 2, 32, 32>}, {pipeline_mode = #tpu.pipeline_mode<synchronous>, transform_indices = @transform_7, window_bounds = array<i64: 2, 1, 32>}, {pipeline_mode = #tpu.pipeline_mode<synchronous>, transform_indices = @transform_8, window_bounds = array<i64: 2, 1, 32>}, {pipeline_mode = #tpu.pipeline_mode<synchronous>, transform_indices = @transform_9, window_bounds = array<i64: 2, 1, 32>}, {pipeline_mode = #tpu.pipeline_mode<synchronous>, transform_indices = @transform_10, window_bounds = array<i64: 2, 32, 64>}, {pipeline_mode = #tpu.pipeline_mode<synchronous>, transform_indices = @transform_11, window_bounds = array<i64: 2, 1, 64>}, {pipeline_mode = #tpu.pipeline_mode<synchronous>, transform_indices = @transform_12, window_bounds = array<i64: 2, 64, 32>}, {pipeline_mode = #tpu.pipeline_mode<synchronous>, transform_indices = @transform_13, window_bounds = array<i64: 2, 1, 32>}, {pipeline_mode = #tpu.pipeline_mode<synchronous>, transform_indices = @transform_14, window_bounds = array<i64: 2, 1, 32>}, {pipeline_mode = #tpu.pipeline_mode<synchronous>, transform_indices = @transform_15, window_bounds = array<i64: 2, 1, 32>}, {transform_indices = @transform_16, window_bounds = array<i64: 1, 16, 32>}]} {
    %c0 = arith.constant 0 : index
    %c0_0 = arith.constant 0 : index
    %0 = vector.load %arg2[%c0, %c0_0] : memref<16x32xf32, #tpu.memory_space<vmem>>, vector<16x32xf32>
    %c0_1 = arith.constant 0 : index
    %c0_2 = arith.constant 0 : index
    %1 = vector.load %arg18[%c0_1, %c0_2] : memref<16x32xf32, #tpu.memory_space<vmem>>, vector<16x32xf32>
    tpu.vector_store %arg18[%c0_1, %c0_2], %0 {strides = array<i32>} : memref<16x32xf32, #tpu.memory_space<vmem>>, vector<16x32xf32>,
    %c1 = arith.constant 1 : index
    %c0_3 = arith.constant 0 : index
    %2 = vector.load %arg18[%c1, %c0_3] : memref<16x32xf32, #tpu.memory_space<vmem>>, vector<8x32xf32>
    %c0_4 = arith.constant 0 : index
    %c0_5 = arith.constant 0 : index
    %c0_6 = arith.constant 0 : index
    %3 = vector.load %arg1[%c0_4, %c0_5, %c0_6] : memref<1x8x32xf32, #tpu.memory_space<vmem>>, vector<1x8x32xf32>
    %4 = vector.shape_cast %3 : vector<1x8x32xf32> to vector<8x32xf32>
    %5 = arith.addf %2, %4 : vector<8x32xf32>
    %c1_7 = arith.constant 1 : index
    %c0_8 = arith.constant 0 : index
    %6 = vector.load %arg18[%c1_7, %c0_8] : memref<16x32xf32, #tpu.memory_space<vmem>>, vector<8x32xf32>
    tpu.vector_store %arg18[%c1_7, %c0_8], %5 {strides = array<i32>} : memref<16x32xf32, #tpu.memory_space<vmem>>, vector<8x32xf32>,
    %c0_9 = arith.constant 0 : index
    %c0_10 = arith.constant 0 : index
    %7 = vector.load %arg18[%c0_9, %c0_10] : memref<16x32xf32, #tpu.memory_space<vmem>>, vector<16x32xf32>
    %c0_11 = arith.constant 0 : index
    %c0_12 = arith.constant 0 : index
    %8 = vector.load %arg3[%c0_11, %c0_12] : memref<1x32xf32, #tpu.memory_space<vmem>>, vector<1x32xf32>
    %c0_13 = arith.constant 0 : index
    %c0_14 = arith.constant 0 : index
    %9 = vector.load %arg4[%c0_13, %c0_14] : memref<1x32xf32, #tpu.memory_space<vmem>>, vector<1x32xf32>
    %cst = arith.constant dense<0.000000e+00> : vector<16xf32>
    %10 = vector.multi_reduction <add>, %7, %cst [1] : vector<16x32xf32> to vector<16xf32>
    %11 = vector.shape_cast %10 : vector<16xf32> to vector<16x1xf32>
    %cst_15 = arith.constant 3.200000e+01 : f32
    %12 = vector.broadcast %cst_15 : f32 to vector<16x1xf32>
    %13 = arith.divf %11, %12 : vector<16x1xf32>
    %14 = vector.broadcast %13 : vector<16x1xf32> to vector<16x32xf32>
    %15 = arith.subf %7, %14 : vector<16x32xf32>
    %16 = arith.mulf %15, %15 : vector<16x32xf32>
    %cst_16 = arith.constant dense<0.000000e+00> : vector<16xf32>
    %17 = vector.multi_reduction <add>, %16, %cst_16 [1] : vector<16x32xf32> to vector<16xf32>
    %18 = vector.shape_cast %17 : vector<16xf32> to vector<16x1xf32>
    %cst_17 = arith.constant 3.200000e+01 : f32
    %19 = vector.broadcast %cst_17 : f32 to vector<16x1xf32>
    %20 = arith.divf %18, %19 : vector<16x1xf32>
    %21 = vector.broadcast %13 : vector<16x1xf32> to vector<16x32xf32>
    %22 = arith.subf %7, %21 : vector<16x32xf32>
    %cst_18 = arith.constant 9.99999993E-9 : f32
    %23 = vector.broadcast %cst_18 : f32 to vector<16x1xf32>
    %24 = arith.addf %20, %23 : vector<16x1xf32>
    %25 = math.rsqrt %24 : vector<16x1xf32>
    %26 = vector.broadcast %25 : vector<16x1xf32> to vector<16x32xf32>
    %27 = arith.mulf %22, %26 : vector<16x32xf32>
    %28 = vector.broadcast %8 : vector<1x32xf32> to vector<16x32xf32>
    %29 = arith.mulf %27, %28 : vector<16x32xf32>
    %30 = vector.broadcast %9 : vector<1x32xf32> to vector<16x32xf32>
    %31 = arith.addf %29, %30 : vector<16x32xf32>
    %32 = tpu.iota {dimensions = array<i32: 1>} : vector<16x16xi32>
    %c9_i32 = arith.constant 9 : i32
    %33 = vector.broadcast %c9_i32 : i32 to vector<16x16xi32>
    %34 = arith.cmpi slt, %32, %33 : vector<16x16xi32>
    %cst_19 = arith.constant 0.000000e+00 : f32
    %cst_20 = arith.constant -1.000000e+30 : f32
    %35 = vector.broadcast %cst_19 : f32 to vector<16x16xf32>
    %36 = vector.broadcast %cst_20 : f32 to vector<16x16xf32>
    %37 = arith.select %34, %35, %36 : vector<16x16xi1>, vector<16x16xf32>
    %38 = tpu.iota {dimensions = array<i32: 1>} : vector<16x32xi32>
    %c0_21 = arith.constant 0 : index
    %c0_22 = arith.constant 0 : index
    %c0_23 = arith.constant 0 : index
    %39 = vector.load %arg5[%c0_21, %c0_22, %c0_23] : memref<2x32x96xf32, #tpu.memory_space<vmem>>, vector<1x32x96xf32>
    %40 = vector.shape_cast %39 : vector<1x32x96xf32> to vector<32x96xf32>
    %cst_24 = arith.constant dense<0.000000e+00> : vector<16x96xf32>
    %41 = tpu.matmul %31, %40, %cst_24 {dimension_numbers = #tpu.dot_dimension_numbers<[1], [0], [0], [1], [0, 0, 1, 1], [], []>} : vector<16x32xf32>, vector<32x96xf32>, vector<16x96xf32> -> vector<16x96xf32>
    %c0_25 = arith.constant 0 : index
    %c0_26 = arith.constant 0 : index
    %c0_27 = arith.constant 0 : index
    %42 = vector.load %arg6[%c0_25, %c0_26, %c0_27] : memref<2x1x96xf32, #tpu.memory_space<vmem>>, vector<1x1x96xf32>
    %43 = vector.shape_cast %42 : vector<1x1x96xf32> to vector<1x96xf32>
    %44 = vector.broadcast %43 : vector<1x96xf32> to vector<16x96xf32>
    %45 = arith.addf %41, %44 : vector<16x96xf32>
    %c0_28 = arith.constant 0 : index
    %c0_29 = arith.constant 0 : index
    %46 = vector.load %arg19[%c0_28, %c0_29] : memref<16x96xf32, #tpu.memory_space<vmem>>, vector<16x96xf32>
    tpu.vector_store %arg19[%c0_28, %c0_29], %45 {strides = array<i32>} : memref<16x96xf32, #tpu.memory_space<vmem>>, vector<16x96xf32>,
    %c0_30 = arith.constant 0 : index
    %c0_31 = arith.constant 0 : index
    %47 = vector.load %arg19[%c0_30, %c0_31] : memref<16x96xf32, #tpu.memory_space<vmem>>, vector<16x32xf32>
    %c0_32 = arith.constant 0 : index
    %c32 = arith.constant 32 : index
    %48 = vector.load %arg19[%c0_32, %c32] : memref<16x96xf32, #tpu.memory_space<vmem>>, vector<16x32xf32>
    %c0_33 = arith.constant 0 : index
    %c64 = arith.constant 64 : index
    %49 = vector.load %arg19[%c0_33, %c64] : memref<16x96xf32, #tpu.memory_space<vmem>>, vector<16x32xf32>
    %cst_34 = arith.constant 0.000000e+00 : f32
    %50 = vector.broadcast %cst_34 : f32 to vector<16x32xf32>
    %c0_i32 = arith.constant 0 : i32
    %51 = vector.broadcast %c0_i32 : i32 to vector<16x32xi32>
    %52 = arith.cmpi sge, %38, %51 : vector<16x32xi32>
    %c4_i32 = arith.constant 4 : i32
    %53 = vector.broadcast %c4_i32 : i32 to vector<16x32xi32>
    %54 = arith.cmpi slt, %38, %53 : vector<16x32xi32>
    %55 = arith.andi %52, %54 : vector<16x32xi1>
    %cst_35 = arith.constant 0.000000e+00 : f32
    %56 = vector.broadcast %cst_35 : f32 to vector<16x32xf32>
    %57 = arith.select %55, %48, %56 : vector<16x32xi1>, vector<16x32xf32>
    %cst_36 = arith.constant 0.000000e+00 : f32
    %58 = vector.broadcast %cst_36 : f32 to vector<16x32xf32>
    %59 = arith.select %55, %49, %58 : vector<16x32xi1>, vector<16x32xf32>
    %cst_37 = arith.constant dense<0.000000e+00> : vector<16x16xf32>
    %60 = tpu.matmul %47, %57, %cst_37 {dimension_numbers = #tpu.dot_dimension_numbers<[1], [1], [0], [0], [0, 0, 1, 0], [], []>} : vector<16x32xf32>, vector<16x32xf32>, vector<16x16xf32> -> vector<16x16xf32>
    %61 = arith.addf %60, %37 : vector<16x16xf32>
    %cst_38 = arith.constant dense<0xFF800000> : vector<16xf32>
    %62 = vector.multi_reduction <maximumf>, %61, %cst_38 [1] : vector<16x16xf32> to vector<16xf32>
    %63 = vector.shape_cast %62 : vector<16xf32> to vector<16x1xf32>
    %64 = vector.broadcast %63 : vector<16x1xf32> to vector<16x16xf32>
    %65 = arith.subf %61, %64 : vector<16x16xf32>
    %66 = math.exp %65 : vector<16x16xf32>
    %cst_39 = arith.constant dense<0.000000e+00> : vector<16xf32>
    %67 = vector.multi_reduction <add>, %66, %cst_39 [1] : vector<16x16xf32> to vector<16xf32>
    %68 = vector.shape_cast %67 : vector<16xf32> to vector<16x1xf32>
    %69 = tpu.reciprocal %68 {approx = true} : vector<16x1xf32> -> vector<16x1xf32>
    %70 = vector.broadcast %69 : vector<16x1xf32> to vector<16x16xf32>
    %71 = arith.mulf %66, %70 : vector<16x16xf32>
    %cst_40 = arith.constant dense<0.000000e+00> : vector<16x32xf32>
    %72 = tpu.matmul %71, %59, %cst_40 {dimension_numbers = #tpu.dot_dimension_numbers<[1], [0], [0], [1], [0, 0, 1, 1], [], []>} : vector<16x16xf32>, vector<16x32xf32>, vector<16x32xf32> -> vector<16x32xf32>
    %73 = arith.addf %50, %72 : vector<16x32xf32>
    %c4_i32_41 = arith.constant 4 : i32
    %74 = vector.broadcast %c4_i32_41 : i32 to vector<16x32xi32>
    %75 = arith.cmpi sge, %38, %74 : vector<16x32xi32>
    %c8_i32 = arith.constant 8 : i32
    %76 = vector.broadcast %c8_i32 : i32 to vector<16x32xi32>
    %77 = arith.cmpi slt, %38, %76 : vector<16x32xi32>
    %78 = arith.andi %75, %77 : vector<16x32xi1>
    %cst_42 = arith.constant 0.000000e+00 : f32
    %79 = vector.broadcast %cst_42 : f32 to vector<16x32xf32>
    %80 = arith.select %78, %48, %79 : vector<16x32xi1>, vector<16x32xf32>
    %cst_43 = arith.constant 0.000000e+00 : f32
    %81 = vector.broadcast %cst_43 : f32 to vector<16x32xf32>
    %82 = arith.select %78, %49, %81 : vector<16x32xi1>, vector<16x32xf32>
    %cst_44 = arith.constant dense<0.000000e+00> : vector<16x16xf32>
    %83 = tpu.matmul %47, %80, %cst_44 {dimension_numbers = #tpu.dot_dimension_numbers<[1], [1], [0], [0], [0, 0, 1, 0], [], []>} : vector<16x32xf32>, vector<16x32xf32>, vector<16x16xf32> -> vector<16x16xf32>
    %84 = arith.addf %83, %37 : vector<16x16xf32>
    %cst_45 = arith.constant dense<0xFF800000> : vector<16xf32>
    %85 = vector.multi_reduction <maximumf>, %84, %cst_45 [1] : vector<16x16xf32> to vector<16xf32>
    %86 = vector.shape_cast %85 : vector<16xf32> to vector<16x1xf32>
    %87 = vector.broadcast %86 : vector<16x1xf32> to vector<16x16xf32>
    %88 = arith.subf %84, %87 : vector<16x16xf32>
    %89 = math.exp %88 : vector<16x16xf32>
    %cst_46 = arith.constant dense<0.000000e+00> : vector<16xf32>
    %90 = vector.multi_reduction <add>, %89, %cst_46 [1] : vector<16x16xf32> to vector<16xf32>
    %91 = vector.shape_cast %90 : vector<16xf32> to vector<16x1xf32>
    %92 = tpu.reciprocal %91 {approx = true} : vector<16x1xf32> -> vector<16x1xf32>
    %93 = vector.broadcast %92 : vector<16x1xf32> to vector<16x16xf32>
    %94 = arith.mulf %89, %93 : vector<16x16xf32>
    %cst_47 = arith.constant dense<0.000000e+00> : vector<16x32xf32>
    %95 = tpu.matmul %94, %82, %cst_47 {dimension_numbers = #tpu.dot_dimension_numbers<[1], [0], [0], [1], [0, 0, 1, 1], [], []>} : vector<16x16xf32>, vector<16x32xf32>, vector<16x32xf32> -> vector<16x32xf32>
    %96 = arith.addf %73, %95 : vector<16x32xf32>
    %c8_i32_48 = arith.constant 8 : i32
    %97 = vector.broadcast %c8_i32_48 : i32 to vector<16x32xi32>
    %98 = arith.cmpi sge, %38, %97 : vector<16x32xi32>
    %c12_i32 = arith.constant 12 : i32
    %99 = vector.broadcast %c12_i32 : i32 to vector<16x32xi32>
    %100 = arith.cmpi slt, %38, %99 : vector<16x32xi32>
    %101 = arith.andi %98, %100 : vector<16x32xi1>
    %cst_49 = arith.constant 0.000000e+00 : f32
    %102 = vector.broadcast %cst_49 : f32 to vector<16x32xf32>
    %103 = arith.select %101, %48, %102 : vector<16x32xi1>, vector<16x32xf32>
    %cst_50 = arith.constant 0.000000e+00 : f32
    %104 = vector.broadcast %cst_50 : f32 to vector<16x32xf32>
    %105 = arith.select %101, %49, %104 : vector<16x32xi1>, vector<16x32xf32>
    %cst_51 = arith.constant dense<0.000000e+00> : vector<16x16xf32>
    %106 = tpu.matmul %47, %103, %cst_51 {dimension_numbers = #tpu.dot_dimension_numbers<[1], [1], [0], [0], [0, 0, 1, 0], [], []>} : vector<16x32xf32>, vector<16x32xf32>, vector<16x16xf32> -> vector<16x16xf32>
    %107 = arith.addf %106, %37 : vector<16x16xf32>
    %cst_52 = arith.constant dense<0xFF800000> : vector<16xf32>
    %108 = vector.multi_reduction <maximumf>, %107, %cst_52 [1] : vector<16x16xf32> to vector<16xf32>
    %109 = vector.shape_cast %108 : vector<16xf32> to vector<16x1xf32>
    %110 = vector.broadcast %109 : vector<16x1xf32> to vector<16x16xf32>
    %111 = arith.subf %107, %110 : vector<16x16xf32>
    %112 = math.exp %111 : vector<16x16xf32>
    %cst_53 = arith.constant dense<0.000000e+00> : vector<16xf32>
    %113 = vector.multi_reduction <add>, %112, %cst_53 [1] : vector<16x16xf32> to vector<16xf32>
    %114 = vector.shape_cast %113 : vector<16xf32> to vector<16x1xf32>
    %115 = tpu.reciprocal %114 {approx = true} : vector<16x1xf32> -> vector<16x1xf32>
    %116 = vector.broadcast %115 : vector<16x1xf32> to vector<16x16xf32>
    %117 = arith.mulf %112, %116 : vector<16x16xf32>
    %cst_54 = arith.constant dense<0.000000e+00> : vector<16x32xf32>
    %118 = tpu.matmul %117, %105, %cst_54 {dimension_numbers = #tpu.dot_dimension_numbers<[1], [0], [0], [1], [0, 0, 1, 1], [], []>} : vector<16x16xf32>, vector<16x32xf32>, vector<16x32xf32> -> vector<16x32xf32>
    %119 = arith.addf %96, %118 : vector<16x32xf32>
    %c12_i32_55 = arith.constant 12 : i32
    %120 = vector.broadcast %c12_i32_55 : i32 to vector<16x32xi32>
    %121 = arith.cmpi sge, %38, %120 : vector<16x32xi32>
    %c16_i32 = arith.constant 16 : i32
    %122 = vector.broadcast %c16_i32 : i32 to vector<16x32xi32>
    %123 = arith.cmpi slt, %38, %122 : vector<16x32xi32>
    %124 = arith.andi %121, %123 : vector<16x32xi1>
    %cst_56 = arith.constant 0.000000e+00 : f32
    %125 = vector.broadcast %cst_56 : f32 to vector<16x32xf32>
    %126 = arith.select %124, %48, %125 : vector<16x32xi1>, vector<16x32xf32>
    %cst_57 = arith.constant 0.000000e+00 : f32
    %127 = vector.broadcast %cst_57 : f32 to vector<16x32xf32>
    %128 = arith.select %124, %49, %127 : vector<16x32xi1>, vector<16x32xf32>
    %cst_58 = arith.constant dense<0.000000e+00> : vector<16x16xf32>
    %129 = tpu.matmul %47, %126, %cst_58 {dimension_numbers = #tpu.dot_dimension_numbers<[1], [1], [0], [0], [0, 0, 1, 0], [], []>} : vector<16x32xf32>, vector<16x32xf32>, vector<16x16xf32> -> vector<16x16xf32>
    %130 = arith.addf %129, %37 : vector<16x16xf32>
    %cst_59 = arith.constant dense<0xFF800000> : vector<16xf32>
    %131 = vector.multi_reduction <maximumf>, %130, %cst_59 [1] : vector<16x16xf32> to vector<16xf32>
    %132 = vector.shape_cast %131 : vector<16xf32> to vector<16x1xf32>
    %133 = vector.broadcast %132 : vector<16x1xf32> to vector<16x16xf32>
    %134 = arith.subf %130, %133 : vector<16x16xf32>
    %135 = math.exp %134 : vector<16x16xf32>
    %cst_60 = arith.constant dense<0.000000e+00> : vector<16xf32>
    %136 = vector.multi_reduction <add>, %135, %cst_60 [1] : vector<16x16xf32> to vector<16xf32>
    %137 = vector.shape_cast %136 : vector<16xf32> to vector<16x1xf32>
    %138 = tpu.reciprocal %137 {approx = true} : vector<16x1xf32> -> vector<16x1xf32>
    %139 = vector.broadcast %138 : vector<16x1xf32> to vector<16x16xf32>
    %140 = arith.mulf %135, %139 : vector<16x16xf32>
    %cst_61 = arith.constant dense<0.000000e+00> : vector<16x32xf32>
    %141 = tpu.matmul %140, %128, %cst_61 {dimension_numbers = #tpu.dot_dimension_numbers<[1], [0], [0], [1], [0, 0, 1, 1], [], []>} : vector<16x16xf32>, vector<16x32xf32>, vector<16x32xf32> -> vector<16x32xf32>
    %142 = arith.addf %119, %141 : vector<16x32xf32>
    %c16_i32_62 = arith.constant 16 : i32
    %143 = vector.broadcast %c16_i32_62 : i32 to vector<16x32xi32>
    %144 = arith.cmpi sge, %38, %143 : vector<16x32xi32>
    %c20_i32 = arith.constant 20 : i32
    %145 = vector.broadcast %c20_i32 : i32 to vector<16x32xi32>
    %146 = arith.cmpi slt, %38, %145 : vector<16x32xi32>
    %147 = arith.andi %144, %146 : vector<16x32xi1>
    %cst_63 = arith.constant 0.000000e+00 : f32
    %148 = vector.broadcast %cst_63 : f32 to vector<16x32xf32>
    %149 = arith.select %147, %48, %148 : vector<16x32xi1>, vector<16x32xf32>
    %cst_64 = arith.constant 0.000000e+00 : f32
    %150 = vector.broadcast %cst_64 : f32 to vector<16x32xf32>
    %151 = arith.select %147, %49, %150 : vector<16x32xi1>, vector<16x32xf32>
    %cst_65 = arith.constant dense<0.000000e+00> : vector<16x16xf32>
    %152 = tpu.matmul %47, %149, %cst_65 {dimension_numbers = #tpu.dot_dimension_numbers<[1], [1], [0], [0], [0, 0, 1, 0], [], []>} : vector<16x32xf32>, vector<16x32xf32>, vector<16x16xf32> -> vector<16x16xf32>
    %153 = arith.addf %152, %37 : vector<16x16xf32>
    %cst_66 = arith.constant dense<0xFF800000> : vector<16xf32>
    %154 = vector.multi_reduction <maximumf>, %153, %cst_66 [1] : vector<16x16xf32> to vector<16xf32>
    %155 = vector.shape_cast %154 : vector<16xf32> to vector<16x1xf32>
    %156 = vector.broadcast %155 : vector<16x1xf32> to vector<16x16xf32>
    %157 = arith.subf %153, %156 : vector<16x16xf32>
    %158 = math.exp %157 : vector<16x16xf32>
    %cst_67 = arith.constant dense<0.000000e+00> : vector<16xf32>
    %159 = vector.multi_reduction <add>, %158, %cst_67 [1] : vector<16x16xf32> to vector<16xf32>
    %160 = vector.shape_cast %159 : vector<16xf32> to vector<16x1xf32>
    %161 = tpu.reciprocal %160 {approx = true} : vector<16x1xf32> -> vector<16x1xf32>
    %162 = vector.broadcast %161 : vector<16x1xf32> to vector<16x16xf32>
    %163 = arith.mulf %158, %162 : vector<16x16xf32>
    %cst_68 = arith.constant dense<0.000000e+00> : vector<16x32xf32>
    %164 = tpu.matmul %163, %151, %cst_68 {dimension_numbers = #tpu.dot_dimension_numbers<[1], [0], [0], [1], [0, 0, 1, 1], [], []>} : vector<16x16xf32>, vector<16x32xf32>, vector<16x32xf32> -> vector<16x32xf32>
    %165 = arith.addf %142, %164 : vector<16x32xf32>
    %c20_i32_69 = arith.constant 20 : i32
    %166 = vector.broadcast %c20_i32_69 : i32 to vector<16x32xi32>
    %167 = arith.cmpi sge, %38, %166 : vector<16x32xi32>
    %c24_i32 = arith.constant 24 : i32
    %168 = vector.broadcast %c24_i32 : i32 to vector<16x32xi32>
    %169 = arith.cmpi slt, %38, %168 : vector<16x32xi32>
    %170 = arith.andi %167, %169 : vector<16x32xi1>
    %cst_70 = arith.constant 0.000000e+00 : f32
    %171 = vector.broadcast %cst_70 : f32 to vector<16x32xf32>
    %172 = arith.select %170, %48, %171 : vector<16x32xi1>, vector<16x32xf32>
    %cst_71 = arith.constant 0.000000e+00 : f32
    %173 = vector.broadcast %cst_71 : f32 to vector<16x32xf32>
    %174 = arith.select %170, %49, %173 : vector<16x32xi1>, vector<16x32xf32>
    %cst_72 = arith.constant dense<0.000000e+00> : vector<16x16xf32>
    %175 = tpu.matmul %47, %172, %cst_72 {dimension_numbers = #tpu.dot_dimension_numbers<[1], [1], [0], [0], [0, 0, 1, 0], [], []>} : vector<16x32xf32>, vector<16x32xf32>, vector<16x16xf32> -> vector<16x16xf32>
    %176 = arith.addf %175, %37 : vector<16x16xf32>
    %cst_73 = arith.constant dense<0xFF800000> : vector<16xf32>
    %177 = vector.multi_reduction <maximumf>, %176, %cst_73 [1] : vector<16x16xf32> to vector<16xf32>
    %178 = vector.shape_cast %177 : vector<16xf32> to vector<16x1xf32>
    %179 = vector.broadcast %178 : vector<16x1xf32> to vector<16x16xf32>
    %180 = arith.subf %176, %179 : vector<16x16xf32>
    %181 = math.exp %180 : vector<16x16xf32>
    %cst_74 = arith.constant dense<0.000000e+00> : vector<16xf32>
    %182 = vector.multi_reduction <add>, %181, %cst_74 [1] : vector<16x16xf32> to vector<16xf32>
    %183 = vector.shape_cast %182 : vector<16xf32> to vector<16x1xf32>
    %184 = tpu.reciprocal %183 {approx = true} : vector<16x1xf32> -> vector<16x1xf32>
    %185 = vector.broadcast %184 : vector<16x1xf32> to vector<16x16xf32>
    %186 = arith.mulf %181, %185 : vector<16x16xf32>
    %cst_75 = arith.constant dense<0.000000e+00> : vector<16x32xf32>
    %187 = tpu.matmul %186, %174, %cst_75 {dimension_numbers = #tpu.dot_dimension_numbers<[1], [0], [0], [1], [0, 0, 1, 1], [], []>} : vector<16x16xf32>, vector<16x32xf32>, vector<16x32xf32> -> vector<16x32xf32>
    %188 = arith.addf %165, %187 : vector<16x32xf32>
    %c24_i32_76 = arith.constant 24 : i32
    %189 = vector.broadcast %c24_i32_76 : i32 to vector<16x32xi32>
    %190 = arith.cmpi sge, %38, %189 : vector<16x32xi32>
    %c28_i32 = arith.constant 28 : i32
    %191 = vector.broadcast %c28_i32 : i32 to vector<16x32xi32>
    %192 = arith.cmpi slt, %38, %191 : vector<16x32xi32>
    %193 = arith.andi %190, %192 : vector<16x32xi1>
    %cst_77 = arith.constant 0.000000e+00 : f32
    %194 = vector.broadcast %cst_77 : f32 to vector<16x32xf32>
    %195 = arith.select %193, %48, %194 : vector<16x32xi1>, vector<16x32xf32>
    %cst_78 = arith.constant 0.000000e+00 : f32
    %196 = vector.broadcast %cst_78 : f32 to vector<16x32xf32>
    %197 = arith.select %193, %49, %196 : vector<16x32xi1>, vector<16x32xf32>
    %cst_79 = arith.constant dense<0.000000e+00> : vector<16x16xf32>
    %198 = tpu.matmul %47, %195, %cst_79 {dimension_numbers = #tpu.dot_dimension_numbers<[1], [1], [0], [0], [0, 0, 1, 0], [], []>} : vector<16x32xf32>, vector<16x32xf32>, vector<16x16xf32> -> vector<16x16xf32>
    %199 = arith.addf %198, %37 : vector<16x16xf32>
    %cst_80 = arith.constant dense<0xFF800000> : vector<16xf32>
    %200 = vector.multi_reduction <maximumf>, %199, %cst_80 [1] : vector<16x16xf32> to vector<16xf32>
    %201 = vector.shape_cast %200 : vector<16xf32> to vector<16x1xf32>
    %202 = vector.broadcast %201 : vector<16x1xf32> to vector<16x16xf32>
    %203 = arith.subf %199, %202 : vector<16x16xf32>
    %204 = math.exp %203 : vector<16x16xf32>
    %cst_81 = arith.constant dense<0.000000e+00> : vector<16xf32>
    %205 = vector.multi_reduction <add>, %204, %cst_81 [1] : vector<16x16xf32> to vector<16xf32>
    %206 = vector.shape_cast %205 : vector<16xf32> to vector<16x1xf32>
    %207 = tpu.reciprocal %206 {approx = true} : vector<16x1xf32> -> vector<16x1xf32>
    %208 = vector.broadcast %207 : vector<16x1xf32> to vector<16x16xf32>
    %209 = arith.mulf %204, %208 : vector<16x16xf32>
    %cst_82 = arith.constant dense<0.000000e+00> : vector<16x32xf32>
    %210 = tpu.matmul %209, %197, %cst_82 {dimension_numbers = #tpu.dot_dimension_numbers<[1], [0], [0], [1], [0, 0, 1, 1], [], []>} : vector<16x16xf32>, vector<16x32xf32>, vector<16x32xf32> -> vector<16x32xf32>
    %211 = arith.addf %188, %210 : vector<16x32xf32>
    %c28_i32_83 = arith.constant 28 : i32
    %212 = vector.broadcast %c28_i32_83 : i32 to vector<16x32xi32>
    %213 = arith.cmpi sge, %38, %212 : vector<16x32xi32>
    %c32_i32 = arith.constant 32 : i32
    %214 = vector.broadcast %c32_i32 : i32 to vector<16x32xi32>
    %215 = arith.cmpi slt, %38, %214 : vector<16x32xi32>
    %216 = arith.andi %213, %215 : vector<16x32xi1>
    %cst_84 = arith.constant 0.000000e+00 : f32
    %217 = vector.broadcast %cst_84 : f32 to vector<16x32xf32>
    %218 = arith.select %216, %48, %217 : vector<16x32xi1>, vector<16x32xf32>
    %cst_85 = arith.constant 0.000000e+00 : f32
    %219 = vector.broadcast %cst_85 : f32 to vector<16x32xf32>
    %220 = arith.select %216, %49, %219 : vector<16x32xi1>, vector<16x32xf32>
    %cst_86 = arith.constant dense<0.000000e+00> : vector<16x16xf32>
    %221 = tpu.matmul %47, %218, %cst_86 {dimension_numbers = #tpu.dot_dimension_numbers<[1], [1], [0], [0], [0, 0, 1, 0], [], []>} : vector<16x32xf32>, vector<16x32xf32>, vector<16x16xf32> -> vector<16x16xf32>
    %222 = arith.addf %221, %37 : vector<16x16xf32>
    %cst_87 = arith.constant dense<0xFF800000> : vector<16xf32>
    %223 = vector.multi_reduction <maximumf>, %222, %cst_87 [1] : vector<16x16xf32> to vector<16xf32>
    %224 = vector.shape_cast %223 : vector<16xf32> to vector<16x1xf32>
    %225 = vector.broadcast %224 : vector<16x1xf32> to vector<16x16xf32>
    %226 = arith.subf %222, %225 : vector<16x16xf32>
    %227 = math.exp %226 : vector<16x16xf32>
    %cst_88 = arith.constant dense<0.000000e+00> : vector<16xf32>
    %228 = vector.multi_reduction <add>, %227, %cst_88 [1] : vector<16x16xf32> to vector<16xf32>
    %229 = vector.shape_cast %228 : vector<16xf32> to vector<16x1xf32>
    %230 = tpu.reciprocal %229 {approx = true} : vector<16x1xf32> -> vector<16x1xf32>
    %231 = vector.broadcast %230 : vector<16x1xf32> to vector<16x16xf32>
    %232 = arith.mulf %227, %231 : vector<16x16xf32>
    %cst_89 = arith.constant dense<0.000000e+00> : vector<16x32xf32>
    %233 = tpu.matmul %232, %220, %cst_89 {dimension_numbers = #tpu.dot_dimension_numbers<[1], [0], [0], [1], [0, 0, 1, 1], [], []>} : vector<16x16xf32>, vector<16x32xf32>, vector<16x32xf32> -> vector<16x32xf32>
    %234 = arith.addf %211, %233 : vector<16x32xf32>
    %c0_90 = arith.constant 0 : index
    %c0_91 = arith.constant 0 : index
    %c0_92 = arith.constant 0 : index
    %235 = vector.load %arg7[%c0_90, %c0_91, %c0_92] : memref<2x32x32xf32, #tpu.memory_space<vmem>>, vector<1x32x32xf32>
    %236 = vector.shape_cast %235 : vector<1x32x32xf32> to vector<32x32xf32>
    %cst_93 = arith.constant dense<0.000000e+00> : vector<16x32xf32>
    %237 = tpu.matmul %234, %236, %cst_93 {dimension_numbers = #tpu.dot_dimension_numbers<[1], [0], [0], [1], [0, 0, 1, 1], [], []>} : vector<16x32xf32>, vector<32x32xf32>, vector<16x32xf32> -> vector<16x32xf32>
    %c0_94 = arith.constant 0 : index
    %c0_95 = arith.constant 0 : index
    %c0_96 = arith.constant 0 : index
    %238 = vector.load %arg8[%c0_94, %c0_95, %c0_96] : memref<2x1x32xf32, #tpu.memory_space<vmem>>, vector<1x1x32xf32>
    %239 = vector.shape_cast %238 : vector<1x1x32xf32> to vector<1x32xf32>
    %240 = vector.broadcast %239 : vector<1x32xf32> to vector<16x32xf32>
    %241 = arith.addf %237, %240 : vector<16x32xf32>
    %242 = arith.addf %31, %241 : vector<16x32xf32>
    %c0_97 = arith.constant 0 : index
    %c0_98 = arith.constant 0 : index
    %c0_99 = arith.constant 0 : index
    %243 = vector.load %arg9[%c0_97, %c0_98, %c0_99] : memref<2x1x32xf32, #tpu.memory_space<vmem>>, vector<1x1x32xf32>
    %244 = vector.shape_cast %243 : vector<1x1x32xf32> to vector<1x32xf32>
    %c0_100 = arith.constant 0 : index
    %c0_101 = arith.constant 0 : index
    %c0_102 = arith.constant 0 : index
    %245 = vector.load %arg10[%c0_100, %c0_101, %c0_102] : memref<2x1x32xf32, #tpu.memory_space<vmem>>, vector<1x1x32xf32>
    %246 = vector.shape_cast %245 : vector<1x1x32xf32> to vector<1x32xf32>
    %cst_103 = arith.constant dense<0.000000e+00> : vector<16xf32>
    %247 = vector.multi_reduction <add>, %242, %cst_103 [1] : vector<16x32xf32> to vector<16xf32>
    %248 = vector.shape_cast %247 : vector<16xf32> to vector<16x1xf32>
    %cst_104 = arith.constant 3.200000e+01 : f32
    %249 = vector.broadcast %cst_104 : f32 to vector<16x1xf32>
    %250 = arith.divf %248, %249 : vector<16x1xf32>
    %251 = vector.broadcast %250 : vector<16x1xf32> to vector<16x32xf32>
    %252 = arith.subf %242, %251 : vector<16x32xf32>
    %253 = arith.mulf %252, %252 : vector<16x32xf32>
    %cst_105 = arith.constant dense<0.000000e+00> : vector<16xf32>
    %254 = vector.multi_reduction <add>, %253, %cst_105 [1] : vector<16x32xf32> to vector<16xf32>
    %255 = vector.shape_cast %254 : vector<16xf32> to vector<16x1xf32>
    %cst_106 = arith.constant 3.200000e+01 : f32
    %256 = vector.broadcast %cst_106 : f32 to vector<16x1xf32>
    %257 = arith.divf %255, %256 : vector<16x1xf32>
    %258 = vector.broadcast %250 : vector<16x1xf32> to vector<16x32xf32>
    %259 = arith.subf %242, %258 : vector<16x32xf32>
    %cst_107 = arith.constant 9.99999974E-6 : f32
    %260 = vector.broadcast %cst_107 : f32 to vector<16x1xf32>
    %261 = arith.addf %257, %260 : vector<16x1xf32>
    %262 = math.rsqrt %261 : vector<16x1xf32>
    %263 = vector.broadcast %262 : vector<16x1xf32> to vector<16x32xf32>
    %264 = arith.mulf %259, %263 : vector<16x32xf32>
    %265 = vector.broadcast %244 : vector<1x32xf32> to vector<16x32xf32>
    %266 = arith.mulf %264, %265 : vector<16x32xf32>
    %267 = vector.broadcast %246 : vector<1x32xf32> to vector<16x32xf32>
    %268 = arith.addf %266, %267 : vector<16x32xf32>
    %c0_108 = arith.constant 0 : index
    %c0_109 = arith.constant 0 : index
    %c0_110 = arith.constant 0 : index
    %269 = vector.load %arg11[%c0_108, %c0_109, %c0_110] : memref<2x32x64xf32, #tpu.memory_space<vmem>>, vector<1x32x64xf32>
    %270 = vector.shape_cast %269 : vector<1x32x64xf32> to vector<32x64xf32>
    %cst_111 = arith.constant dense<0.000000e+00> : vector<16x64xf32>
    %271 = tpu.matmul %268, %270, %cst_111 {dimension_numbers = #tpu.dot_dimension_numbers<[1], [0], [0], [1], [0, 0, 1, 1], [], []>} : vector<16x32xf32>, vector<32x64xf32>, vector<16x64xf32> -> vector<16x64xf32>
    %c0_112 = arith.constant 0 : index
    %c0_113 = arith.constant 0 : index
    %c0_114 = arith.constant 0 : index
    %272 = vector.load %arg12[%c0_112, %c0_113, %c0_114] : memref<2x1x64xf32, #tpu.memory_space<vmem>>, vector<1x1x64xf32>
    %273 = vector.shape_cast %272 : vector<1x1x64xf32> to vector<1x64xf32>
    %274 = vector.broadcast %273 : vector<1x64xf32> to vector<16x64xf32>
    %275 = arith.addf %271, %274 : vector<16x64xf32>
    %cst_115 = arith.constant 0.000000e+00 : f32
    %276 = vector.broadcast %cst_115 : f32 to vector<16x64xf32>
    %277 = arith.maximumf %275, %276 : vector<16x64xf32>
    %c0_116 = arith.constant 0 : index
    %c0_117 = arith.constant 0 : index
    %c0_118 = arith.constant 0 : index
    %278 = vector.load %arg13[%c0_116, %c0_117, %c0_118] : memref<2x64x32xf32, #tpu.memory_space<vmem>>, vector<1x64x32xf32>
    %279 = vector.shape_cast %278 : vector<1x64x32xf32> to vector<64x32xf32>
    %cst_119 = arith.constant dense<0.000000e+00> : vector<16x32xf32>
    %280 = tpu.matmul %277, %279, %cst_119 {dimension_numbers = #tpu.dot_dimension_numbers<[1], [0], [0], [1], [0, 0, 1, 1], [], []>} : vector<16x64xf32>, vector<64x32xf32>, vector<16x32xf32> -> vector<16x32xf32>
    %c0_120 = arith.constant 0 : index
    %c0_121 = arith.constant 0 : index
    %c0_122 = arith.constant 0 : index
    %281 = vector.load %arg14[%c0_120, %c0_121, %c0_122] : memref<2x1x32xf32, #tpu.memory_space<vmem>>, vector<1x1x32xf32>
    %282 = vector.shape_cast %281 : vector<1x1x32xf32> to vector<1x32xf32>
    %283 = vector.broadcast %282 : vector<1x32xf32> to vector<16x32xf32>
    %284 = arith.addf %280, %283 : vector<16x32xf32>
    %285 = arith.addf %268, %284 : vector<16x32xf32>
    %c0_123 = arith.constant 0 : index
    %c0_124 = arith.constant 0 : index
    %c0_125 = arith.constant 0 : index
    %286 = vector.load %arg15[%c0_123, %c0_124, %c0_125] : memref<2x1x32xf32, #tpu.memory_space<vmem>>, vector<1x1x32xf32>
    %287 = vector.shape_cast %286 : vector<1x1x32xf32> to vector<1x32xf32>
    %c0_126 = arith.constant 0 : index
    %c0_127 = arith.constant 0 : index
    %c0_128 = arith.constant 0 : index
    %288 = vector.load %arg16[%c0_126, %c0_127, %c0_128] : memref<2x1x32xf32, #tpu.memory_space<vmem>>, vector<1x1x32xf32>
    %289 = vector.shape_cast %288 : vector<1x1x32xf32> to vector<1x32xf32>
    %cst_129 = arith.constant dense<0.000000e+00> : vector<16xf32>
    %290 = vector.multi_reduction <add>, %285, %cst_129 [1] : vector<16x32xf32> to vector<16xf32>
    %291 = vector.shape_cast %290 : vector<16xf32> to vector<16x1xf32>
    %cst_130 = arith.constant 3.200000e+01 : f32
    %292 = vector.broadcast %cst_130 : f32 to vector<16x1xf32>
    %293 = arith.divf %291, %292 : vector<16x1xf32>
    %294 = vector.broadcast %293 : vector<16x1xf32> to vector<16x32xf32>
    %295 = arith.subf %285, %294 : vector<16x32xf32>
    %296 = arith.mulf %295, %295 : vector<16x32xf32>
    %cst_131 = arith.constant dense<0.000000e+00> : vector<16xf32>
    %297 = vector.multi_reduction <add>, %296, %cst_131 [1] : vector<16x32xf32> to vector<16xf32>
    %298 = vector.shape_cast %297 : vector<16xf32> to vector<16x1xf32>
    %cst_132 = arith.constant 3.200000e+01 : f32
    %299 = vector.broadcast %cst_132 : f32 to vector<16x1xf32>
    %300 = arith.divf %298, %299 : vector<16x1xf32>
    %301 = vector.broadcast %293 : vector<16x1xf32> to vector<16x32xf32>
    %302 = arith.subf %285, %301 : vector<16x32xf32>
    %cst_133 = arith.constant 9.99999974E-6 : f32
    %303 = vector.broadcast %cst_133 : f32 to vector<16x1xf32>
    %304 = arith.addf %300, %303 : vector<16x1xf32>
    %305 = math.rsqrt %304 : vector<16x1xf32>
    %306 = vector.broadcast %305 : vector<16x1xf32> to vector<16x32xf32>
    %307 = arith.mulf %302, %306 : vector<16x32xf32>
    %308 = vector.broadcast %287 : vector<1x32xf32> to vector<16x32xf32>
    %309 = arith.mulf %307, %308 : vector<16x32xf32>
    %310 = vector.broadcast %289 : vector<1x32xf32> to vector<16x32xf32>
    %311 = arith.addf %309, %310 : vector<16x32xf32>
    %c1_134 = arith.constant 1 : index
    %c0_135 = arith.constant 0 : index
    %c0_136 = arith.constant 0 : index
    %312 = vector.load %arg5[%c1_134, %c0_135, %c0_136] : memref<2x32x96xf32, #tpu.memory_space<vmem>>, vector<1x32x96xf32>
    %313 = vector.shape_cast %312 : vector<1x32x96xf32> to vector<32x96xf32>
    %cst_137 = arith.constant dense<0.000000e+00> : vector<16x96xf32>
    %314 = tpu.matmul %311, %313, %cst_137 {dimension_numbers = #tpu.dot_dimension_numbers<[1], [0], [0], [1], [0, 0, 1, 1], [], []>} : vector<16x32xf32>, vector<32x96xf32>, vector<16x96xf32> -> vector<16x96xf32>
    %c1_138 = arith.constant 1 : index
    %c0_139 = arith.constant 0 : index
    %c0_140 = arith.constant 0 : index
    %315 = vector.load %arg6[%c1_138, %c0_139, %c0_140] : memref<2x1x96xf32, #tpu.memory_space<vmem>>, vector<1x1x96xf32>
    %316 = vector.shape_cast %315 : vector<1x1x96xf32> to vector<1x96xf32>
    %317 = vector.broadcast %316 : vector<1x96xf32> to vector<16x96xf32>
    %318 = arith.addf %314, %317 : vector<16x96xf32>
    %c0_141 = arith.constant 0 : index
    %c0_142 = arith.constant 0 : index
    %319 = vector.load %arg19[%c0_141, %c0_142] : memref<16x96xf32, #tpu.memory_space<vmem>>, vector<16x96xf32>
    tpu.vector_store %arg19[%c0_141, %c0_142], %318 {strides = array<i32>} : memref<16x96xf32, #tpu.memory_space<vmem>>, vector<16x96xf32>,
    %c0_143 = arith.constant 0 : index
    %c0_144 = arith.constant 0 : index
    %320 = vector.load %arg19[%c0_143, %c0_144] : memref<16x96xf32, #tpu.memory_space<vmem>>, vector<16x32xf32>
    %c0_145 = arith.constant 0 : index
    %c32_146 = arith.constant 32 : index
    %321 = vector.load %arg19[%c0_145, %c32_146] : memref<16x96xf32, #tpu.memory_space<vmem>>, vector<16x32xf32>
    %c0_147 = arith.constant 0 : index
    %c64_148 = arith.constant 64 : index
    %322 = vector.load %arg19[%c0_147, %c64_148] : memref<16x96xf32, #tpu.memory_space<vmem>>, vector<16x32xf32>
    %cst_149 = arith.constant 0.000000e+00 : f32
    %323 = vector.broadcast %cst_149 : f32 to vector<16x32xf32>
    %c0_i32_150 = arith.constant 0 : i32
    %324 = vector.broadcast %c0_i32_150 : i32 to vector<16x32xi32>
    %325 = arith.cmpi sge, %38, %324 : vector<16x32xi32>
    %c4_i32_151 = arith.constant 4 : i32
    %326 = vector.broadcast %c4_i32_151 : i32 to vector<16x32xi32>
    %327 = arith.cmpi slt, %38, %326 : vector<16x32xi32>
    %328 = arith.andi %325, %327 : vector<16x32xi1>
    %cst_152 = arith.constant 0.000000e+00 : f32
    %329 = vector.broadcast %cst_152 : f32 to vector<16x32xf32>
    %330 = arith.select %328, %321, %329 : vector<16x32xi1>, vector<16x32xf32>
    %cst_153 = arith.constant 0.000000e+00 : f32
    %331 = vector.broadcast %cst_153 : f32 to vector<16x32xf32>
    %332 = arith.select %328, %322, %331 : vector<16x32xi1>, vector<16x32xf32>
    %cst_154 = arith.constant dense<0.000000e+00> : vector<16x16xf32>
    %333 = tpu.matmul %320, %330, %cst_154 {dimension_numbers = #tpu.dot_dimension_numbers<[1], [1], [0], [0], [0, 0, 1, 0], [], []>} : vector<16x32xf32>, vector<16x32xf32>, vector<16x16xf32> -> vector<16x16xf32>
    %334 = arith.addf %333, %37 : vector<16x16xf32>
    %cst_155 = arith.constant dense<0xFF800000> : vector<16xf32>
    %335 = vector.multi_reduction <maximumf>, %334, %cst_155 [1] : vector<16x16xf32> to vector<16xf32>
    %336 = vector.shape_cast %335 : vector<16xf32> to vector<16x1xf32>
    %337 = vector.broadcast %336 : vector<16x1xf32> to vector<16x16xf32>
    %338 = arith.subf %334, %337 : vector<16x16xf32>
    %339 = math.exp %338 : vector<16x16xf32>
    %cst_156 = arith.constant dense<0.000000e+00> : vector<16xf32>
    %340 = vector.multi_reduction <add>, %339, %cst_156 [1] : vector<16x16xf32> to vector<16xf32>
    %341 = vector.shape_cast %340 : vector<16xf32> to vector<16x1xf32>
    %342 = tpu.reciprocal %341 {approx = true} : vector<16x1xf32> -> vector<16x1xf32>
    %343 = vector.broadcast %342 : vector<16x1xf32> to vector<16x16xf32>
    %344 = arith.mulf %339, %343 : vector<16x16xf32>
    %cst_157 = arith.constant dense<0.000000e+00> : vector<16x32xf32>
    %345 = tpu.matmul %344, %332, %cst_157 {dimension_numbers = #tpu.dot_dimension_numbers<[1], [0], [0], [1], [0, 0, 1, 1], [], []>} : vector<16x16xf32>, vector<16x32xf32>, vector<16x32xf32> -> vector<16x32xf32>
    %346 = arith.addf %323, %345 : vector<16x32xf32>
    %c4_i32_158 = arith.constant 4 : i32
    %347 = vector.broadcast %c4_i32_158 : i32 to vector<16x32xi32>
    %348 = arith.cmpi sge, %38, %347 : vector<16x32xi32>
    %c8_i32_159 = arith.constant 8 : i32
    %349 = vector.broadcast %c8_i32_159 : i32 to vector<16x32xi32>
    %350 = arith.cmpi slt, %38, %349 : vector<16x32xi32>
    %351 = arith.andi %348, %350 : vector<16x32xi1>
    %cst_160 = arith.constant 0.000000e+00 : f32
    %352 = vector.broadcast %cst_160 : f32 to vector<16x32xf32>
    %353 = arith.select %351, %321, %352 : vector<16x32xi1>, vector<16x32xf32>
    %cst_161 = arith.constant 0.000000e+00 : f32
    %354 = vector.broadcast %cst_161 : f32 to vector<16x32xf32>
    %355 = arith.select %351, %322, %354 : vector<16x32xi1>, vector<16x32xf32>
    %cst_162 = arith.constant dense<0.000000e+00> : vector<16x16xf32>
    %356 = tpu.matmul %320, %353, %cst_162 {dimension_numbers = #tpu.dot_dimension_numbers<[1], [1], [0], [0], [0, 0, 1, 0], [], []>} : vector<16x32xf32>, vector<16x32xf32>, vector<16x16xf32> -> vector<16x16xf32>
    %357 = arith.addf %356, %37 : vector<16x16xf32>
    %cst_163 = arith.constant dense<0xFF800000> : vector<16xf32>
    %358 = vector.multi_reduction <maximumf>, %357, %cst_163 [1] : vector<16x16xf32> to vector<16xf32>
    %359 = vector.shape_cast %358 : vector<16xf32> to vector<16x1xf32>
    %360 = vector.broadcast %359 : vector<16x1xf32> to vector<16x16xf32>
    %361 = arith.subf %357, %360 : vector<16x16xf32>
    %362 = math.exp %361 : vector<16x16xf32>
    %cst_164 = arith.constant dense<0.000000e+00> : vector<16xf32>
    %363 = vector.multi_reduction <add>, %362, %cst_164 [1] : vector<16x16xf32> to vector<16xf32>
    %364 = vector.shape_cast %363 : vector<16xf32> to vector<16x1xf32>
    %365 = tpu.reciprocal %364 {approx = true} : vector<16x1xf32> -> vector<16x1xf32>
    %366 = vector.broadcast %365 : vector<16x1xf32> to vector<16x16xf32>
    %367 = arith.mulf %362, %366 : vector<16x16xf32>
    %cst_165 = arith.constant dense<0.000000e+00> : vector<16x32xf32>
    %368 = tpu.matmul %367, %355, %cst_165 {dimension_numbers = #tpu.dot_dimension_numbers<[1], [0], [0], [1], [0, 0, 1, 1], [], []>} : vector<16x16xf32>, vector<16x32xf32>, vector<16x32xf32> -> vector<16x32xf32>
    %369 = arith.addf %346, %368 : vector<16x32xf32>
    %c8_i32_166 = arith.constant 8 : i32
    %370 = vector.broadcast %c8_i32_166 : i32 to vector<16x32xi32>
    %371 = arith.cmpi sge, %38, %370 : vector<16x32xi32>
    %c12_i32_167 = arith.constant 12 : i32
    %372 = vector.broadcast %c12_i32_167 : i32 to vector<16x32xi32>
    %373 = arith.cmpi slt, %38, %372 : vector<16x32xi32>
    %374 = arith.andi %371, %373 : vector<16x32xi1>
    %cst_168 = arith.constant 0.000000e+00 : f32
    %375 = vector.broadcast %cst_168 : f32 to vector<16x32xf32>
    %376 = arith.select %374, %321, %375 : vector<16x32xi1>, vector<16x32xf32>
    %cst_169 = arith.constant 0.000000e+00 : f32
    %377 = vector.broadcast %cst_169 : f32 to vector<16x32xf32>
    %378 = arith.select %374, %322, %377 : vector<16x32xi1>, vector<16x32xf32>
    %cst_170 = arith.constant dense<0.000000e+00> : vector<16x16xf32>
    %379 = tpu.matmul %320, %376, %cst_170 {dimension_numbers = #tpu.dot_dimension_numbers<[1], [1], [0], [0], [0, 0, 1, 0], [], []>} : vector<16x32xf32>, vector<16x32xf32>, vector<16x16xf32> -> vector<16x16xf32>
    %380 = arith.addf %379, %37 : vector<16x16xf32>
    %cst_171 = arith.constant dense<0xFF800000> : vector<16xf32>
    %381 = vector.multi_reduction <maximumf>, %380, %cst_171 [1] : vector<16x16xf32> to vector<16xf32>
    %382 = vector.shape_cast %381 : vector<16xf32> to vector<16x1xf32>
    %383 = vector.broadcast %382 : vector<16x1xf32> to vector<16x16xf32>
    %384 = arith.subf %380, %383 : vector<16x16xf32>
    %385 = math.exp %384 : vector<16x16xf32>
    %cst_172 = arith.constant dense<0.000000e+00> : vector<16xf32>
    %386 = vector.multi_reduction <add>, %385, %cst_172 [1] : vector<16x16xf32> to vector<16xf32>
    %387 = vector.shape_cast %386 : vector<16xf32> to vector<16x1xf32>
    %388 = tpu.reciprocal %387 {approx = true} : vector<16x1xf32> -> vector<16x1xf32>
    %389 = vector.broadcast %388 : vector<16x1xf32> to vector<16x16xf32>
    %390 = arith.mulf %385, %389 : vector<16x16xf32>
    %cst_173 = arith.constant dense<0.000000e+00> : vector<16x32xf32>
    %391 = tpu.matmul %390, %378, %cst_173 {dimension_numbers = #tpu.dot_dimension_numbers<[1], [0], [0], [1], [0, 0, 1, 1], [], []>} : vector<16x16xf32>, vector<16x32xf32>, vector<16x32xf32> -> vector<16x32xf32>
    %392 = arith.addf %369, %391 : vector<16x32xf32>
    %c12_i32_174 = arith.constant 12 : i32
    %393 = vector.broadcast %c12_i32_174 : i32 to vector<16x32xi32>
    %394 = arith.cmpi sge, %38, %393 : vector<16x32xi32>
    %c16_i32_175 = arith.constant 16 : i32
    %395 = vector.broadcast %c16_i32_175 : i32 to vector<16x32xi32>
    %396 = arith.cmpi slt, %38, %395 : vector<16x32xi32>
    %397 = arith.andi %394, %396 : vector<16x32xi1>
    %cst_176 = arith.constant 0.000000e+00 : f32
    %398 = vector.broadcast %cst_176 : f32 to vector<16x32xf32>
    %399 = arith.select %397, %321, %398 : vector<16x32xi1>, vector<16x32xf32>
    %cst_177 = arith.constant 0.000000e+00 : f32
    %400 = vector.broadcast %cst_177 : f32 to vector<16x32xf32>
    %401 = arith.select %397, %322, %400 : vector<16x32xi1>, vector<16x32xf32>
    %cst_178 = arith.constant dense<0.000000e+00> : vector<16x16xf32>
    %402 = tpu.matmul %320, %399, %cst_178 {dimension_numbers = #tpu.dot_dimension_numbers<[1], [1], [0], [0], [0, 0, 1, 0], [], []>} : vector<16x32xf32>, vector<16x32xf32>, vector<16x16xf32> -> vector<16x16xf32>
    %403 = arith.addf %402, %37 : vector<16x16xf32>
    %cst_179 = arith.constant dense<0xFF800000> : vector<16xf32>
    %404 = vector.multi_reduction <maximumf>, %403, %cst_179 [1] : vector<16x16xf32> to vector<16xf32>
    %405 = vector.shape_cast %404 : vector<16xf32> to vector<16x1xf32>
    %406 = vector.broadcast %405 : vector<16x1xf32> to vector<16x16xf32>
    %407 = arith.subf %403, %406 : vector<16x16xf32>
    %408 = math.exp %407 : vector<16x16xf32>
    %cst_180 = arith.constant dense<0.000000e+00> : vector<16xf32>
    %409 = vector.multi_reduction <add>, %408, %cst_180 [1] : vector<16x16xf32> to vector<16xf32>
    %410 = vector.shape_cast %409 : vector<16xf32> to vector<16x1xf32>
    %411 = tpu.reciprocal %410 {approx = true} : vector<16x1xf32> -> vector<16x1xf32>
    %412 = vector.broadcast %411 : vector<16x1xf32> to vector<16x16xf32>
    %413 = arith.mulf %408, %412 : vector<16x16xf32>
    %cst_181 = arith.constant dense<0.000000e+00> : vector<16x32xf32>
    %414 = tpu.matmul %413, %401, %cst_181 {dimension_numbers = #tpu.dot_dimension_numbers<[1], [0], [0], [1], [0, 0, 1, 1], [], []>} : vector<16x16xf32>, vector<16x32xf32>, vector<16x32xf32> -> vector<16x32xf32>
    %415 = arith.addf %392, %414 : vector<16x32xf32>
    %c16_i32_182 = arith.constant 16 : i32
    %416 = vector.broadcast %c16_i32_182 : i32 to vector<16x32xi32>
    %417 = arith.cmpi sge, %38, %416 : vector<16x32xi32>
    %c20_i32_183 = arith.constant 20 : i32
    %418 = vector.broadcast %c20_i32_183 : i32 to vector<16x32xi32>
    %419 = arith.cmpi slt, %38, %418 : vector<16x32xi32>
    %420 = arith.andi %417, %419 : vector<16x32xi1>
    %cst_184 = arith.constant 0.000000e+00 : f32
    %421 = vector.broadcast %cst_184 : f32 to vector<16x32xf32>
    %422 = arith.select %420, %321, %421 : vector<16x32xi1>, vector<16x32xf32>
    %cst_185 = arith.constant 0.000000e+00 : f32
    %423 = vector.broadcast %cst_185 : f32 to vector<16x32xf32>
    %424 = arith.select %420, %322, %423 : vector<16x32xi1>, vector<16x32xf32>
    %cst_186 = arith.constant dense<0.000000e+00> : vector<16x16xf32>
    %425 = tpu.matmul %320, %422, %cst_186 {dimension_numbers = #tpu.dot_dimension_numbers<[1], [1], [0], [0], [0, 0, 1, 0], [], []>} : vector<16x32xf32>, vector<16x32xf32>, vector<16x16xf32> -> vector<16x16xf32>
    %426 = arith.addf %425, %37 : vector<16x16xf32>
    %cst_187 = arith.constant dense<0xFF800000> : vector<16xf32>
    %427 = vector.multi_reduction <maximumf>, %426, %cst_187 [1] : vector<16x16xf32> to vector<16xf32>
    %428 = vector.shape_cast %427 : vector<16xf32> to vector<16x1xf32>
    %429 = vector.broadcast %428 : vector<16x1xf32> to vector<16x16xf32>
    %430 = arith.subf %426, %429 : vector<16x16xf32>
    %431 = math.exp %430 : vector<16x16xf32>
    %cst_188 = arith.constant dense<0.000000e+00> : vector<16xf32>
    %432 = vector.multi_reduction <add>, %431, %cst_188 [1] : vector<16x16xf32> to vector<16xf32>
    %433 = vector.shape_cast %432 : vector<16xf32> to vector<16x1xf32>
    %434 = tpu.reciprocal %433 {approx = true} : vector<16x1xf32> -> vector<16x1xf32>
    %435 = vector.broadcast %434 : vector<16x1xf32> to vector<16x16xf32>
    %436 = arith.mulf %431, %435 : vector<16x16xf32>
    %cst_189 = arith.constant dense<0.000000e+00> : vector<16x32xf32>
    %437 = tpu.matmul %436, %424, %cst_189 {dimension_numbers = #tpu.dot_dimension_numbers<[1], [0], [0], [1], [0, 0, 1, 1], [], []>} : vector<16x16xf32>, vector<16x32xf32>, vector<16x32xf32> -> vector<16x32xf32>
    %438 = arith.addf %415, %437 : vector<16x32xf32>
    %c20_i32_190 = arith.constant 20 : i32
    %439 = vector.broadcast %c20_i32_190 : i32 to vector<16x32xi32>
    %440 = arith.cmpi sge, %38, %439 : vector<16x32xi32>
    %c24_i32_191 = arith.constant 24 : i32
    %441 = vector.broadcast %c24_i32_191 : i32 to vector<16x32xi32>
    %442 = arith.cmpi slt, %38, %441 : vector<16x32xi32>
    %443 = arith.andi %440, %442 : vector<16x32xi1>
    %cst_192 = arith.constant 0.000000e+00 : f32
    %444 = vector.broadcast %cst_192 : f32 to vector<16x32xf32>
    %445 = arith.select %443, %321, %444 : vector<16x32xi1>, vector<16x32xf32>
    %cst_193 = arith.constant 0.000000e+00 : f32
    %446 = vector.broadcast %cst_193 : f32 to vector<16x32xf32>
    %447 = arith.select %443, %322, %446 : vector<16x32xi1>, vector<16x32xf32>
    %cst_194 = arith.constant dense<0.000000e+00> : vector<16x16xf32>
    %448 = tpu.matmul %320, %445, %cst_194 {dimension_numbers = #tpu.dot_dimension_numbers<[1], [1], [0], [0], [0, 0, 1, 0], [], []>} : vector<16x32xf32>, vector<16x32xf32>, vector<16x16xf32> -> vector<16x16xf32>
    %449 = arith.addf %448, %37 : vector<16x16xf32>
    %cst_195 = arith.constant dense<0xFF800000> : vector<16xf32>
    %450 = vector.multi_reduction <maximumf>, %449, %cst_195 [1] : vector<16x16xf32> to vector<16xf32>
    %451 = vector.shape_cast %450 : vector<16xf32> to vector<16x1xf32>
    %452 = vector.broadcast %451 : vector<16x1xf32> to vector<16x16xf32>
    %453 = arith.subf %449, %452 : vector<16x16xf32>
    %454 = math.exp %453 : vector<16x16xf32>
    %cst_196 = arith.constant dense<0.000000e+00> : vector<16xf32>
    %455 = vector.multi_reduction <add>, %454, %cst_196 [1] : vector<16x16xf32> to vector<16xf32>
    %456 = vector.shape_cast %455 : vector<16xf32> to vector<16x1xf32>
    %457 = tpu.reciprocal %456 {approx = true} : vector<16x1xf32> -> vector<16x1xf32>
    %458 = vector.broadcast %457 : vector<16x1xf32> to vector<16x16xf32>
    %459 = arith.mulf %454, %458 : vector<16x16xf32>
    %cst_197 = arith.constant dense<0.000000e+00> : vector<16x32xf32>
    %460 = tpu.matmul %459, %447, %cst_197 {dimension_numbers = #tpu.dot_dimension_numbers<[1], [0], [0], [1], [0, 0, 1, 1], [], []>} : vector<16x16xf32>, vector<16x32xf32>, vector<16x32xf32> -> vector<16x32xf32>
    %461 = arith.addf %438, %460 : vector<16x32xf32>
    %c24_i32_198 = arith.constant 24 : i32
    %462 = vector.broadcast %c24_i32_198 : i32 to vector<16x32xi32>
    %463 = arith.cmpi sge, %38, %462 : vector<16x32xi32>
    %c28_i32_199 = arith.constant 28 : i32
    %464 = vector.broadcast %c28_i32_199 : i32 to vector<16x32xi32>
    %465 = arith.cmpi slt, %38, %464 : vector<16x32xi32>
    %466 = arith.andi %463, %465 : vector<16x32xi1>
    %cst_200 = arith.constant 0.000000e+00 : f32
    %467 = vector.broadcast %cst_200 : f32 to vector<16x32xf32>
    %468 = arith.select %466, %321, %467 : vector<16x32xi1>, vector<16x32xf32>
    %cst_201 = arith.constant 0.000000e+00 : f32
    %469 = vector.broadcast %cst_201 : f32 to vector<16x32xf32>
    %470 = arith.select %466, %322, %469 : vector<16x32xi1>, vector<16x32xf32>
    %cst_202 = arith.constant dense<0.000000e+00> : vector<16x16xf32>
    %471 = tpu.matmul %320, %468, %cst_202 {dimension_numbers = #tpu.dot_dimension_numbers<[1], [1], [0], [0], [0, 0, 1, 0], [], []>} : vector<16x32xf32>, vector<16x32xf32>, vector<16x16xf32> -> vector<16x16xf32>
    %472 = arith.addf %471, %37 : vector<16x16xf32>
    %cst_203 = arith.constant dense<0xFF800000> : vector<16xf32>
    %473 = vector.multi_reduction <maximumf>, %472, %cst_203 [1] : vector<16x16xf32> to vector<16xf32>
    %474 = vector.shape_cast %473 : vector<16xf32> to vector<16x1xf32>
    %475 = vector.broadcast %474 : vector<16x1xf32> to vector<16x16xf32>
    %476 = arith.subf %472, %475 : vector<16x16xf32>
    %477 = math.exp %476 : vector<16x16xf32>
    %cst_204 = arith.constant dense<0.000000e+00> : vector<16xf32>
    %478 = vector.multi_reduction <add>, %477, %cst_204 [1] : vector<16x16xf32> to vector<16xf32>
    %479 = vector.shape_cast %478 : vector<16xf32> to vector<16x1xf32>
    %480 = tpu.reciprocal %479 {approx = true} : vector<16x1xf32> -> vector<16x1xf32>
    %481 = vector.broadcast %480 : vector<16x1xf32> to vector<16x16xf32>
    %482 = arith.mulf %477, %481 : vector<16x16xf32>
    %cst_205 = arith.constant dense<0.000000e+00> : vector<16x32xf32>
    %483 = tpu.matmul %482, %470, %cst_205 {dimension_numbers = #tpu.dot_dimension_numbers<[1], [0], [0], [1], [0, 0, 1, 1], [], []>} : vector<16x16xf32>, vector<16x32xf32>, vector<16x32xf32> -> vector<16x32xf32>
    %484 = arith.addf %461, %483 : vector<16x32xf32>
    %c28_i32_206 = arith.constant 28 : i32
    %485 = vector.broadcast %c28_i32_206 : i32 to vector<16x32xi32>
    %486 = arith.cmpi sge, %38, %485 : vector<16x32xi32>
    %c32_i32_207 = arith.constant 32 : i32
    %487 = vector.broadcast %c32_i32_207 : i32 to vector<16x32xi32>
    %488 = arith.cmpi slt, %38, %487 : vector<16x32xi32>
    %489 = arith.andi %486, %488 : vector<16x32xi1>
    %cst_208 = arith.constant 0.000000e+00 : f32
    %490 = vector.broadcast %cst_208 : f32 to vector<16x32xf32>
    %491 = arith.select %489, %321, %490 : vector<16x32xi1>, vector<16x32xf32>
    %cst_209 = arith.constant 0.000000e+00 : f32
    %492 = vector.broadcast %cst_209 : f32 to vector<16x32xf32>
    %493 = arith.select %489, %322, %492 : vector<16x32xi1>, vector<16x32xf32>
    %cst_210 = arith.constant dense<0.000000e+00> : vector<16x16xf32>
    %494 = tpu.matmul %320, %491, %cst_210 {dimension_numbers = #tpu.dot_dimension_numbers<[1], [1], [0], [0], [0, 0, 1, 0], [], []>} : vector<16x32xf32>, vector<16x32xf32>, vector<16x16xf32> -> vector<16x16xf32>
    %495 = arith.addf %494, %37 : vector<16x16xf32>
    %cst_211 = arith.constant dense<0xFF800000> : vector<16xf32>
    %496 = vector.multi_reduction <maximumf>, %495, %cst_211 [1] : vector<16x16xf32> to vector<16xf32>
    %497 = vector.shape_cast %496 : vector<16xf32> to vector<16x1xf32>
    %498 = vector.broadcast %497 : vector<16x1xf32> to vector<16x16xf32>
    %499 = arith.subf %495, %498 : vector<16x16xf32>
    %500 = math.exp %499 : vector<16x16xf32>
    %cst_212 = arith.constant dense<0.000000e+00> : vector<16xf32>
    %501 = vector.multi_reduction <add>, %500, %cst_212 [1] : vector<16x16xf32> to vector<16xf32>
    %502 = vector.shape_cast %501 : vector<16xf32> to vector<16x1xf32>
    %503 = tpu.reciprocal %502 {approx = true} : vector<16x1xf32> -> vector<16x1xf32>
    %504 = vector.broadcast %503 : vector<16x1xf32> to vector<16x16xf32>
    %505 = arith.mulf %500, %504 : vector<16x16xf32>
    %cst_213 = arith.constant dense<0.000000e+00> : vector<16x32xf32>
    %506 = tpu.matmul %505, %493, %cst_213 {dimension_numbers = #tpu.dot_dimension_numbers<[1], [0], [0], [1], [0, 0, 1, 1], [], []>} : vector<16x16xf32>, vector<16x32xf32>, vector<16x32xf32> -> vector<16x32xf32>
    %507 = arith.addf %484, %506 : vector<16x32xf32>
    %c1_214 = arith.constant 1 : index
    %c0_215 = arith.constant 0 : index
    %c0_216 = arith.constant 0 : index
    %508 = vector.load %arg7[%c1_214, %c0_215, %c0_216] : memref<2x32x32xf32, #tpu.memory_space<vmem>>, vector<1x32x32xf32>
    %509 = vector.shape_cast %508 : vector<1x32x32xf32> to vector<32x32xf32>
    %cst_217 = arith.constant dense<0.000000e+00> : vector<16x32xf32>
    %510 = tpu.matmul %507, %509, %cst_217 {dimension_numbers = #tpu.dot_dimension_numbers<[1], [0], [0], [1], [0, 0, 1, 1], [], []>} : vector<16x32xf32>, vector<32x32xf32>, vector<16x32xf32> -> vector<16x32xf32>
    %c1_218 = arith.constant 1 : index
    %c0_219 = arith.constant 0 : index
    %c0_220 = arith.constant 0 : index
    %511 = vector.load %arg8[%c1_218, %c0_219, %c0_220] : memref<2x1x32xf32, #tpu.memory_space<vmem>>, vector<1x1x32xf32>
    %512 = vector.shape_cast %511 : vector<1x1x32xf32> to vector<1x32xf32>
    %513 = vector.broadcast %512 : vector<1x32xf32> to vector<16x32xf32>
    %514 = arith.addf %510, %513 : vector<16x32xf32>
    %515 = arith.addf %311, %514 : vector<16x32xf32>
    %c1_221 = arith.constant 1 : index
    %c0_222 = arith.constant 0 : index
    %c0_223 = arith.constant 0 : index
    %516 = vector.load %arg9[%c1_221, %c0_222, %c0_223] : memref<2x1x32xf32, #tpu.memory_space<vmem>>, vector<1x1x32xf32>
    %517 = vector.shape_cast %516 : vector<1x1x32xf32> to vector<1x32xf32>
    %c1_224 = arith.constant 1 : index
    %c0_225 = arith.constant 0 : index
    %c0_226 = arith.constant 0 : index
    %518 = vector.load %arg10[%c1_224, %c0_225, %c0_226] : memref<2x1x32xf32, #tpu.memory_space<vmem>>, vector<1x1x32xf32>
    %519 = vector.shape_cast %518 : vector<1x1x32xf32> to vector<1x32xf32>
    %cst_227 = arith.constant dense<0.000000e+00> : vector<16xf32>
    %520 = vector.multi_reduction <add>, %515, %cst_227 [1] : vector<16x32xf32> to vector<16xf32>
    %521 = vector.shape_cast %520 : vector<16xf32> to vector<16x1xf32>
    %cst_228 = arith.constant 3.200000e+01 : f32
    %522 = vector.broadcast %cst_228 : f32 to vector<16x1xf32>
    %523 = arith.divf %521, %522 : vector<16x1xf32>
    %524 = vector.broadcast %523 : vector<16x1xf32> to vector<16x32xf32>
    %525 = arith.subf %515, %524 : vector<16x32xf32>
    %526 = arith.mulf %525, %525 : vector<16x32xf32>
    %cst_229 = arith.constant dense<0.000000e+00> : vector<16xf32>
    %527 = vector.multi_reduction <add>, %526, %cst_229 [1] : vector<16x32xf32> to vector<16xf32>
    %528 = vector.shape_cast %527 : vector<16xf32> to vector<16x1xf32>
    %cst_230 = arith.constant 3.200000e+01 : f32
    %529 = vector.broadcast %cst_230 : f32 to vector<16x1xf32>
    %530 = arith.divf %528, %529 : vector<16x1xf32>
    %531 = vector.broadcast %523 : vector<16x1xf32> to vector<16x32xf32>
    %532 = arith.subf %515, %531 : vector<16x32xf32>
    %cst_231 = arith.constant 9.99999974E-6 : f32
    %533 = vector.broadcast %cst_231 : f32 to vector<16x1xf32>
    %534 = arith.addf %530, %533 : vector<16x1xf32>
    %535 = math.rsqrt %534 : vector<16x1xf32>
    %536 = vector.broadcast %535 : vector<16x1xf32> to vector<16x32xf32>
    %537 = arith.mulf %532, %536 : vector<16x32xf32>
    %538 = vector.broadcast %517 : vector<1x32xf32> to vector<16x32xf32>
    %539 = arith.mulf %537, %538 : vector<16x32xf32>
    %540 = vector.broadcast %519 : vector<1x32xf32> to vector<16x32xf32>
    %541 = arith.addf %539, %540 : vector<16x32xf32>
    %c1_232 = arith.constant 1 : index
    %c0_233 = arith.constant 0 : index
    %c0_234 = arith.constant 0 : index
    %542 = vector.load %arg11[%c1_232, %c0_233, %c0_234] : memref<2x32x64xf32, #tpu.memory_space<vmem>>, vector<1x32x64xf32>
    %543 = vector.shape_cast %542 : vector<1x32x64xf32> to vector<32x64xf32>
    %cst_235 = arith.constant dense<0.000000e+00> : vector<16x64xf32>
    %544 = tpu.matmul %541, %543, %cst_235 {dimension_numbers = #tpu.dot_dimension_numbers<[1], [0], [0], [1], [0, 0, 1, 1], [], []>} : vector<16x32xf32>, vector<32x64xf32>, vector<16x64xf32> -> vector<16x64xf32>
    %c1_236 = arith.constant 1 : index
    %c0_237 = arith.constant 0 : index
    %c0_238 = arith.constant 0 : index
    %545 = vector.load %arg12[%c1_236, %c0_237, %c0_238] : memref<2x1x64xf32, #tpu.memory_space<vmem>>, vector<1x1x64xf32>
    %546 = vector.shape_cast %545 : vector<1x1x64xf32> to vector<1x64xf32>
    %547 = vector.broadcast %546 : vector<1x64xf32> to vector<16x64xf32>
    %548 = arith.addf %544, %547 : vector<16x64xf32>
    %cst_239 = arith.constant 0.000000e+00 : f32
    %549 = vector.broadcast %cst_239 : f32 to vector<16x64xf32>
    %550 = arith.maximumf %548, %549 : vector<16x64xf32>
    %c1_240 = arith.constant 1 : index
    %c0_241 = arith.constant 0 : index
    %c0_242 = arith.constant 0 : index
    %551 = vector.load %arg13[%c1_240, %c0_241, %c0_242] : memref<2x64x32xf32, #tpu.memory_space<vmem>>, vector<1x64x32xf32>
    %552 = vector.shape_cast %551 : vector<1x64x32xf32> to vector<64x32xf32>
    %cst_243 = arith.constant dense<0.000000e+00> : vector<16x32xf32>
    %553 = tpu.matmul %550, %552, %cst_243 {dimension_numbers = #tpu.dot_dimension_numbers<[1], [0], [0], [1], [0, 0, 1, 1], [], []>} : vector<16x64xf32>, vector<64x32xf32>, vector<16x32xf32> -> vector<16x32xf32>
    %c1_244 = arith.constant 1 : index
    %c0_245 = arith.constant 0 : index
    %c0_246 = arith.constant 0 : index
    %554 = vector.load %arg14[%c1_244, %c0_245, %c0_246] : memref<2x1x32xf32, #tpu.memory_space<vmem>>, vector<1x1x32xf32>
    %555 = vector.shape_cast %554 : vector<1x1x32xf32> to vector<1x32xf32>
    %556 = vector.broadcast %555 : vector<1x32xf32> to vector<16x32xf32>
    %557 = arith.addf %553, %556 : vector<16x32xf32>
    %558 = arith.addf %541, %557 : vector<16x32xf32>
    %c1_247 = arith.constant 1 : index
    %c0_248 = arith.constant 0 : index
    %c0_249 = arith.constant 0 : index
    %559 = vector.load %arg15[%c1_247, %c0_248, %c0_249] : memref<2x1x32xf32, #tpu.memory_space<vmem>>, vector<1x1x32xf32>
    %560 = vector.shape_cast %559 : vector<1x1x32xf32> to vector<1x32xf32>
    %c1_250 = arith.constant 1 : index
    %c0_251 = arith.constant 0 : index
    %c0_252 = arith.constant 0 : index
    %561 = vector.load %arg16[%c1_250, %c0_251, %c0_252] : memref<2x1x32xf32, #tpu.memory_space<vmem>>, vector<1x1x32xf32>
    %562 = vector.shape_cast %561 : vector<1x1x32xf32> to vector<1x32xf32>
    %cst_253 = arith.constant dense<0.000000e+00> : vector<16xf32>
    %563 = vector.multi_reduction <add>, %558, %cst_253 [1] : vector<16x32xf32> to vector<16xf32>
    %564 = vector.shape_cast %563 : vector<16xf32> to vector<16x1xf32>
    %cst_254 = arith.constant 3.200000e+01 : f32
    %565 = vector.broadcast %cst_254 : f32 to vector<16x1xf32>
    %566 = arith.divf %564, %565 : vector<16x1xf32>
    %567 = vector.broadcast %566 : vector<16x1xf32> to vector<16x32xf32>
    %568 = arith.subf %558, %567 : vector<16x32xf32>
    %569 = arith.mulf %568, %568 : vector<16x32xf32>
    %cst_255 = arith.constant dense<0.000000e+00> : vector<16xf32>
    %570 = vector.multi_reduction <add>, %569, %cst_255 [1] : vector<16x32xf32> to vector<16xf32>
    %571 = vector.shape_cast %570 : vector<16xf32> to vector<16x1xf32>
    %cst_256 = arith.constant 3.200000e+01 : f32
    %572 = vector.broadcast %cst_256 : f32 to vector<16x1xf32>
    %573 = arith.divf %571, %572 : vector<16x1xf32>
    %574 = vector.broadcast %566 : vector<16x1xf32> to vector<16x32xf32>
    %575 = arith.subf %558, %574 : vector<16x32xf32>
    %cst_257 = arith.constant 9.99999974E-6 : f32
    %576 = vector.broadcast %cst_257 : f32 to vector<16x1xf32>
    %577 = arith.addf %573, %576 : vector<16x1xf32>
    %578 = math.rsqrt %577 : vector<16x1xf32>
    %579 = vector.broadcast %578 : vector<16x1xf32> to vector<16x32xf32>
    %580 = arith.mulf %575, %579 : vector<16x32xf32>
    %581 = vector.broadcast %560 : vector<1x32xf32> to vector<16x32xf32>
    %582 = arith.mulf %580, %581 : vector<16x32xf32>
    %583 = vector.broadcast %562 : vector<1x32xf32> to vector<16x32xf32>
    %584 = arith.addf %582, %583 : vector<16x32xf32>
    %c0_258 = arith.constant 0 : index
    %c0_259 = arith.constant 0 : index
    %c0_260 = arith.constant 0 : index
    %585 = vector.load %arg17[%c0_258, %c0_259, %c0_260] : memref<1x16x32xf32, #tpu.memory_space<vmem>>, vector<1x16x32xf32>
    %586 = vector.shape_cast %585 : vector<1x16x32xf32> to vector<16x32xf32>
    %587 = vector.shape_cast %584 : vector<16x32xf32> to vector<1x16x32xf32>
    tpu.vector_store %arg17[%c0_258, %c0_259, %c0_260], %587 {strides = array<i32>} : memref<1x16x32xf32, #tpu.memory_space<vmem>>, vector<1x16x32xf32>,
    return
  }
  func.func @transform_0(%arg0: i32) -> (i32, i32, i32) {
    %c0_i32 = arith.constant 0 : i32
    %c0_i32_0 = arith.constant 0 : i32
    %c0_i32_1 = arith.constant 0 : i32
    return %arg0, %c0_i32, %c0_i32_0 : i32, i32, i32
  }
  func.func @transform_1(%arg0: i32) -> (i32, i32) {
    %c0_i32 = arith.constant 0 : i32
    %c0_i32_0 = arith.constant 0 : i32
    %c0_i32_1 = arith.constant 0 : i32
    return %c0_i32, %c0_i32_0 : i32, i32
  }
  func.func @transform_2(%arg0: i32) -> (i32, i32) {
    %c0_i32 = arith.constant 0 : i32
    %c0_i32_0 = arith.constant 0 : i32
    %c0_i32_1 = arith.constant 0 : i32
    return %c0_i32, %c0_i32_0 : i32, i32
  }
  func.func @transform_3(%arg0: i32) -> (i32, i32) {
    %c0_i32 = arith.constant 0 : i32
    %c0_i32_0 = arith.constant 0 : i32
    %c0_i32_1 = arith.constant 0 : i32
    return %c0_i32, %c0_i32_0 : i32, i32
  }
  func.func @transform_4(%arg0: i32) -> (i32, i32, i32) {
    %c0_i32 = arith.constant 0 : i32
    %c0_i32_0 = arith.constant 0 : i32
    %c0_i32_1 = arith.constant 0 : i32
    %c0_i32_2 = arith.constant 0 : i32
    return %c0_i32, %c0_i32_0, %c0_i32_1 : i32, i32, i32
  }
  func.func @transform_5(%arg0: i32) -> (i32, i32, i32) {
    %c0_i32 = arith.constant 0 : i32
    %c0_i32_0 = arith.constant 0 : i32
    %c0_i32_1 = arith.constant 0 : i32
    %c0_i32_2 = arith.constant 0 : i32
    return %c0_i32, %c0_i32_0, %c0_i32_1 : i32, i32, i32
  }
  func.func @transform_6(%arg0: i32) -> (i32, i32, i32) {
    %c0_i32 = arith.constant 0 : i32
    %c0_i32_0 = arith.constant 0 : i32
    %c0_i32_1 = arith.constant 0 : i32
    %c0_i32_2 = arith.constant 0 : i32
    return %c0_i32, %c0_i32_0, %c0_i32_1 : i32, i32, i32
  }
  func.func @transform_7(%arg0: i32) -> (i32, i32, i32) {
    %c0_i32 = arith.constant 0 : i32
    %c0_i32_0 = arith.constant 0 : i32
    %c0_i32_1 = arith.constant 0 : i32
    %c0_i32_2 = arith.constant 0 : i32
    return %c0_i32, %c0_i32_0, %c0_i32_1 : i32, i32, i32
  }
  func.func @transform_8(%arg0: i32) -> (i32, i32, i32) {
    %c0_i32 = arith.constant 0 : i32
    %c0_i32_0 = arith.constant 0 : i32
    %c0_i32_1 = arith.constant 0 : i32
    %c0_i32_2 = arith.constant 0 : i32
    return %c0_i32, %c0_i32_0, %c0_i32_1 : i32, i32, i32
  }
  func.func @transform_9(%arg0: i32) -> (i32, i32, i32) {
    %c0_i32 = arith.constant 0 : i32
    %c0_i32_0 = arith.constant 0 : i32
    %c0_i32_1 = arith.constant 0 : i32
    %c0_i32_2 = arith.constant 0 : i32
    return %c0_i32, %c0_i32_0, %c0_i32_1 : i32, i32, i32
  }
  func.func @transform_10(%arg0: i32) -> (i32, i32, i32) {
    %c0_i32 = arith.constant 0 : i32
    %c0_i32_0 = arith.constant 0 : i32
    %c0_i32_1 = arith.constant 0 : i32
    %c0_i32_2 = arith.constant 0 : i32
    return %c0_i32, %c0_i32_0, %c0_i32_1 : i32, i32, i32
  }
  func.func @transform_11(%arg0: i32) -> (i32, i32, i32) {
    %c0_i32 = arith.constant 0 : i32
    %c0_i32_0 = arith.constant 0 : i32
    %c0_i32_1 = arith.constant 0 : i32
    %c0_i32_2 = arith.constant 0 : i32
    return %c0_i32, %c0_i32_0, %c0_i32_1 : i32, i32, i32
  }
  func.func @transform_12(%arg0: i32) -> (i32, i32, i32) {
    %c0_i32 = arith.constant 0 : i32
    %c0_i32_0 = arith.constant 0 : i32
    %c0_i32_1 = arith.constant 0 : i32
    %c0_i32_2 = arith.constant 0 : i32
    return %c0_i32, %c0_i32_0, %c0_i32_1 : i32, i32, i32
  }
  func.func @transform_13(%arg0: i32) -> (i32, i32, i32) {
    %c0_i32 = arith.constant 0 : i32
    %c0_i32_0 = arith.constant 0 : i32
    %c0_i32_1 = arith.constant 0 : i32
    %c0_i32_2 = arith.constant 0 : i32
    return %c0_i32, %c0_i32_0, %c0_i32_1 : i32, i32, i32
  }
  func.func @transform_14(%arg0: i32) -> (i32, i32, i32) {
    %c0_i32 = arith.constant 0 : i32
    %c0_i32_0 = arith.constant 0 : i32
    %c0_i32_1 = arith.constant 0 : i32
    %c0_i32_2 = arith.constant 0 : i32
    return %c0_i32, %c0_i32_0, %c0_i32_1 : i32, i32, i32
  }
  func.func @transform_15(%arg0: i32) -> (i32, i32, i32) {
    %c0_i32 = arith.constant 0 : i32
    %c0_i32_0 = arith.constant 0 : i32
    %c0_i32_1 = arith.constant 0 : i32
    %c0_i32_2 = arith.constant 0 : i32
    return %c0_i32, %c0_i32_0, %c0_i32_1 : i32, i32, i32
  }
  func.func @transform_16(%arg0: i32) -> (i32, i32, i32) {
    %c0_i32 = arith.constant 0 : i32
    %c0_i32_0 = arith.constant 0 : i32
    %c0_i32_1 = arith.constant 0 : i32
    return %arg0, %c0_i32, %c0_i32_0 : i32, i32, i32
  }
}

</mosaic_0001>

<llo_original>
// kernel: tpu_custom_call.1
$region0: #{tpu_custom_call.1}
  #allocation0 [shape = 'u32[]', space=smem, size = 0x4, offset = 0x4, fixed_abs, tag = 'smem constant byte address 0x4 - core index']
  #allocation1 [shape = 'u32[144,128]{1,0:T(1,128)}', space=vmem, size = 0x12000, scoped, tag = 'internal scratch']
  #allocation2 [shape = 'f32[16,32]{1,0:T(8,128)}', space=vmem, size = 0x2000, scoped, tag = 'scratch operand']
  #allocation3 [shape = 'f32[16,96]{1,0:T(8,128)}', space=vmem, size = 0x2000, scoped, tag = 'scratch operand']
  %s0 = inlined_call_operand.hbm [shape: f32[2,8,32], index: 0, kind: input, shape index: {}]
  %s1 = inlined_call_operand.hbm [shape: f32[16,32], index: 1, kind: input, shape index: {}]
  %s2 = inlined_call_operand.vmem [shape: f32[1,32], index: 2, kind: input, shape index: {}]
  %s3 = inlined_call_operand.hbm [shape: f32[1,32], index: 3, kind: input, shape index: {}]
  %s4 = inlined_call_operand.vmem [shape: f32[2,32,96], index: 4, kind: input, shape index: {}]
  %s5 = inlined_call_operand.vmem [shape: f32[2,1,96], index: 5, kind: input, shape index: {}]
  %s6 = inlined_call_operand.vmem [shape: f32[2,32,32], index: 6, kind: input, shape index: {}]
  %s7 = inlined_call_operand.vmem [shape: f32[2,1,32], index: 7, kind: input, shape index: {}]
  %s8 = inlined_call_operand.vmem [shape: f32[2,1,32], index: 8, kind: input, shape index: {}]
  %s9 = inlined_call_operand.vmem [shape: f32[2,1,32], index: 9, kind: input, shape index: {}]
  %s10 = inlined_call_operand.vmem [shape: f32[2,32,64], index: 10, kind: input, shape index: {}]
  %s11 = inlined_call_operand.vmem [shape: f32[2,1,64], index: 11, kind: input, shape index: {}]
  %s12 = inlined_call_operand.vmem [shape: f32[2,64,32], index: 12, kind: input, shape index: {}]
  %s13 = inlined_call_operand.vmem [shape: f32[2,1,32], index: 13, kind: input, shape index: {}]
  %s14 = inlined_call_operand.vmem [shape: f32[2,1,32], index: 14, kind: input, shape index: {}]
  %s15 = inlined_call_operand.vmem [shape: f32[2,1,32], index: 15, kind: input, shape index: {}]
  %s16 = inlined_call_operand.hbm [shape: f32[2,16,32], index: 16, kind: output, shape index: {}]
  %s17 = sld [smem:[#allocation0]]
  $region109: #{tpu_custom_call.1} parent=0
    _
  %s19 = ssub.s32 1, %s17
  %s20 = scalar_select 0, %s19, %s17
  $region1: #{tpu_custom_call.1} parent=0
    #allocation4 [shape = 'u8[8192]{0}', space=vmem, size = 0x2000, scoped, tag = 'input window, operand 0']
    #allocation5 [shape = 's32[2]{0}', space=sflag, size = 0x8, scoped, tag = 'scoped memory for tpu_custom_call.1']
    #allocation6 [shape = 's32[2]{0}', space=sflag, size = 0x8, scoped, tag = 'scoped memory for tpu_custom_call.1']
    #allocation7 [shape = 'u8[8192]{0}', space=vmem, size = 0x2000, scoped, tag = 'input window, operand 1, single buffered']
    #allocation8 [shape = 's32[1]{0}', space=sflag, size = 0x4, scoped, tag = 'scoped memory for tpu_custom_call.1']
    #allocation9 [shape = 'u8[512]{0}', space=vmem, size = 0x400, scoped, tag = 'input window, operand 3, single buffered']
    #allocation10 [shape = 'u8[16384]{0}', space=vmem, size = 0x4000, scoped, tag = 'output window, operand 0']
    %21 = vsyncpa [#allocation5], 0
    %s22 = scalar_lea.sflag [#allocation5], 1
    %23 = vsyncpa %s22, 0
    %24 = vsyncpa [#allocation8], 0
    %25 = vsyncpa [#allocation6], 0
    %s26 = scalar_lea.sflag [#allocation6], 1
    %27 = vsyncpa %s26, 0
    loop: start=0, step=1, limit=4
    $region2: #{tpu_custom_call.1} parent=1 // loop_pre_header
      _
    $region3: #{tpu_custom_call.1} parent=1 // loop_header
      %s29 = sphi 0, %s33
      %p30 = scmp.ge.s32.totalorder %s29, 4
      %s39 = sphi 0, %s41
      %s42 = sphi 0, %s39
      %s43 = sphi 0, %s42
      %s59 = sphi 0, %s43
      %s63 = sphi 0, %s63
      %s65 = sphi 0, %s63
      %s66 = sphi 0, %s65
      %s80 = sphi 0, %s66
      %s84 = sphi 0, %s84
      %s86 = sphi 0, %s84
      %s87 = sphi 0, %s86
      %s101 = sphi 0, %s87
      %s105 = sphi 0, %s105
      %s107 = sphi 0, %s105
      %s108 = sphi 0, %s107
      %s122 = sphi 0, %s108
      %s126 = sphi 0, %s126
      %s128 = sphi 0, %s126
      %s129 = sphi 0, %s128
      %s143 = sphi 0, %s129
      %s147 = sphi 0, %s147
      %s149 = sphi 0, %s147
      %s150 = sphi 0, %s149
      %s164 = sphi 0, %s150
      %s168 = sphi 0, %s168
      %s170 = sphi 0, %s168
      %s171 = sphi 0, %s170
      %s185 = sphi 0, %s171
      %s189 = sphi 0, %s189
      %s191 = sphi 0, %s189
      %s192 = sphi 0, %s191
      %s206 = sphi 0, %s192
      %s210 = sphi 0, %s210
      %s212 = sphi 0, %s210
      %s213 = sphi 0, %s212
      %s227 = sphi 0, %s213
      %s231 = sphi 0, %s231
      %s233 = sphi 0, %s231
      %s234 = sphi 0, %s233
      %s248 = sphi 0, %s234
      %s252 = sphi 0, %s252
      %s254 = sphi 0, %s252
      %s255 = sphi 0, %s254
      %s269 = sphi 0, %s255
      %s273 = sphi 0, %s273
      %s275 = sphi 0, %s273
      %s276 = sphi 0, %s275
      %s290 = sphi 0, %s276
      %s294 = sphi 0, %s294
      %s296 = sphi 0, %s294
      %s297 = sphi 0, %s296
      %s311 = sphi 0, %s297
      %s315 = sphi 0, %s315
      %s317 = sphi 0, %s315
      %s318 = sphi 0, %s317
      %s332 = sphi 0, %s318
      %s336 = sphi 0, %s336
      %s338 = sphi 0, %s336
      %s339 = sphi 0, %s338
      %s353 = sphi 0, %s339
      %s357 = sphi 0, %s357
      %s359 = sphi 0, %s357
      %s360 = sphi 0, %s359
      %s374 = sphi 0, %s360
      %s380 = sphi 0, %s382
      %s383 = sphi 0, %s380
      %s384 = sphi 0, %s383
      %s400 = sphi 0, %s384
    $region4: #{tpu_custom_call.1} parent=1 // loop_header_branch
      %32 = sbr.rel (%p30) target = $region8
    $region5: #{tpu_custom_call.1} parent=1 // loop_body
      %s34 = ssub.s32 %s29, 1
      %s35 = ssub.s32 %s29, 2
      %s36 = sadd.s32 %s29, 1
      %s37 = ssub.s32 %s29, %s36
      %p38 = scmp.eq.s32.totalorder %s37, 0
      %s40 = sadd.s32 %s39, 1
      %s41 = scalar_select %p38, %s39, %s40
      %p44 = pneg %p38
      %p45 = scmp.eq.s32.totalorder %s29, 1
      %p46 = por %p44, %p45
      %p47 = scmp.ne.s32.totalorder %s39, %s42
      %p48 = scmp.eq.s32.totalorder %s29, 0
      %p49 = por %p47, %p48
      %p50 = scmp.ne.s32.totalorder %s39, %s42
      %p51 = scmp.eq.s32.totalorder %s34, 1
      %p52 = por %p50, %p51
      %p53 = scmp.ne.s32.totalorder %s42, %s43
      %p54 = scmp.eq.s32.totalorder %s34, 0
      %p55 = por %p53, %p54
      %p56 = scmp.ne.s32.totalorder %s42, %s43
      %p57 = scmp.eq.s32.totalorder %s35, 1
      %p58 = por %p56, %p57
      %p60 = scmp.ne.s32.totalorder %s43, %s59
      %p61 = scmp.eq.s32.totalorder %s35, 0
      %p62 = por %p60, %p61
      %s64 = sadd.s32 %s63, 1
      %p67 = scmp.eq.s32.totalorder %s29, 1
      %p68 = scmp.ne.s32.totalorder %s63, %s65
      %p69 = scmp.eq.s32.totalorder %s29, 0
      %p70 = por %p68, %p69
      %p71 = scmp.ne.s32.totalorder %s63, %s65
      %p72 = scmp.eq.s32.totalorder %s34, 1
      %p73 = por %p71, %p72
      %p74 = scmp.ne.s32.totalorder %s65, %s66
      %p75 = scmp.eq.s32.totalorder %s34, 0
      %p76 = por %p74, %p75
      %p77 = scmp.ne.s32.totalorder %s65, %s66
      %p78 = scmp.eq.s32.totalorder %s35, 1
      %p79 = por %p77, %p78
      %p81 = scmp.ne.s32.totalorder %s66, %s80
      %p82 = scmp.eq.s32.totalorder %s35, 0
      %p83 = por %p81, %p82
      %s85 = sadd.s32 %s84, 1
      %p88 = scmp.eq.s32.totalorder %s29, 1
      %p89 = scmp.ne.s32.totalorder %s84, %s86
      %p90 = scmp.eq.s32.totalorder %s29, 0
      %p91 = por %p89, %p90
      %p92 = scmp.ne.s32.totalorder %s84, %s86
      %p93 = scmp.eq.s32.totalorder %s34, 1
      %p94 = por %p92, %p93
      %p95 = scmp.ne.s32.totalorder %s86, %s87
      %p96 = scmp.eq.s32.totalorder %s34, 0
      %p97 = por %p95, %p96
      %p98 = scmp.ne.s32.totalorder %s86, %s87
      %p99 = scmp.eq.s32.totalorder %s35, 1
      %p100 = por %p98, %p99
      %p102 = scmp.ne.s32.totalorder %s87, %s101
      %p103 = scmp.eq.s32.totalorder %s35, 0
      %p104 = por %p102, %p103
      %s106 = sadd.s32 %s105, 1
      %p109 = scmp.eq.s32.totalorder %s29, 1
      %p110 = scmp.ne.s32.totalorder %s105, %s107
      %p111 = scmp.eq.s32.totalorder %s29, 0
      %p112 = por %p110, %p111
      %p113 = scmp.ne.s32.totalorder %s105, %s107
      %p114 = scmp.eq.s32.totalorder %s34, 1
      %p115 = por %p113, %p114
      %p116 = scmp.ne.s32.totalorder %s107, %s108
      %p117 = scmp.eq.s32.totalorder %s34, 0
      %p118 = por %p116, %p117
      %p119 = scmp.ne.s32.totalorder %s107, %s108
      %p120 = scmp.eq.s32.totalorder %s35, 1
      %p121 = por %p119, %p120
      %p123 = scmp.ne.s32.totalorder %s108, %s122
      %p124 = scmp.eq.s32.totalorder %s35, 0
      %p125 = por %p123, %p124
      %s127 = sadd.s32 %s126, 1
      %p130 = scmp.eq.s32.totalorder %s29, 1
      %p131 = scmp.ne.s32.totalorder %s126, %s128
      %p132 = scmp.eq.s32.totalorder %s29, 0
      %p133 = por %p131, %p132
      %p134 = scmp.ne.s32.totalorder %s126, %s128
      %p135 = scmp.eq.s32.totalorder %s34, 1
      %p136 = por %p134, %p135
      %p137 = scmp.ne.s32.totalorder %s128, %s129
      %p138 = scmp.eq.s32.totalorder %s34, 0
      %p139 = por %p137, %p138
      %p140 = scmp.ne.s32.totalorder %s128, %s129
      %p141 = scmp.eq.s32.totalorder %s35, 1
      %p142 = por %p140, %p141
      %p144 = scmp.ne.s32.totalorder %s129, %s143
      %p145 = scmp.eq.s32.totalorder %s35, 0
      %p146 = por %p144, %p145
      %s148 = sadd.s32 %s147, 1
      %p151 = scmp.eq.s32.totalorder %s29, 1
      %p152 = scmp.ne.s32.totalorder %s147, %s149
      %p153 = scmp.eq.s32.totalorder %s29, 0
      %p154 = por %p152, %p153
      %p155 = scmp.ne.s32.totalorder %s147, %s149
      %p156 = scmp.eq.s32.totalorder %s34, 1
      %p157 = por %p155, %p156
      %p158 = scmp.ne.s32.totalorder %s149, %s150
      %p159 = scmp.eq.s32.totalorder %s34, 0
      %p160 = por %p158, %p159
      %p161 = scmp.ne.s32.totalorder %s149, %s150
      %p162 = scmp.eq.s32.totalorder %s35, 1
      %p163 = por %p161, %p162
      %p165 = scmp.ne.s32.totalorder %s150, %s164
      %p166 = scmp.eq.s32.totalorder %s35, 0
      %p167 = por %p165, %p166
      %s169 = sadd.s32 %s168, 1
      %p172 = scmp.eq.s32.totalorder %s29, 1
      %p173 = scmp.ne.s32.totalorder %s168, %s170
      %p174 = scmp.eq.s32.totalorder %s29, 0
      %p175 = por %p173, %p174
      %p176 = scmp.ne.s32.totalorder %s168, %s170
      %p177 = scmp.eq.s32.totalorder %s34, 1
      %p178 = por %p176, %p177
      %p179 = scmp.ne.s32.totalorder %s170, %s171
      %p180 = scmp.eq.s32.totalorder %s34, 0
      %p181 = por %p179, %p180
      %p182 = scmp.ne.s32.totalorder %s170, %s171
      %p183 = scmp.eq.s32.totalorder %s35, 1
      %p184 = por %p182, %p183
      %p186 = scmp.ne.s32.totalorder %s171, %s185
      %p187 = scmp.eq.s32.totalorder %s35, 0
      %p188 = por %p186, %p187
      %s190 = sadd.s32 %s189, 1
      %p193 = scmp.eq.s32.totalorder %s29, 1
      %p194 = scmp.ne.s32.totalorder %s189, %s191
      %p195 = scmp.eq.s32.totalorder %s29, 0
      %p196 = por %p194, %p195
      %p197 = scmp.ne.s32.totalorder %s189, %s191
      %p198 = scmp.eq.s32.totalorder %s34, 1
      %p199 = por %p197, %p198
      %p200 = scmp.ne.s32.totalorder %s191, %s192
      %p201 = scmp.eq.s32.totalorder %s34, 0
      %p202 = por %p200, %p201
      %p203 = scmp.ne.s32.totalorder %s191, %s192
      %p204 = scmp.eq.s32.totalorder %s35, 1
      %p205 = por %p203, %p204
      %p207 = scmp.ne.s32.totalorder %s192, %s206
      %p208 = scmp.eq.s32.totalorder %s35, 0
      %p209 = por %p207, %p208
      %s211 = sadd.s32 %s210, 1
      %p214 = scmp.eq.s32.totalorder %s29, 1
      %p215 = scmp.ne.s32.totalorder %s210, %s212
      %p216 = scmp.eq.s32.totalorder %s29, 0
      %p217 = por %p215, %p216
      %p218 = scmp.ne.s32.totalorder %s210, %s212
      %p219 = scmp.eq.s32.totalorder %s34, 1
      %p220 = por %p218, %p219
      %p221 = scmp.ne.s32.totalorder %s212, %s213
      %p222 = scmp.eq.s32.totalorder %s34, 0
      %p223 = por %p221, %p222
      %p224 = scmp.ne.s32.totalorder %s212, %s213
      %p225 = scmp.eq.s32.totalorder %s35, 1
      %p226 = por %p224, %p225
      %p228 = scmp.ne.s32.totalorder %s213, %s227
      %p229 = scmp.eq.s32.totalorder %s35, 0
      %p230 = por %p228, %p229
      %s232 = sadd.s32 %s231, 1
      %p235 = scmp.eq.s32.totalorder %s29, 1
      %p236 = scmp.ne.s32.totalorder %s231, %s233
      %p237 = scmp.eq.s32.totalorder %s29, 0
      %p238 = por %p236, %p237
      %p239 = scmp.ne.s32.totalorder %s231, %s233
      %p240 = scmp.eq.s32.totalorder %s34, 1
      %p241 = por %p239, %p240
      %p242 = scmp.ne.s32.totalorder %s233, %s234
      %p243 = scmp.eq.s32.totalorder %s34, 0
      %p244 = por %p242, %p243
      %p245 = scmp.ne.s32.totalorder %s233, %s234
      %p246 = scmp.eq.s32.totalorder %s35, 1
      %p247 = por %p245, %p246
      %p249 = scmp.ne.s32.totalorder %s234, %s248
      %p250 = scmp.eq.s32.totalorder %s35, 0
      %p251 = por %p249, %p250
      %s253 = sadd.s32 %s252, 1
      %p256 = scmp.eq.s32.totalorder %s29, 1
      %p257 = scmp.ne.s32.totalorder %s252, %s254
      %p258 = scmp.eq.s32.totalorder %s29, 0
      %p259 = por %p257, %p258
      %p260 = scmp.ne.s32.totalorder %s252, %s254
      %p261 = scmp.eq.s32.totalorder %s34, 1
      %p262 = por %p260, %p261
      %p263 = scmp.ne.s32.totalorder %s254, %s255
      %p264 = scmp.eq.s32.totalorder %s34, 0
      %p265 = por %p263, %p264
      %p266 = scmp.ne.s32.totalorder %s254, %s255
      %p267 = scmp.eq.s32.totalorder %s35, 1
      %p268 = por %p266, %p267
      %p270 = scmp.ne.s32.totalorder %s255, %s269
      %p271 = scmp.eq.s32.totalorder %s35, 0
      %p272 = por %p270, %p271
      %s274 = sadd.s32 %s273, 1
      %p277 = scmp.eq.s32.totalorder %s29, 1
      %p278 = scmp.ne.s32.totalorder %s273, %s275
      %p279 = scmp.eq.s32.totalorder %s29, 0
      %p280 = por %p278, %p279
      %p281 = scmp.ne.s32.totalorder %s273, %s275
      %p282 = scmp.eq.s32.totalorder %s34, 1
      %p283 = por %p281, %p282
      %p284 = scmp.ne.s32.totalorder %s275, %s276
      %p285 = scmp.eq.s32.totalorder %s34, 0
      %p286 = por %p284, %p285
      %p287 = scmp.ne.s32.totalorder %s275, %s276
      %p288 = scmp.eq.s32.totalorder %s35, 1
      %p289 = por %p287, %p288
      %p291 = scmp.ne.s32.totalorder %s276, %s290
      %p292 = scmp.eq.s32.totalorder %s35, 0
      %p293 = por %p291, %p292
      %s295 = sadd.s32 %s294, 1
      %p298 = scmp.eq.s32.totalorder %s29, 1
      %p299 = scmp.ne.s32.totalorder %s294, %s296
      %p300 = scmp.eq.s32.totalorder %s29, 0
      %p301 = por %p299, %p300
      %p302 = scmp.ne.s32.totalorder %s294, %s296
      %p303 = scmp.eq.s32.totalorder %s34, 1
      %p304 = por %p302, %p303
      %p305 = scmp.ne.s32.totalorder %s296, %s297
      %p306 = scmp.eq.s32.totalorder %s34, 0
      %p307 = por %p305, %p306
      %p308 = scmp.ne.s32.totalorder %s296, %s297
      %p309 = scmp.eq.s32.totalorder %s35, 1
      %p310 = por %p308, %p309
      %p312 = scmp.ne.s32.totalorder %s297, %s311
      %p313 = scmp.eq.s32.totalorder %s35, 0
      %p314 = por %p312, %p313
      %s316 = sadd.s32 %s315, 1
      %p319 = scmp.eq.s32.totalorder %s29, 1
      %p320 = scmp.ne.s32.totalorder %s315, %s317
      %p321 = scmp.eq.s32.totalorder %s29, 0
      %p322 = por %p320, %p321
      %p323 = scmp.ne.s32.totalorder %s315, %s317
      %p324 = scmp.eq.s32.totalorder %s34, 1
      %p325 = por %p323, %p324
      %p326 = scmp.ne.s32.totalorder %s317, %s318
      %p327 = scmp.eq.s32.totalorder %s34, 0
      %p328 = por %p326, %p327
      %p329 = scmp.ne.s32.totalorder %s317, %s318
      %p330 = scmp.eq.s32.totalorder %s35, 1
      %p331 = por %p329, %p330
      %p333 = scmp.ne.s32.totalorder %s318, %s332
      %p334 = scmp.eq.s32.totalorder %s35, 0
      %p335 = por %p333, %p334
      %s337 = sadd.s32 %s336, 1
      %p340 = scmp.eq.s32.totalorder %s29, 1
      %p341 = scmp.ne.s32.totalorder %s336, %s338
      %p342 = scmp.eq.s32.totalorder %s29, 0
      %p343 = por %p341, %p342
      %p344 = scmp.ne.s32.totalorder %s336, %s338
      %p345 = scmp.eq.s32.totalorder %s34, 1
      %p346 = por %p344, %p345
      %p347 = scmp.ne.s32.totalorder %s338, %s339
      %p348 = scmp.eq.s32.totalorder %s34, 0
      %p349 = por %p347, %p348
      %p350 = scmp.ne.s32.totalorder %s338, %s339
      %p351 = scmp.eq.s32.totalorder %s35, 1
      %p352 = por %p350, %p351
      %p354 = scmp.ne.s32.totalorder %s339, %s353
      %p355 = scmp.eq.s32.totalorder %s35, 0
      %p356 = por %p354, %p355
      %s358 = sadd.s32 %s357, 1
      %p361 = scmp.eq.s32.totalorder %s29, 1
      %p362 = scmp.ne.s32.totalorder %s357, %s359
      %p363 = scmp.eq.s32.totalorder %s29, 0
      %p364 = por %p362, %p363
      %p365 = scmp.ne.s32.totalorder %s357, %s359
      %p366 = scmp.eq.s32.totalorder %s34, 1
      %p367 = por %p365, %p366
      %p368 = scmp.ne.s32.totalorder %s359, %s360
      %p369 = scmp.eq.s32.totalorder %s34, 0
      %p370 = por %p368, %p369
      %p371 = scmp.ne.s32.totalorder %s359, %s360
      %p372 = scmp.eq.s32.totalorder %s35, 1
      %p373 = por %p371, %p372
      %p375 = scmp.ne.s32.totalorder %s360, %s374
      %p376 = scmp.eq.s32.totalorder %s35, 0
      %p377 = por %p375, %p376
      %s378 = ssub.s32 %s29, %s36
      %p379 = scmp.eq.s32.totalorder %s378, 0
      %s381 = sadd.s32 %s380, 1
      %s382 = scalar_select %p379, %s380, %s381
      %p385 = pneg %p379
      %p386 = scmp.eq.s32.totalorder %s29, 1
      %p387 = por %p385, %p386
      %p388 = scmp.ne.s32.totalorder %s380, %s383
      %p389 = scmp.eq.s32.totalorder %s29, 0
      %p390 = por %p388, %p389
      %p391 = scmp.ne.s32.totalorder %s380, %s383
      %p392 = scmp.eq.s32.totalorder %s34, 1
      %p393 = por %p391, %p392
      %p394 = scmp.ne.s32.totalorder %s383, %s384
      %p395 = scmp.eq.s32.totalorder %s34, 0
      %p396 = por %p394, %p395
      %p397 = scmp.ne.s32.totalorder %s383, %s384
      %p398 = scmp.eq.s32.totalorder %s35, 1
      %p399 = por %p397, %p398
      %p401 = scmp.ne.s32.totalorder %s384, %s400
      %p402 = scmp.eq.s32.totalorder %s35, 0
      %p403 = por %p401, %p402
      %p404 = scmp.le.s32.totalorder 1, %s29
      %p405 = scmp.lt.s32.totalorder %s29, 3
      %p406 = pnand %p404, %p405
      %p407 = pneg %p406
      // Predicated region
      $region9: #{tpu_custom_call.1} parent=5 // pred_check
        _
      $region10: #{tpu_custom_call.1} parent=5 // pred_check_branch
        %409 = sbr.rel (%p406) target = $region12
      $region11: #{tpu_custom_call.1} parent=5 // pred_region
        %s410 = ssub.s32 %s29, 1
        // Predicated region
        $region13: #{tpu_custom_call.1} parent=11 // pred_check
          %p411 = pneg %p76
        $region14: #{tpu_custom_call.1} parent=11 // pred_check_branch
          %413 = sbr.rel (%p411) target = $region16
        $region15: #{tpu_custom_call.1} parent=11 // pred_region
          %s415 = ssub.s32 256, 256
          %416 = vsyncadd [#allocation8], %s415
          %s417 = sshll.u32 [#allocation7], 4
          %s418 = int_to_ptr.vmem [resolvable:$true] %s417
          %423 = dma.hbm_to_vmem [thread:$0]  %s1, 256, %s418, [#allocation8], 128, 128, 8
        $region16: #{tpu_custom_call.1} parent=11 // pred_fallthru
          _
        // Predicated region
        $region17: #{tpu_custom_call.1} parent=11 // pred_check
          %p424 = pneg %p97
        $region18: #{tpu_custom_call.1} parent=11 // pred_check_branch
          %426 = sbr.rel (%p424) target = $region20
        $region19: #{tpu_custom_call.1} parent=11 // pred_region
          _
        $region20: #{tpu_custom_call.1} parent=11 // pred_fallthru
          _
        // Predicated region
        $region21: #{tpu_custom_call.1} parent=11 // pred_check
          %p427 = pneg %p118
        $region22: #{tpu_custom_call.1} parent=11 // pred_check_branch
          %429 = sbr.rel (%p427) target = $region24
        $region23: #{tpu_custom_call.1} parent=11 // pred_region
          %s431 = ssub.s32 16, 16
          %432 = vsyncadd [#allocation8], %s431
          %s434 = sshll.u32 [#allocation9], 4
          %s435 = int_to_ptr.vmem [resolvable:$true] %s434
          %437 = dma.hbm_to_vmem [thread:$0]  %s3, 16, %s435, [#allocation8]
        $region24: #{tpu_custom_call.1} parent=11 // pred_fallthru
          _
        // Predicated region
        $region25: #{tpu_custom_call.1} parent=11 // pred_check
          %p438 = pneg %p139
        $region26: #{tpu_custom_call.1} parent=11 // pred_check_branch
          %440 = sbr.rel (%p438) target = $region28
        $region27: #{tpu_custom_call.1} parent=11 // pred_region
          _
        $region28: #{tpu_custom_call.1} parent=11 // pred_fallthru
          _
        // Predicated region
        $region29: #{tpu_custom_call.1} parent=11 // pred_check
          %p441 = pneg %p160
        $region30: #{tpu_custom_call.1} parent=11 // pred_check_branch
          %443 = sbr.rel (%p441) target = $region32
        $region31: #{tpu_custom_call.1} parent=11 // pred_region
          _
        $region32: #{tpu_custom_call.1} parent=11 // pred_fallthru
          _
        // Predicated region
        $region33: #{tpu_custom_call.1} parent=11 // pred_check
          %p444 = pneg %p181
        $region34: #{tpu_custom_call.1} parent=11 // pred_check_branch
          %446 = sbr.rel (%p444) target = $region36
        $region35: #{tpu_custom_call.1} parent=11 // pred_region
          _
        $region36: #{tpu_custom_call.1} parent=11 // pred_fallthru
          _
        // Predicated region
        $region37: #{tpu_custom_call.1} parent=11 // pred_check
          %p447 = pneg %p202
        $region38: #{tpu_custom_call.1} parent=11 // pred_check_branch
          %449 = sbr.rel (%p447) target = $region40
        $region39: #{tpu_custom_call.1} parent=11 // pred_region
          _
        $region40: #{tpu_custom_call.1} parent=11 // pred_fallthru
          _
        // Predicated region
        $region41: #{tpu_custom_call.1} parent=11 // pred_check
          %p450 = pneg %p223
        $region42: #{tpu_custom_call.1} parent=11 // pred_check_branch
          %452 = sbr.rel (%p450) target = $region44
        $region43: #{tpu_custom_call.1} parent=11 // pred_region
          _
        $region44: #{tpu_custom_call.1} parent=11 // pred_fallthru
          _
        // Predicated region
        $region45: #{tpu_custom_call.1} parent=11 // pred_check
          %p453 = pneg %p244
        $region46: #{tpu_custom_call.1} parent=11 // pred_check_branch
          %455 = sbr.rel (%p453) target = $region48
        $region47: #{tpu_custom_call.1} parent=11 // pred_region
          _
        $region48: #{tpu_custom_call.1} parent=11 // pred_fallthru
          _
        // Predicated region
        $region49: #{tpu_custom_call.1} parent=11 // pred_check
          %p456 = pneg %p265
        $region50: #{tpu_custom_call.1} parent=11 // pred_check_branch
          %458 = sbr.rel (%p456) target = $region52
        $region51: #{tpu_custom_call.1} parent=11 // pred_region
          _
        $region52: #{tpu_custom_call.1} parent=11 // pred_fallthru
          _
        // Predicated region
        $region53: #{tpu_custom_call.1} parent=11 // pred_check
          %p459 = pneg %p286
        $region54: #{tpu_custom_call.1} parent=11 // pred_check_branch
          %461 = sbr.rel (%p459) target = $region56
        $region55: #{tpu_custom_call.1} parent=11 // pred_region
          _
        $region56: #{tpu_custom_call.1} parent=11 // pred_fallthru
          _
        // Predicated region
        $region57: #{tpu_custom_call.1} parent=11 // pred_check
          %p462 = pneg %p307
        $region58: #{tpu_custom_call.1} parent=11 // pred_check_branch
          %464 = sbr.rel (%p462) target = $region60
        $region59: #{tpu_custom_call.1} parent=11 // pred_region
          _
        $region60: #{tpu_custom_call.1} parent=11 // pred_fallthru
          _
        // Predicated region
        $region61: #{tpu_custom_call.1} parent=11 // pred_check
          %p465 = pneg %p328
        $region62: #{tpu_custom_call.1} parent=11 // pred_check_branch
          %467 = sbr.rel (%p465) target = $region64
        $region63: #{tpu_custom_call.1} parent=11 // pred_region
          _
        $region64: #{tpu_custom_call.1} parent=11 // pred_fallthru
          _
        // Predicated region
        $region65: #{tpu_custom_call.1} parent=11 // pred_check
          %p468 = pneg %p349
        $region66: #{tpu_custom_call.1} parent=11 // pred_check_branch
          %470 = sbr.rel (%p468) target = $region68
        $region67: #{tpu_custom_call.1} parent=11 // pred_region
          _
        $region68: #{tpu_custom_call.1} parent=11 // pred_fallthru
          _
        // Predicated region
        $region69: #{tpu_custom_call.1} parent=11 // pred_check
          %p471 = pneg %p370
        $region70: #{tpu_custom_call.1} parent=11 // pred_check_branch
          %473 = sbr.rel (%p471) target = $region72
        $region71: #{tpu_custom_call.1} parent=11 // pred_region
          _
        $region72: #{tpu_custom_call.1} parent=11 // pred_fallthru
          _
      $region12: #{tpu_custom_call.1} parent=5 // pred_fallthru
        _
      %p474 = scmp.lt.s32.totalorder %s29, 2
      // Predicated region
      $region73: #{tpu_custom_call.1} parent=5 // pred_check
        %p475 = pneg %p474
      $region74: #{tpu_custom_call.1} parent=5 // pred_check_branch
        %477 = sbr.rel (%p475) target = $region76
      $region75: #{tpu_custom_call.1} parent=5 // pred_region
        // Predicated region
        $region77: #{tpu_custom_call.1} parent=75 // pred_check
          %p478 = pneg %p49
        $region78: #{tpu_custom_call.1} parent=75 // pred_check_branch
          %480 = sbr.rel (%p478) target = $region80
        $region79: #{tpu_custom_call.1} parent=75 // pred_region
          %s481 = sand.u32 %s39, 1
          %s482 = scalar_lea.sflag [#allocation5], %s481
          %s483 = sand.u32 %s39, 1
          %s484 = smul.addr %s483, 8
          %s485 = scalar_lea.vmem [#allocation4], %s484
          %s487 = ssub.s32 128, 128
          %488 = vsyncadd %s482, %s487
          %s489 = smul.addr %s29, 128
          %s490 = scalar_lea.hbm %s0, %s489
          %s492 = sshll.u32 %s485, 4
          %s493 = int_to_ptr.vmem [resolvable:$true] %s492
          %495 = dma.hbm_to_vmem [thread:$0]  %s490, 128, %s493, %s482
        $region80: #{tpu_custom_call.1} parent=75 // pred_fallthru
          _
      $region76: #{tpu_custom_call.1} parent=5 // pred_fallthru
        _
      %p496 = scmp.le.s32.totalorder 1, %s29
      %p497 = scmp.lt.s32.totalorder %s29, 3
      %p498 = pnand %p496, %p497
      %p499 = pneg %p498
      // Predicated region
      $region81: #{tpu_custom_call.1} parent=5 // pred_check
        _
      $region82: #{tpu_custom_call.1} parent=5 // pred_check_branch
        %501 = sbr.rel (%p498) target = $region84
      $region83: #{tpu_custom_call.1} parent=5 // pred_region
        %s502 = ssub.s32 %s29, 1
        %s503 = sand.u32 %s42, 1
        %s504 = scalar_lea.sflag [#allocation5], %s503
        %s505 = sand.u32 %s42, 1
        %s506 = smul.addr %s505, 8
        %s507 = scalar_lea.vmem [#allocation4], %s506
        // Predicated region
        $region85: #{tpu_custom_call.1} parent=83 // pred_check
          %p508 = pneg %p55
        $region86: #{tpu_custom_call.1} parent=83 // pred_check_branch
          %510 = sbr.rel (%p508) target = $region88
        $region87: #{tpu_custom_call.1} parent=83 // pred_region
          %511 = dma.done %s504, 128
        $region88: #{tpu_custom_call.1} parent=83 // pred_fallthru
          _
        // Predicated region
        $region89: #{tpu_custom_call.1} parent=83 // pred_check
          %p512 = pneg %p76
        $region90: #{tpu_custom_call.1} parent=83 // pred_check_branch
          %514 = sbr.rel (%p512) target = $region92
        $region91: #{tpu_custom_call.1} parent=83 // pred_region
          %515 = dma.done [#allocation8], 256
        $region92: #{tpu_custom_call.1} parent=83 // pred_fallthru
          _
        // Predicated region
        $region93: #{tpu_custom_call.1} parent=83 // pred_check
          %p516 = pneg %p118
        $region94: #{tpu_custom_call.1} parent=83 // pred_check_branch
          %518 = sbr.rel (%p516) target = $region96
        $region95: #{tpu_custom_call.1} parent=83 // pred_region
          %519 = dma.done [#allocation8], 16
        $region96: #{tpu_custom_call.1} parent=83 // pred_fallthru
          _
        %s520 = sand.u32 %s42, 1
        %s521 = scalar_lea.sflag [#allocation5], %s520
        %s522 = sand.u32 %s42, 1
        %s523 = smul.addr %s522, 8
        %s524 = scalar_lea.vmem [#allocation4], %s523
        %p525 = pneg %p55
        %p526 = pneg %p52
        %p527 = pneg %p76
        %p528 = pneg %p73
        %p529 = pneg %p97
        %p530 = pneg %p94
        %p531 = pneg %p118
        %p532 = pneg %p115
        %p533 = pneg %p139
        %p534 = pneg %p136
        %p535 = pneg %p160
        %p536 = pneg %p157
        %p537 = pneg %p181
        %p538 = pneg %p178
        %p539 = pneg %p202
        %p540 = pneg %p199
        %p541 = pneg %p223
        %p542 = pneg %p220
        %p543 = pneg %p244
        %p544 = pneg %p241
        %p545 = pneg %p265
        %p546 = pneg %p262
        %p547 = pneg %p286
        %p548 = pneg %p283
        %p549 = pneg %p307
        %p550 = pneg %p304
        %p551 = pneg %p328
        %p552 = pneg %p325
        %p553 = pneg %p349
        %p554 = pneg %p346
        %p555 = pneg %p370
        %p556 = pneg %p367
        %p557 = pneg %p396
        %p558 = pneg %p393
        %s559 = sand.u32 %s383, 1
        %s560 = scalar_lea.sflag [#allocation6], %s559
        %s561 = sand.u32 %s383, 1
        %s562 = smul.addr %s561, 16
        %s563 = scalar_lea.vmem [#allocation10], %s562
        %v564 = vld [vmem:[#allocation7] sm:$0xff]
        %v565 = vld [vmem:[#allocation7 + $0x8] sm:$0xff]
        %vm566 = vcmask 261120
        %567 = vst.msk [vmem:[#allocation2] sm:$0xff] %vm566, %v564
        %568 = vst.msk [vmem:[#allocation2 + $0x8] sm:$0xff] %vm566, %v565
        %v569 = vld [vmem:[#allocation2 + $0x1] sm:$0xff]
        %v570 = vld [vmem:[%s507] sm:$0xff]
        %v571 = vadd.f32 %v569, %v570
        %572 = vst.msk [vmem:[#allocation2 + $0x1] sm:$0xff] %vm566, %v571
        %v573 = vld [vmem:[#allocation2] sm:$0xff]
        %v574 = vld [vmem:[#allocation2 + $0x8] sm:$0xff]
        %v575 = vld [vmem:[%s2] sm:$0x1]
        %v576 = vld [vmem:[#allocation9] sm:$0x1]
        %v577 = vsel %vm566, %v573, 0.0
        %578 = vadd.xlane.f32.xlu0 %v577
        %v579 = vpop.xlane.xlu0 %578
        %v580 = vsel %vm566, %v574, 0.0
        %581 = vadd.xlane.f32.xlu0 %v580
        %v582 = vpop.xlane.xlu0 %581
        %v583 = vrcp.pop 32.0
        %v584 = vmul.f32 %v579, %v583
        %v585 = vmul.f32 %v582, %v583
        %v586 = vsub.f32 %v573, %v584
        %v587 = vsub.f32 %v574, %v585
        %v588 = vmul.f32 %v586, %v586
        %v589 = vmul.f32 %v587, %v587
        %v590 = vsel %vm566, %v588, 0.0
        %591 = vadd.xlane.f32.xlu0 %v590
        %v592 = vpop.xlane.xlu0 %591
        %v593 = vsel %vm566, %v589, 0.0
        %594 = vadd.xlane.f32.xlu0 %v593
        %v595 = vpop.xlane.xlu0 %594
        %v596 = vmul.f32 %v592, %v583
        %v597 = vmul.f32 %v595, %v583
        %v598 = vadd.f32 %v596, 1e-08
        %v599 = vadd.f32 %v597, 1e-08
        %v600 = vrsqrt.pop %v598
        %v601 = vrsqrt.pop %v599
        %v602 = vmul.f32 %v586, %v600
        %v603 = vmul.f32 %v587, %v601
        %v605 = vlaneseq
        %v606 = vshrl.u32 %v605, 7
        %v607 = vsub.s32 0, %v606
        %v608 = vrot.slane %v575, %v607
        %v610 = vmul.f32 %v602, %v608
        %v611 = vmul.f32 %v603, %v608
        %v613 = vlaneseq
        %v614 = vshrl.u32 %v613, 7
        %v615 = vsub.s32 0, %v614
        %v616 = vrot.slane %v576, %v615
        %v618 = vadd.f32 %v610, %v616
        %v619 = vadd.f32 %v611, %v616
        %v620 = vlaneseq
        %v621 = vand.u32 %v620, 127
        %vm622 = vcmp.lt.s32.totalorder %v621, 9
        %v623 = vsel %vm622, 0.0, -1e+30
        %v624 = vld [vmem:[%s4] sm:$0xff]
        %v625 = vld [vmem:[%s4 + $0x8] sm:$0xff]
        %v626 = vld [vmem:[%s4 + $0x10] sm:$0xff]
        %v627 = vld [vmem:[%s4 + $0x18] sm:$0xff]
        %v628 = vld [vmem:[%s5] sm:$0x1]
        %v630 = vlaneseq
        %v631 = vshrl.u32 %v630, 7
        %v632 = vsub.s32 0, %v631
        %v633 = vrot.slane %v628, %v632
        %v636 = vsel %vm566, %v618, 0
        %v639 = vsel %vm566, %v619, 0
        %641 = vmatprep.subr.mxu0 0.0
        %642 = vmatpush1.msra.mxu0 %v624
        %643 = vmatprep.subr.mxu0 0.0
        %644 = vmatpush1.msra.mxu0 %v625
        %645 = vmatprep.subr.mxu0 0.0
        %646 = vmatpush1.msra.mxu0 %v626
        %647 = vmatprep.subr.mxu0 0.0
        %648 = vmatpush1.msra.mxu0 %v627
        %649 = vmatprep.subr.mxu0 0.0
        %650 = vmatpush1.msra.mxu0 0.0
        %651 = vmatprep.subr.mxu0 0.0
        %652 = vmatpush1.msra.mxu0 0.0
        %653 = vmatprep.subr.mxu0 0.0
        %654 = vmatpush1.msra.mxu0 0.0
        %655 = vmatprep.subr.mxu0 0.0
        %656 = vmatpush1.msra.mxu0 0.0
        %657 = vmatprep.subr.mxu0 0.0
        %658 = vmatpush1.msra.mxu0 0.0
        %659 = vmatprep.subr.mxu0 0.0
        %660 = vmatpush1.msra.mxu0 0.0
        %661 = vmatprep.subr.mxu0 0.0
        %662 = vmatpush1.msra.mxu0 0.0
        %663 = vmatprep.subr.mxu0 0.0
        %664 = vmatpush1.msra.mxu0 0.0
        %665 = vmatprep.subr.mxu0 0.0
        %666 = vmatpush1.msra.mxu0 0.0
        %667 = vmatprep.subr.mxu0 0.0
        %668 = vmatpush1.msra.mxu0 0.0
        %669 = vmatprep.subr.mxu0 0.0
        %670 = vmatpush1.msra.mxu0 0.0
        %671 = vmatprep.subr.mxu0 0.0
        %672 = vmatpush1.msra.mxu0 0.0
        %673 = vmatprep.subr.mxu0 0.0
        %674 = vmatpush1.msra.mxu0 0.0
        %675 = vmatprep.subr.mxu0 0.0
        %676 = vmatpush1.msra.mxu0 0.0
        %677 = vmatprep.subr.mxu0 0.0
        %678 = vmatpush1.msra.mxu0 0.0
        %679 = vmatprep.subr.mxu0 0.0
        %680 = vmatpush1.msra.mxu0 0.0
        %681 = vmatprep.subr.mxu0 0.0
        %682 = vmatpush1.msra.mxu0 0.0
        %683 = vmatprep.subr.mxu0 0.0
        %684 = vmatpush1.msra.mxu0 0.0
        %685 = vmatprep.subr.mxu0 0.0
        %686 = vmatpush1.msra.mxu0 0.0
        %687 = vmatprep.subr.mxu0 0.0
        %688 = vmatpush1.msra.mxu0 0.0
        %689 = vmatprep.subr.mxu0 0.0
        %690 = vmatpush1.msra.mxu0 0.0
        %691 = vmatprep.subr.mxu0 0.0
        %692 = vmatpush1.msra.mxu0 0.0
        %693 = vmatprep.subr.mxu0 0.0
        %694 = vmatpush1.msra.mxu0 0.0
        %695 = vmatprep.subr.mxu0 0.0
        %696 = vmatpush1.msra.mxu0 0.0
        %697 = vmatprep.subr.mxu0 0.0
        %698 = vmatpush1.msra.mxu0 0.0
        %699 = vmatprep.subr.mxu0 0.0
        %700 = vmatpush1.msra.mxu0 0.0
        %701 = vmatprep.subr.mxu0 0.0
        %702 = vmatpush1.msra.mxu0 0.0
        %703 = vmatprep.subr.mxu0 0.0
        %704 = vmatpush1.msra.mxu0 0.0
        %705 = vmatprep.mubr.f32.mxu0 0.0
        %706 = vmatmul.mubr.f32.gmra.mrb[0].mxu0 %v636
        %v707 = vpop.f32.mrb[0].mxu0
        %v708 = vadd.f32 %v633, %v707
        %v709 = vpop.f32.mrb[0].mxu0
        %710 = vmatprep.mubr.f32.mxu0 0.0
        %711 = vmatmul.mubr.f32.gmra.mrb[0].mxu0 %v639
        %v712 = vpop.f32.mrb[0].mxu0
        %v713 = vadd.f32 %v633, %v712
        %v714 = vpop.f32.mrb[0].mxu0
        %715 = vdwg.mxu0
        %vm716 = vcmask 785408
        %717 = vst.msk [vmem:[#allocation3] sm:$0xff] %vm716, %v708
        %718 = vst.msk [vmem:[#allocation3 + $0x8] sm:$0xff] %vm716, %v713
        %v719 = vld [vmem:[#allocation3] sm:$0xff]
        %v720 = vld [vmem:[#allocation3 + $0x8] sm:$0xff]
        %vm721 = vcmp.ge.s32.totalorder %v621, 0
        %vm722 = vcmp.lt.s32.totalorder %v621, 4
        %vm723 = vmand %vm721, %vm722
        %726 = vrot.lane.b32.xlu0 %v719, 96
        %v727 = vpop.permute.xlu0 %726
        %728 = vrot.lane.b32.xlu0 %v720, 96
        %v729 = vpop.permute.xlu0 %728
        %v732 = vsel %vm723, %v727, 0.0
        %v733 = vsel %vm723, %v729, 0.0
        %734 = vrot.lane.b32.xlu0 %v719, 64
        %v735 = vpop.permute.xlu0 %734
        %736 = vrot.lane.b32.xlu0 %v720, 64
        %v737 = vpop.permute.xlu0 %736
        %v740 = vsel %vm723, %v735, 0.0
        %v741 = vsel %vm723, %v737, 0.0
        %v742 = vsel %vm566, %v719, 0
        %v744 = vsel %vm566, %v720, 0
        %v747 = vsel %vm566, %v732, 0
        %v750 = vsel %vm566, %v733, 0
        %752 = vmatprep.subr.mxu0 0.0
        %753 = vmatpush1.xpose.msra.mxu0 %v747
        %754 = vmatprep.subr.mxu0 0.0
        %755 = vmatpush1.xpose.msra.mxu0 %v750
        %756 = vmatprep.subr.mxu0 0.0
        %757 = vmatpush1.xpose.msra.mxu0 0.0
        %758 = vmatprep.subr.mxu0 0.0
        %759 = vmatpush1.xpose.msra.mxu0 0.0
        %760 = vmatprep.subr.mxu0 0.0
        %761 = vmatpush1.xpose.msra.mxu0 0.0
        %762 = vmatprep.subr.mxu0 0.0
        %763 = vmatpush1.xpose.msra.mxu0 0.0
        %764 = vmatprep.subr.mxu0 0.0
        %765 = vmatpush1.xpose.msra.mxu0 0.0
        %766 = vmatprep.subr.mxu0 0.0
        %767 = vmatpush1.xpose.msra.mxu0 0.0
        %768 = vmatprep.subr.mxu0 0.0
        %769 = vmatpush1.xpose.msra.mxu0 0.0
        %770 = vmatprep.subr.mxu0 0.0
        %771 = vmatpush1.xpose.msra.mxu0 0.0
        %772 = vmatprep.subr.mxu0 0.0
        %773 = vmatpush1.xpose.msra.mxu0 0.0
        %774 = vmatprep.subr.mxu0 0.0
        %775 = vmatpush1.xpose.msra.mxu0 0.0
        %776 = vmatprep.subr.mxu0 0.0
        %777 = vmatpush1.xpose.msra.mxu0 0.0
        %778 = vmatprep.subr.mxu0 0.0
        %779 = vmatpush1.xpose.msra.mxu0 0.0
        %780 = vmatprep.subr.mxu0 0.0
        %781 = vmatpush1.xpose.msra.mxu0 0.0
        %782 = vmatprep.subr.mxu0 0.0
        %783 = vmatpush1.xpose.msra.mxu0 0.0
        %784 = vmatprep.subr.mxu0 0.0
        %785 = vmatpush1.xpose.msra.mxu0 0.0
        %786 = vmatprep.subr.mxu0 0.0
        %787 = vmatpush1.xpose.msra.mxu0 0.0
        %788 = vmatprep.subr.mxu0 0.0
        %789 = vmatpush1.xpose.msra.mxu0 0.0
        %790 = vmatprep.subr.mxu0 0.0
        %791 = vmatpush1.xpose.msra.mxu0 0.0
        %792 = vmatprep.subr.mxu0 0.0
        %793 = vmatpush1.xpose.msra.mxu0 0.0
        %794 = vmatprep.subr.mxu0 0.0
        %795 = vmatpush1.xpose.msra.mxu0 0.0
        %796 = vmatprep.subr.mxu0 0.0
        %797 = vmatpush1.xpose.msra.mxu0 0.0
        %798 = vmatprep.subr.mxu0 0.0
        %799 = vmatpush1.xpose.msra.mxu0 0.0
        %800 = vmatprep.subr.mxu0 0.0
        %801 = vmatpush1.xpose.msra.mxu0 0.0
        %802 = vmatprep.subr.mxu0 0.0
        %803 = vmatpush1.xpose.msra.mxu0 0.0
        %804 = vmatprep.subr.mxu0 0.0
        %805 = vmatpush1.xpose.msra.mxu0 0.0
        %806 = vmatprep.subr.mxu0 0.0
        %807 = vmatpush1.xpose.msra.mxu0 0.0
        %808 = vmatprep.subr.mxu0 0.0
        %809 = vmatpush1.xpose.msra.mxu0 0.0
        %810 = vmatprep.subr.mxu0 0.0
        %811 = vmatpush1.xpose.msra.mxu0 0.0
        %812 = vmatprep.subr.mxu0 0.0
        %813 = vmatpush1.xpose.msra.mxu0 0.0
        %814 = vmatprep.subr.mxu0 0.0
        %815 = vmatpush1.xpose.msra.mxu0 0.0
        %816 = vmatprep.mubr.f32.mxu0 0.0
        %817 = vmatmul.mubr.f32.gmra.mrb[0].mxu0 %v742
        %v818 = vpop.f32.mrb[0].mxu0
        %v819 = vadd.f32 %v623, %v818
        %v820 = vpop.f32.mrb[0].mxu0
        %821 = vmatprep.mubr.f32.mxu0 0.0
        %822 = vmatmul.mubr.f32.gmra.mrb[0].mxu0 %v744
        %v823 = vpop.f32.mrb[0].mxu0
        %v824 = vadd.f32 %v623, %v823
        %v825 = vpop.f32.mrb[0].mxu0
        %826 = vdwg.mxu0
        %vm827 = vcmask 130048
        %v828 = vsel %vm827, %v819, -inf
        %829 = vmax.xlane.f32.xlu0 %v828
        %v830 = vpop.xlane.xlu0 %829
        %v831 = vsel %vm827, %v824, -inf
        %832 = vmax.xlane.f32.xlu0 %v831
        %v833 = vpop.xlane.xlu0 %832
        %v834 = vsub.f32 %v819, %v830
        %v835 = vsub.f32 %v824, %v833
        %v836 = vmul.f32 %v834, 1.442695
        %v837 = vpow.pop %v836
        %v838 = vmul.f32 %v835, 1.442695
        %v839 = vpow.pop %v838
        %v840 = vsel %vm827, %v837, 0.0
        %841 = vadd.xlane.f32.xlu0 %v840
        %v842 = vpop.xlane.xlu0 %841
        %v843 = vsel %vm827, %v839, 0.0
        %844 = vadd.xlane.f32.xlu0 %v843
        %v845 = vpop.xlane.xlu0 %844
        %v846 = vrcp.pop %v842
        %v847 = vrcp.pop %v845
        %v848 = vmul.f32 %v837, %v846
        %v849 = vmul.f32 %v839, %v847
        %vm850 = vcmp.ge.s32.totalorder %v621, 4
        %vm851 = vcmp.lt.s32.totalorder %v621, 8
        %vm852 = vmand %vm850, %vm851
        %v853 = vsel %vm852, %v727, 0.0
        %v854 = vsel %vm852, %v729, 0.0
        %v855 = vsel %vm852, %v735, 0.0
        %v856 = vsel %vm852, %v737, 0.0
        %v858 = vsel %vm566, %v853, 0
        %v861 = vsel %vm566, %v854, 0
        %863 = vmatprep.subr.mxu0 0.0
        %864 = vmatpush1.xpose.msra.mxu0 %v858
        %865 = vmatprep.subr.mxu0 0.0
        %866 = vmatpush1.xpose.msra.mxu0 %v861
        %867 = vmatprep.subr.mxu0 0.0
        %868 = vmatpush1.xpose.msra.mxu0 0.0
        %869 = vmatprep.subr.mxu0 0.0
        %870 = vmatpush1.xpose.msra.mxu0 0.0
        %871 = vmatprep.subr.mxu0 0.0
        %872 = vmatpush1.xpose.msra.mxu0 0.0
        %873 = vmatprep.subr.mxu0 0.0
        %874 = vmatpush1.xpose.msra.mxu0 0.0
        %875 = vmatprep.subr.mxu0 0.0
        %876 = vmatpush1.xpose.msra.mxu0 0.0
        %877 = vmatprep.subr.mxu0 0.0
        %878 = vmatpush1.xpose.msra.mxu0 0.0
        %879 = vmatprep.subr.mxu0 0.0
        %880 = vmatpush1.xpose.msra.mxu0 0.0
        %881 = vmatprep.subr.mxu0 0.0
        %882 = vmatpush1.xpose.msra.mxu0 0.0
        %883 = vmatprep.subr.mxu0 0.0
        %884 = vmatpush1.xpose.msra.mxu0 0.0
        %885 = vmatprep.subr.mxu0 0.0
        %886 = vmatpush1.xpose.msra.mxu0 0.0
        %887 = vmatprep.subr.mxu0 0.0
        %888 = vmatpush1.xpose.msra.mxu0 0.0
        %889 = vmatprep.subr.mxu0 0.0
        %890 = vmatpush1.xpose.msra.mxu0 0.0
        %891 = vmatprep.subr.mxu0 0.0
        %892 = vmatpush1.xpose.msra.mxu0 0.0
        %893 = vmatprep.subr.mxu0 0.0
        %894 = vmatpush1.xpose.msra.mxu0 0.0
        %895 = vmatprep.subr.mxu0 0.0
        %896 = vmatpush1.xpose.msra.mxu0 0.0
        %897 = vmatprep.subr.mxu0 0.0
        %898 = vmatpush1.xpose.msra.mxu0 0.0
        %899 = vmatprep.subr.mxu0 0.0
        %900 = vmatpush1.xpose.msra.mxu0 0.0
        %901 = vmatprep.subr.mxu0 0.0
        %902 = vmatpush1.xpose.msra.mxu0 0.0
        %903 = vmatprep.subr.mxu0 0.0
        %904 = vmatpush1.xpose.msra.mxu0 0.0
        %905 = vmatprep.subr.mxu0 0.0
        %906 = vmatpush1.xpose.msra.mxu0 0.0
        %907 = vmatprep.subr.mxu0 0.0
        %908 = vmatpush1.xpose.msra.mxu0 0.0
        %909 = vmatprep.subr.mxu0 0.0
        %910 = vmatpush1.xpose.msra.mxu0 0.0
        %911 = vmatprep.subr.mxu0 0.0
        %912 = vmatpush1.xpose.msra.mxu0 0.0
        %913 = vmatprep.subr.mxu0 0.0
        %914 = vmatpush1.xpose.msra.mxu0 0.0
        %915 = vmatprep.subr.mxu0 0.0
        %916 = vmatpush1.xpose.msra.mxu0 0.0
        %917 = vmatprep.subr.mxu0 0.0
        %918 = vmatpush1.xpose.msra.mxu0 0.0
        %919 = vmatprep.subr.mxu0 0.0
        %920 = vmatpush1.xpose.msra.mxu0 0.0
        %921 = vmatprep.subr.mxu0 0.0
        %922 = vmatpush1.xpose.msra.mxu0 0.0
        %923 = vmatprep.subr.mxu0 0.0
        %924 = vmatpush1.xpose.msra.mxu0 0.0
        %925 = vmatprep.subr.mxu0 0.0
        %926 = vmatpush1.xpose.msra.mxu0 0.0
        %927 = vmatprep.mubr.f32.mxu0 0.0
        %928 = vmatmul.mubr.f32.gmra.mrb[0].mxu0 %v742
        %v929 = vpop.f32.mrb[0].mxu0
        %v930 = vadd.f32 %v623, %v929
        %v931 = vpop.f32.mrb[0].mxu0
        %932 = vmatprep.mubr.f32.mxu0 0.0
        %933 = vmatmul.mubr.f32.gmra.mrb[0].mxu0 %v744
        %v934 = vpop.f32.mrb[0].mxu0
        %v935 = vadd.f32 %v623, %v934
        %v936 = vpop.f32.mrb[0].mxu0
        %937 = vdwg.mxu0
        %v938 = vsel %vm827, %v930, -inf
        %939 = vmax.xlane.f32.xlu0 %v938
        %v940 = vpop.xlane.xlu0 %939
        %v941 = vsel %vm827, %v935, -inf
        %942 = vmax.xlane.f32.xlu0 %v941
        %v943 = vpop.xlane.xlu0 %942
        %v944 = vsub.f32 %v930, %v940
        %v945 = vsub.f32 %v935, %v943
        %v946 = vmul.f32 %v944, 1.442695
        %v947 = vpow.pop %v946
        %v948 = vmul.f32 %v945, 1.442695
        %v949 = vpow.pop %v948
        %v950 = vsel %vm827, %v947, 0.0
        %951 = vadd.xlane.f32.xlu0 %v950
        %v952 = vpop.xlane.xlu0 %951
        %v953 = vsel %vm827, %v949, 0.0
        %954 = vadd.xlane.f32.xlu0 %v953
        %v955 = vpop.xlane.xlu0 %954
        %v956 = vrcp.pop %v952
        %v957 = vrcp.pop %v955
        %v958 = vmul.f32 %v947, %v956
        %v959 = vmul.f32 %v949, %v957
        %v961 = vsel %vm827, %v958, 0
        %v964 = vsel %vm827, %v959, 0
        %966 = vmatprep.subr.mxu0 0.0
        %967 = vmatpush1.msra.mxu0 %v855
        %968 = vmatprep.subr.mxu0 0.0
        %969 = vmatpush1.msra.mxu0 %v856
        %970 = vmatprep.subr.mxu0 0.0
        %971 = vmatpush1.msra.mxu0 0.0
        %972 = vmatprep.subr.mxu0 0.0
        %973 = vmatpush1.msra.mxu0 0.0
        %974 = vmatprep.subr.mxu0 0.0
        %975 = vmatpush1.msra.mxu0 0.0
        %976 = vmatprep.subr.mxu0 0.0
        %977 = vmatpush1.msra.mxu0 0.0
        %978 = vmatprep.subr.mxu0 0.0
        %979 = vmatpush1.msra.mxu0 0.0
        %980 = vmatprep.subr.mxu0 0.0
        %981 = vmatpush1.msra.mxu0 0.0
        %982 = vmatprep.subr.mxu0 0.0
        %983 = vmatpush1.msra.mxu0 0.0
        %984 = vmatprep.subr.mxu0 0.0
        %985 = vmatpush1.msra.mxu0 0.0
        %986 = vmatprep.subr.mxu0 0.0
        %987 = vmatpush1.msra.mxu0 0.0
        %988 = vmatprep.subr.mxu0 0.0
        %989 = vmatpush1.msra.mxu0 0.0
        %990 = vmatprep.subr.mxu0 0.0
        %991 = vmatpush1.msra.mxu0 0.0
        %992 = vmatprep.subr.mxu0 0.0
        %993 = vmatpush1.msra.mxu0 0.0
        %994 = vmatprep.subr.mxu0 0.0
        %995 = vmatpush1.msra.mxu0 0.0
        %996 = vmatprep.subr.mxu0 0.0
        %997 = vmatpush1.msra.mxu0 0.0
        %998 = vmatprep.subr.mxu0 0.0
        %999 = vmatpush1.msra.mxu0 0.0
        %1000 = vmatprep.subr.mxu0 0.0
        %1001 = vmatpush1.msra.mxu0 0.0
        %1002 = vmatprep.subr.mxu0 0.0
        %1003 = vmatpush1.msra.mxu0 0.0
        %1004 = vmatprep.subr.mxu0 0.0
        %1005 = vmatpush1.msra.mxu0 0.0
        %1006 = vmatprep.subr.mxu0 0.0
        %1007 = vmatpush1.msra.mxu0 0.0
        %1008 = vmatprep.subr.mxu0 0.0
        %1009 = vmatpush1.msra.mxu0 0.0
        %1010 = vmatprep.subr.mxu0 0.0
        %1011 = vmatpush1.msra.mxu0 0.0
        %1012 = vmatprep.subr.mxu0 0.0
        %1013 = vmatpush1.msra.mxu0 0.0
        %1014 = vmatprep.subr.mxu0 0.0
        %1015 = vmatpush1.msra.mxu0 0.0
        %1016 = vmatprep.subr.mxu0 0.0
        %1017 = vmatpush1.msra.mxu0 0.0
        %1018 = vmatprep.subr.mxu0 0.0
        %1019 = vmatpush1.msra.mxu0 0.0
        %1020 = vmatprep.subr.mxu0 0.0
        %1021 = vmatpush1.msra.mxu0 0.0
        %1022 = vmatprep.subr.mxu0 0.0
        %1023 = vmatpush1.msra.mxu0 0.0
        %1024 = vmatprep.subr.mxu0 0.0
        %1025 = vmatpush1.msra.mxu0 0.0
        %1026 = vmatprep.subr.mxu0 0.0
        %1027 = vmatpush1.msra.mxu0 0.0
        %1028 = vmatprep.subr.mxu0 0.0
        %1029 = vmatpush1.msra.mxu0 0.0
        %1030 = vmatprep.mubr.f32.mxu0 0.0
        %1031 = vmatmul.mubr.f32.gmra.mrb[0].mxu0 %v961
        %v1032 = vpop.f32.mrb[0].mxu0
        %v1033 = vadd.f32 0.0, %v1032
        %v1034 = vpop.f32.mrb[0].mxu0
        %1035 = vmatprep.mubr.f32.mxu0 0.0
        %1036 = vmatmul.mubr.f32.gmra.mrb[0].mxu0 %v964
        %v1037 = vpop.f32.mrb[0].mxu0
        %v1038 = vadd.f32 0.0, %v1037
        %v1039 = vpop.f32.mrb[0].mxu0
        %1040 = vdwg.mxu0
        %v1042 = vsel %vm827, %v848, 0
        %v1045 = vsel %vm827, %v849, 0
        %1047 = vmatprep.subr.mxu0 0.0
        %1048 = vmatpush1.msra.mxu0 %v740
        %1049 = vmatprep.subr.mxu0 0.0
        %1050 = vmatpush1.msra.mxu0 %v741
        %1051 = vmatprep.subr.mxu0 0.0
        %1052 = vmatpush1.msra.mxu0 0.0
        %1053 = vmatprep.subr.mxu0 0.0
        %1054 = vmatpush1.msra.mxu0 0.0
        %1055 = vmatprep.subr.mxu0 0.0
        %1056 = vmatpush1.msra.mxu0 0.0
        %1057 = vmatprep.subr.mxu0 0.0
        %1058 = vmatpush1.msra.mxu0 0.0
        %1059 = vmatprep.subr.mxu0 0.0
        %1060 = vmatpush1.msra.mxu0 0.0
        %1061 = vmatprep.subr.mxu0 0.0
        %1062 = vmatpush1.msra.mxu0 0.0
        %1063 = vmatprep.subr.mxu0 0.0
        %1064 = vmatpush1.msra.mxu0 0.0
        %1065 = vmatprep.subr.mxu0 0.0
        %1066 = vmatpush1.msra.mxu0 0.0
        %1067 = vmatprep.subr.mxu0 0.0
        %1068 = vmatpush1.msra.mxu0 0.0
        %1069 = vmatprep.subr.mxu0 0.0
        %1070 = vmatpush1.msra.mxu0 0.0
        %1071 = vmatprep.subr.mxu0 0.0
        %1072 = vmatpush1.msra.mxu0 0.0
        %1073 = vmatprep.subr.mxu0 0.0
        %1074 = vmatpush1.msra.mxu0 0.0
        %1075 = vmatprep.subr.mxu0 0.0
        %1076 = vmatpush1.msra.mxu0 0.0
        %1077 = vmatprep.subr.mxu0 0.0
        %1078 = vmatpush1.msra.mxu0 0.0
        %1079 = vmatprep.subr.mxu0 0.0
        %1080 = vmatpush1.msra.mxu0 0.0
        %1081 = vmatprep.subr.mxu0 0.0
        %1082 = vmatpush1.msra.mxu0 0.0
        %1083 = vmatprep.subr.mxu0 0.0
        %1084 = vmatpush1.msra.mxu0 0.0
        %1085 = vmatprep.subr.mxu0 0.0
        %1086 = vmatpush1.msra.mxu0 0.0
        %1087 = vmatprep.subr.mxu0 0.0
        %1088 = vmatpush1.msra.mxu0 0.0
        %1089 = vmatprep.subr.mxu0 0.0
        %1090 = vmatpush1.msra.mxu0 0.0
        %1091 = vmatprep.subr.mxu0 0.0
        %1092 = vmatpush1.msra.mxu0 0.0
        %1093 = vmatprep.subr.mxu0 0.0
        %1094 = vmatpush1.msra.mxu0 0.0
        %1095 = vmatprep.subr.mxu0 0.0
        %1096 = vmatpush1.msra.mxu0 0.0
        %1097 = vmatprep.subr.mxu0 0.0
        %1098 = vmatpush1.msra.mxu0 0.0
        %1099 = vmatprep.subr.mxu0 0.0
        %1100 = vmatpush1.msra.mxu0 0.0
        %1101 = vmatprep.subr.mxu0 0.0
        %1102 = vmatpush1.msra.mxu0 0.0
        %1103 = vmatprep.subr.mxu0 0.0
        %1104 = vmatpush1.msra.mxu0 0.0
        %1105 = vmatprep.subr.mxu0 0.0
        %1106 = vmatpush1.msra.mxu0 0.0
        %1107 = vmatprep.subr.mxu0 0.0
        %1108 = vmatpush1.msra.mxu0 0.0
        %1109 = vmatprep.subr.mxu0 0.0
        %1110 = vmatpush1.msra.mxu0 0.0
        %1111 = vmatprep.mubr.f32.mxu0 0.0
        %1112 = vmatmul.mubr.f32.gmra.mrb[0].mxu0 %v1042
        %v1113 = vpop.f32.mrb[0].mxu0
        %v1114 = vadd.f32 %v1033, %v1113
        %v1115 = vpop.f32.mrb[0].mxu0
        %1116 = vmatprep.mubr.f32.mxu0 0.0
        %1117 = vmatmul.mubr.f32.gmra.mrb[0].mxu0 %v1045
        %v1118 = vpop.f32.mrb[0].mxu0
        %v1119 = vadd.f32 %v1038, %v1118
        %v1120 = vpop.f32.mrb[0].mxu0
        %1121 = vdwg.mxu0
        %vm1122 = vcmp.ge.s32.totalorder %v621, 8
        %vm1123 = vcmp.lt.s32.totalorder %v621, 12
        %vm1124 = vmand %vm1122, %vm1123
        %v1125 = vsel %vm1124, %v727, 0.0
        %v1126 = vsel %vm1124, %v729, 0.0
        %v1127 = vsel %vm1124, %v735, 0.0
        %v1128 = vsel %vm1124, %v737, 0.0
        %v1130 = vsel %vm566, %v1125, 0
        %v1133 = vsel %vm566, %v1126, 0
        %1135 = vmatprep.subr.mxu0 0.0
        %1136 = vmatpush1.xpose.msra.mxu0 %v1130
        %1137 = vmatprep.subr.mxu0 0.0
        %1138 = vmatpush1.xpose.msra.mxu0 %v1133
        %1139 = vmatprep.subr.mxu0 0.0
        %1140 = vmatpush1.xpose.msra.mxu0 0.0
        %1141 = vmatprep.subr.mxu0 0.0
        %1142 = vmatpush1.xpose.msra.mxu0 0.0
        %1143 = vmatprep.subr.mxu0 0.0
        %1144 = vmatpush1.xpose.msra.mxu0 0.0
        %1145 = vmatprep.subr.mxu0 0.0
        %1146 = vmatpush1.xpose.msra.mxu0 0.0
        %1147 = vmatprep.subr.mxu0 0.0
        %1148 = vmatpush1.xpose.msra.mxu0 0.0
        %1149 = vmatprep.subr.mxu0 0.0
        %1150 = vmatpush1.xpose.msra.mxu0 0.0
        %1151 = vmatprep.subr.mxu0 0.0
        %1152 = vmatpush1.xpose.msra.mxu0 0.0
        %1153 = vmatprep.subr.mxu0 0.0
        %1154 = vmatpush1.xpose.msra.mxu0 0.0
        %1155 = vmatprep.subr.mxu0 0.0
        %1156 = vmatpush1.xpose.msra.mxu0 0.0
        %1157 = vmatprep.subr.mxu0 0.0
        %1158 = vmatpush1.xpose.msra.mxu0 0.0
        %1159 = vmatprep.subr.mxu0 0.0
        %1160 = vmatpush1.xpose.msra.mxu0 0.0
        %1161 = vmatprep.subr.mxu0 0.0
        %1162 = vmatpush1.xpose.msra.mxu0 0.0
        %1163 = vmatprep.subr.mxu0 0.0
        %1164 = vmatpush1.xpose.msra.mxu0 0.0
        %1165 = vmatprep.subr.mxu0 0.0
        %1166 = vmatpush1.xpose.msra.mxu0 0.0
        %1167 = vmatprep.subr.mxu0 0.0
        %1168 = vmatpush1.xpose.msra.mxu0 0.0
        %1169 = vmatprep.subr.mxu0 0.0
        %1170 = vmatpush1.xpose.msra.mxu0 0.0
        %1171 = vmatprep.subr.mxu0 0.0
        %1172 = vmatpush1.xpose.msra.mxu0 0.0
        %1173 = vmatprep.subr.mxu0 0.0
        %1174 = vmatpush1.xpose.msra.mxu0 0.0
        %1175 = vmatprep.subr.mxu0 0.0
        %1176 = vmatpush1.xpose.msra.mxu0 0.0
        %1177 = vmatprep.subr.mxu0 0.0
        %1178 = vmatpush1.xpose.msra.mxu0 0.0
        %1179 = vmatprep.subr.mxu0 0.0
        %1180 = vmatpush1.xpose.msra.mxu0 0.0
        %1181 = vmatprep.subr.mxu0 0.0
        %1182 = vmatpush1.xpose.msra.mxu0 0.0
        %1183 = vmatprep.subr.mxu0 0.0
        %1184 = vmatpush1.xpose.msra.mxu0 0.0
        %1185 = vmatprep.subr.mxu0 0.0
        %1186 = vmatpush1.xpose.msra.mxu0 0.0
        %1187 = vmatprep.subr.mxu0 0.0
        %1188 = vmatpush1.xpose.msra.mxu0 0.0
        %1189 = vmatprep.subr.mxu0 0.0
        %1190 = vmatpush1.xpose.msra.mxu0 0.0
        %1191 = vmatprep.subr.mxu0 0.0
        %1192 = vmatpush1.xpose.msra.mxu0 0.0
        %1193 = vmatprep.subr.mxu0 0.0
        %1194 = vmatpush1.xpose.msra.mxu0 0.0
        %1195 = vmatprep.subr.mxu0 0.0
        %1196 = vmatpush1.xpose.msra.mxu0 0.0
        %1197 = vmatprep.subr.mxu0 0.0
        %1198 = vmatpush1.xpose.msra.mxu0 0.0
        %1199 = vmatprep.mubr.f32.mxu0 0.0
        %1200 = vmatmul.mubr.f32.gmra.mrb[0].mxu0 %v742
        %v1201 = vpop.f32.mrb[0].mxu0
        %v1202 = vadd.f32 %v623, %v1201
        %v1203 = vpop.f32.mrb[0].mxu0
        %1204 = vmatprep.mubr.f32.mxu0 0.0
        %1205 = vmatmul.mubr.f32.gmra.mrb[0].mxu0 %v744
        %v1206 = vpop.f32.mrb[0].mxu0
        %v1207 = vadd.f32 %v623, %v1206
        %v1208 = vpop.f32.mrb[0].mxu0
        %1209 = vdwg.mxu0
        %v1210 = vsel %vm827, %v1202, -inf
        %1211 = vmax.xlane.f32.xlu0 %v1210
        %v1212 = vpop.xlane.xlu0 %1211
        %v1213 = vsel %vm827, %v1207, -inf
        %1214 = vmax.xlane.f32.xlu0 %v1213
        %v1215 = vpop.xlane.xlu0 %1214
        %v1216 = vsub.f32 %v1202, %v1212
        %v1217 = vsub.f32 %v1207, %v1215
        %v1218 = vmul.f32 %v1216, 1.442695
        %v1219 = vpow.pop %v1218
        %v1220 = vmul.f32 %v1217, 1.442695
        %v1221 = vpow.pop %v1220
        %v1222 = vsel %vm827, %v1219, 0.0
        %1223 = vadd.xlane.f32.xlu0 %v1222
        %v1224 = vpop.xlane.xlu0 %1223
        %v1225 = vsel %vm827, %v1221, 0.0
        %1226 = vadd.xlane.f32.xlu0 %v1225
        %v1227 = vpop.xlane.xlu0 %1226
        %v1228 = vrcp.pop %v1224
        %v1229 = vrcp.pop %v1227
        %v1230 = vmul.f32 %v1219, %v1228
        %v1231 = vmul.f32 %v1221, %v1229
        %v1233 = vsel %vm827, %v1230, 0
        %v1236 = vsel %vm827, %v1231, 0
        %1238 = vmatprep.subr.mxu0 0.0
        %1239 = vmatpush1.msra.mxu0 %v1127
        %1240 = vmatprep.subr.mxu0 0.0
        %1241 = vmatpush1.msra.mxu0 %v1128
        %1242 = vmatprep.subr.mxu0 0.0
        %1243 = vmatpush1.msra.mxu0 0.0
        %1244 = vmatprep.subr.mxu0 0.0
        %1245 = vmatpush1.msra.mxu0 0.0
        %1246 = vmatprep.subr.mxu0 0.0
        %1247 = vmatpush1.msra.mxu0 0.0
        %1248 = vmatprep.subr.mxu0 0.0
        %1249 = vmatpush1.msra.mxu0 0.0
        %1250 = vmatprep.subr.mxu0 0.0
        %1251 = vmatpush1.msra.mxu0 0.0
        %1252 = vmatprep.subr.mxu0 0.0
        %1253 = vmatpush1.msra.mxu0 0.0
        %1254 = vmatprep.subr.mxu0 0.0
        %1255 = vmatpush1.msra.mxu0 0.0
        %1256 = vmatprep.subr.mxu0 0.0
        %1257 = vmatpush1.msra.mxu0 0.0
        %1258 = vmatprep.subr.mxu0 0.0
        %1259 = vmatpush1.msra.mxu0 0.0
        %1260 = vmatprep.subr.mxu0 0.0
        %1261 = vmatpush1.msra.mxu0 0.0
        %1262 = vmatprep.subr.mxu0 0.0
        %1263 = vmatpush1.msra.mxu0 0.0
        %1264 = vmatprep.subr.mxu0 0.0
        %1265 = vmatpush1.msra.mxu0 0.0
        %1266 = vmatprep.subr.mxu0 0.0
        %1267 = vmatpush1.msra.mxu0 0.0
        %1268 = vmatprep.subr.mxu0 0.0
        %1269 = vmatpush1.msra.mxu0 0.0
        %1270 = vmatprep.subr.mxu0 0.0
        %1271 = vmatpush1.msra.mxu0 0.0
        %1272 = vmatprep.subr.mxu0 0.0
        %1273 = vmatpush1.msra.mxu0 0.0
        %1274 = vmatprep.subr.mxu0 0.0
        %1275 = vmatpush1.msra.mxu0 0.0
        %1276 = vmatprep.subr.mxu0 0.0
        %1277 = vmatpush1.msra.mxu0 0.0
        %1278 = vmatprep.subr.mxu0 0.0
        %1279 = vmatpush1.msra.mxu0 0.0
        %1280 = vmatprep.subr.mxu0 0.0
        %1281 = vmatpush1.msra.mxu0 0.0
        %1282 = vmatprep.subr.mxu0 0.0
        %1283 = vmatpush1.msra.mxu0 0.0
        %1284 = vmatprep.subr.mxu0 0.0
        %1285 = vmatpush1.msra.mxu0 0.0
        %1286 = vmatprep.subr.mxu0 0.0
        %1287 = vmatpush1.msra.mxu0 0.0
        %1288 = vmatprep.subr.mxu0 0.0
        %1289 = vmatpush1.msra.mxu0 0.0
        %1290 = vmatprep.subr.mxu0 0.0
        %1291 = vmatpush1.msra.mxu0 0.0
        %1292 = vmatprep.subr.mxu0 0.0
        %1293 = vmatpush1.msra.mxu0 0.0
        %1294 = vmatprep.subr.mxu0 0.0
        %1295 = vmatpush1.msra.mxu0 0.0
        %1296 = vmatprep.subr.mxu0 0.0
        %1297 = vmatpush1.msra.mxu0 0.0
        %1298 = vmatprep.subr.mxu0 0.0
        %1299 = vmatpush1.msra.mxu0 0.0
        %1300 = vmatprep.subr.mxu0 0.0
        %1301 = vmatpush1.msra.mxu0 0.0
        %1302 = vmatprep.mubr.f32.mxu0 0.0
        %1303 = vmatmul.mubr.f32.gmra.mrb[0].mxu0 %v1233
        %v1304 = vpop.f32.mrb[0].mxu0
        %v1305 = vadd.f32 0.0, %v1304
        %v1306 = vpop.f32.mrb[0].mxu0
        %1307 = vmatprep.mubr.f32.mxu0 0.0
        %1308 = vmatmul.mubr.f32.gmra.mrb[0].mxu0 %v1236
        %v1309 = vpop.f32.mrb[0].mxu0
        %v1310 = vadd.f32 0.0, %v1309
        %v1311 = vpop.f32.mrb[0].mxu0
        %1312 = vdwg.mxu0
        %v1313 = vadd.f32 %v1114, %v1305
        %v1314 = vadd.f32 %v1119, %v1310
        %vm1315 = vcmp.ge.s32.totalorder %v621, 12
        %vm1316 = vcmp.lt.s32.totalorder %v621, 16
        %vm1317 = vmand %vm1315, %vm1316
        %v1318 = vsel %vm1317, %v727, 0.0
        %v1319 = vsel %vm1317, %v729, 0.0
        %v1320 = vsel %vm1317, %v735, 0.0
        %v1321 = vsel %vm1317, %v737, 0.0
        %v1323 = vsel %vm566, %v1318, 0
        %v1326 = vsel %vm566, %v1319, 0
        %1328 = vmatprep.subr.mxu0 0.0
        %1329 = vmatpush1.xpose.msra.mxu0 %v1323
        %1330 = vmatprep.subr.mxu0 0.0
        %1331 = vmatpush1.xpose.msra.mxu0 %v1326
        %1332 = vmatprep.subr.mxu0 0.0
        %1333 = vmatpush1.xpose.msra.mxu0 0.0
        %1334 = vmatprep.subr.mxu0 0.0
        %1335 = vmatpush1.xpose.msra.mxu0 0.0
        %1336 = vmatprep.subr.mxu0 0.0
        %1337 = vmatpush1.xpose.msra.mxu0 0.0
        %1338 = vmatprep.subr.mxu0 0.0
        %1339 = vmatpush1.xpose.msra.mxu0 0.0
        %1340 = vmatprep.subr.mxu0 0.0
        %1341 = vmatpush1.xpose.msra.mxu0 0.0
        %1342 = vmatprep.subr.mxu0 0.0
        %1343 = vmatpush1.xpose.msra.mxu0 0.0
        %1344 = vmatprep.subr.mxu0 0.0
        %1345 = vmatpush1.xpose.msra.mxu0 0.0
        %1346 = vmatprep.subr.mxu0 0.0
        %1347 = vmatpush1.xpose.msra.mxu0 0.0
        %1348 = vmatprep.subr.mxu0 0.0
        %1349 = vmatpush1.xpose.msra.mxu0 0.0
        %1350 = vmatprep.subr.mxu0 0.0
        %1351 = vmatpush1.xpose.msra.mxu0 0.0
        %1352 = vmatprep.subr.mxu0 0.0
        %1353 = vmatpush1.xpose.msra.mxu0 0.0
        %1354 = vmatprep.subr.mxu0 0.0
        %1355 = vmatpush1.xpose.msra.mxu0 0.0
        %1356 = vmatprep.subr.mxu0 0.0
        %1357 = vmatpush1.xpose.msra.mxu0 0.0
        %1358 = vmatprep.subr.mxu0 0.0
        %1359 = vmatpush1.xpose.msra.mxu0 0.0
        %1360 = vmatprep.subr.mxu0 0.0
        %1361 = vmatpush1.xpose.msra.mxu0 0.0
        %1362 = vmatprep.subr.mxu0 0.0
        %1363 = vmatpush1.xpose.msra.mxu0 0.0
        %1364 = vmatprep.subr.mxu0 0.0
        %1365 = vmatpush1.xpose.msra.mxu0 0.0
        %1366 = vmatprep.subr.mxu0 0.0
        %1367 = vmatpush1.xpose.msra.mxu0 0.0
        %1368 = vmatprep.subr.mxu0 0.0
        %1369 = vmatpush1.xpose.msra.mxu0 0.0
        %1370 = vmatprep.subr.mxu0 0.0
        %1371 = vmatpush1.xpose.msra.mxu0 0.0
        %1372 = vmatprep.subr.mxu0 0.0
        %1373 = vmatpush1.xpose.msra.mxu0 0.0
        %1374 = vmatprep.subr.mxu0 0.0
        %1375 = vmatpush1.xpose.msra.mxu0 0.0
        %1376 = vmatprep.subr.mxu0 0.0
        %1377 = vmatpush1.xpose.msra.mxu0 0.0
        %1378 = vmatprep.subr.mxu0 0.0
        %1379 = vmatpush1.xpose.msra.mxu0 0.0
        %1380 = vmatprep.subr.mxu0 0.0
        %1381 = vmatpush1.xpose.msra.mxu0 0.0
        %1382 = vmatprep.subr.mxu0 0.0
        %1383 = vmatpush1.xpose.msra.mxu0 0.0
        %1384 = vmatprep.subr.mxu0 0.0
        %1385 = vmatpush1.xpose.msra.mxu0 0.0
        %1386 = vmatprep.subr.mxu0 0.0
        %1387 = vmatpush1.xpose.msra.mxu0 0.0
        %1388 = vmatprep.subr.mxu0 0.0
        %1389 = vmatpush1.xpose.msra.mxu0 0.0
        %1390 = vmatprep.subr.mxu0 0.0
        %1391 = vmatpush1.xpose.msra.mxu0 0.0
        %1392 = vmatprep.mubr.f32.mxu0 0.0
        %1393 = vmatmul.mubr.f32.gmra.mrb[0].mxu0 %v742
        %v1394 = vpop.f32.mrb[0].mxu0
        %v1395 = vadd.f32 %v623, %v1394
        %v1396 = vpop.f32.mrb[0].mxu0
        %1397 = vmatprep.mubr.f32.mxu0 0.0
        %1398 = vmatmul.mubr.f32.gmra.mrb[0].mxu0 %v744
        %v1399 = vpop.f32.mrb[0].mxu0
        %v1400 = vadd.f32 %v623, %v1399
        %v1401 = vpop.f32.mrb[0].mxu0
        %1402 = vdwg.mxu0
        %v1403 = vsel %vm827, %v1395, -inf
        %1404 = vmax.xlane.f32.xlu0 %v1403
        %v1405 = vpop.xlane.xlu0 %1404
        %v1406 = vsel %vm827, %v1400, -inf
        %1407 = vmax.xlane.f32.xlu0 %v1406
        %v1408 = vpop.xlane.xlu0 %1407
        %v1409 = vsub.f32 %v1395, %v1405
        %v1410 = vsub.f32 %v1400, %v1408
        %v1411 = vmul.f32 %v1409, 1.442695
        %v1412 = vpow.pop %v1411
        %v1413 = vmul.f32 %v1410, 1.442695
        %v1414 = vpow.pop %v1413
        %v1415 = vsel %vm827, %v1412, 0.0
        %1416 = vadd.xlane.f32.xlu0 %v1415
        %v1417 = vpop.xlane.xlu0 %1416
        %v1418 = vsel %vm827, %v1414, 0.0
        %1419 = vadd.xlane.f32.xlu0 %v1418
        %v1420 = vpop.xlane.xlu0 %1419
        %v1421 = vrcp.pop %v1417
        %v1422 = vrcp.pop %v1420
        %v1423 = vmul.f32 %v1412, %v1421
        %v1424 = vmul.f32 %v1414, %v1422
        %v1426 = vsel %vm827, %v1423, 0
        %v1429 = vsel %vm827, %v1424, 0
        %1431 = vmatprep.subr.mxu0 0.0
        %1432 = vmatpush1.msra.mxu0 %v1320
        %1433 = vmatprep.subr.mxu0 0.0
        %1434 = vmatpush1.msra.mxu0 %v1321
        %1435 = vmatprep.subr.mxu0 0.0
        %1436 = vmatpush1.msra.mxu0 0.0
        %1437 = vmatprep.subr.mxu0 0.0
        %1438 = vmatpush1.msra.mxu0 0.0
        %1439 = vmatprep.subr.mxu0 0.0
        %1440 = vmatpush1.msra.mxu0 0.0
        %1441 = vmatprep.subr.mxu0 0.0
        %1442 = vmatpush1.msra.mxu0 0.0
        %1443 = vmatprep.subr.mxu0 0.0
        %1444 = vmatpush1.msra.mxu0 0.0
        %1445 = vmatprep.subr.mxu0 0.0
        %1446 = vmatpush1.msra.mxu0 0.0
        %1447 = vmatprep.subr.mxu0 0.0
        %1448 = vmatpush1.msra.mxu0 0.0
        %1449 = vmatprep.subr.mxu0 0.0
        %1450 = vmatpush1.msra.mxu0 0.0
        %1451 = vmatprep.subr.mxu0 0.0
        %1452 = vmatpush1.msra.mxu0 0.0
        %1453 = vmatprep.subr.mxu0 0.0
        %1454 = vmatpush1.msra.mxu0 0.0
        %1455 = vmatprep.subr.mxu0 0.0
        %1456 = vmatpush1.msra.mxu0 0.0
        %1457 = vmatprep.subr.mxu0 0.0
        %1458 = vmatpush1.msra.mxu0 0.0
        %1459 = vmatprep.subr.mxu0 0.0
        %1460 = vmatpush1.msra.mxu0 0.0
        %1461 = vmatprep.subr.mxu0 0.0
        %1462 = vmatpush1.msra.mxu0 0.0
        %1463 = vmatprep.subr.mxu0 0.0
        %1464 = vmatpush1.msra.mxu0 0.0
        %1465 = vmatprep.subr.mxu0 0.0
        %1466 = vmatpush1.msra.mxu0 0.0
        %1467 = vmatprep.subr.mxu0 0.0
        %1468 = vmatpush1.msra.mxu0 0.0
        %1469 = vmatprep.subr.mxu0 0.0
        %1470 = vmatpush1.msra.mxu0 0.0
        %1471 = vmatprep.subr.mxu0 0.0
        %1472 = vmatpush1.msra.mxu0 0.0
        %1473 = vmatprep.subr.mxu0 0.0
        %1474 = vmatpush1.msra.mxu0 0.0
        %1475 = vmatprep.subr.mxu0 0.0
        %1476 = vmatpush1.msra.mxu0 0.0
        %1477 = vmatprep.subr.mxu0 0.0
        %1478 = vmatpush1.msra.mxu0 0.0
        %1479 = vmatprep.subr.mxu0 0.0
        %1480 = vmatpush1.msra.mxu0 0.0
        %1481 = vmatprep.subr.mxu0 0.0
        %1482 = vmatpush1.msra.mxu0 0.0
        %1483 = vmatprep.subr.mxu0 0.0
        %1484 = vmatpush1.msra.mxu0 0.0
        %1485 = vmatprep.subr.mxu0 0.0
        %1486 = vmatpush1.msra.mxu0 0.0
        %1487 = vmatprep.subr.mxu0 0.0
        %1488 = vmatpush1.msra.mxu0 0.0
        %1489 = vmatprep.subr.mxu0 0.0
        %1490 = vmatpush1.msra.mxu0 0.0
        %1491 = vmatprep.subr.mxu0 0.0
        %1492 = vmatpush1.msra.mxu0 0.0
        %1493 = vmatprep.subr.mxu0 0.0
        %1494 = vmatpush1.msra.mxu0 0.0
        %1495 = vmatprep.mubr.f32.mxu0 0.0
        %1496 = vmatmul.mubr.f32.gmra.mrb[0].mxu0 %v1426
        %v1497 = vpop.f32.mrb[0].mxu0
        %v1498 = vadd.f32 0.0, %v1497
        %v1499 = vpop.f32.mrb[0].mxu0
        %1500 = vmatprep.mubr.f32.mxu0 0.0
        %1501 = vmatmul.mubr.f32.gmra.mrb[0].mxu0 %v1429
        %v1502 = vpop.f32.mrb[0].mxu0
        %v1503 = vadd.f32 0.0, %v1502
        %v1504 = vpop.f32.mrb[0].mxu0
        %1505 = vdwg.mxu0
        %v1506 = vadd.f32 %v1313, %v1498
        %v1507 = vadd.f32 %v1314, %v1503
        %vm1508 = vcmp.ge.s32.totalorder %v621, 16
        %vm1509 = vcmp.lt.s32.totalorder %v621, 20
        %vm1510 = vmand %vm1508, %vm1509
        %v1511 = vsel %vm1510, %v727, 0.0
        %v1512 = vsel %vm1510, %v729, 0.0
        %v1513 = vsel %vm1510, %v735, 0.0
        %v1514 = vsel %vm1510, %v737, 0.0
        %v1516 = vsel %vm566, %v1511, 0
        %v1519 = vsel %vm566, %v1512, 0
        %1521 = vmatprep.subr.mxu0 0.0
        %1522 = vmatpush1.xpose.msra.mxu0 %v1516
        %1523 = vmatprep.subr.mxu0 0.0
        %1524 = vmatpush1.xpose.msra.mxu0 %v1519
        %1525 = vmatprep.subr.mxu0 0.0
        %1526 = vmatpush1.xpose.msra.mxu0 0.0
        %1527 = vmatprep.subr.mxu0 0.0
        %1528 = vmatpush1.xpose.msra.mxu0 0.0
        %1529 = vmatprep.subr.mxu0 0.0
        %1530 = vmatpush1.xpose.msra.mxu0 0.0
        %1531 = vmatprep.subr.mxu0 0.0
        %1532 = vmatpush1.xpose.msra.mxu0 0.0
        %1533 = vmatprep.subr.mxu0 0.0
        %1534 = vmatpush1.xpose.msra.mxu0 0.0
        %1535 = vmatprep.subr.mxu0 0.0
        %1536 = vmatpush1.xpose.msra.mxu0 0.0
        %1537 = vmatprep.subr.mxu0 0.0
        %1538 = vmatpush1.xpose.msra.mxu0 0.0
        %1539 = vmatprep.subr.mxu0 0.0
        %1540 = vmatpush1.xpose.msra.mxu0 0.0
        %1541 = vmatprep.subr.mxu0 0.0
        %1542 = vmatpush1.xpose.msra.mxu0 0.0
        %1543 = vmatprep.subr.mxu0 0.0
        %1544 = vmatpush1.xpose.msra.mxu0 0.0
        %1545 = vmatprep.subr.mxu0 0.0
        %1546 = vmatpush1.xpose.msra.mxu0 0.0
        %1547 = vmatprep.subr.mxu0 0.0
        %1548 = vmatpush1.xpose.msra.mxu0 0.0
        %1549 = vmatprep.subr.mxu0 0.0
        %1550 = vmatpush1.xpose.msra.mxu0 0.0
        %1551 = vmatprep.subr.mxu0 0.0
        %1552 = vmatpush1.xpose.msra.mxu0 0.0
        %1553 = vmatprep.subr.mxu0 0.0
        %1554 = vmatpush1.xpose.msra.mxu0 0.0
        %1555 = vmatprep.subr.mxu0 0.0
        %1556 = vmatpush1.xpose.msra.mxu0 0.0
        %1557 = vmatprep.subr.mxu0 0.0
        %1558 = vmatpush1.xpose.msra.mxu0 0.0
        %1559 = vmatprep.subr.mxu0 0.0
        %1560 = vmatpush1.xpose.msra.mxu0 0.0
        %1561 = vmatprep.subr.mxu0 0.0
        %1562 = vmatpush1.xpose.msra.mxu0 0.0
        %1563 = vmatprep.subr.mxu0 0.0
        %1564 = vmatpush1.xpose.msra.mxu0 0.0
        %1565 = vmatprep.subr.mxu0 0.0
        %1566 = vmatpush1.xpose.msra.mxu0 0.0
        %1567 = vmatprep.subr.mxu0 0.0
        %1568 = vmatpush1.xpose.msra.mxu0 0.0
        %1569 = vmatprep.subr.mxu0 0.0
        %1570 = vmatpush1.xpose.msra.mxu0 0.0
        %1571 = vmatprep.subr.mxu0 0.0
        %1572 = vmatpush1.xpose.msra.mxu0 0.0
        %1573 = vmatprep.subr.mxu0 0.0
        %1574 = vmatpush1.xpose.msra.mxu0 0.0
        %1575 = vmatprep.subr.mxu0 0.0
        %1576 = vmatpush1.xpose.msra.mxu0 0.0
        %1577 = vmatprep.subr.mxu0 0.0
        %1578 = vmatpush1.xpose.msra.mxu0 0.0
        %1579 = vmatprep.subr.mxu0 0.0
        %1580 = vmatpush1.xpose.msra.mxu0 0.0
        %1581 = vmatprep.subr.mxu0 0.0
        %1582 = vmatpush1.xpose.msra.mxu0 0.0
        %1583 = vmatprep.subr.mxu0 0.0
        %1584 = vmatpush1.xpose.msra.mxu0 0.0
        %1585 = vmatprep.mubr.f32.mxu0 0.0
        %1586 = vmatmul.mubr.f32.gmra.mrb[0].mxu0 %v742
        %v1587 = vpop.f32.mrb[0].mxu0
        %v1588 = vadd.f32 %v623, %v1587
        %v1589 = vpop.f32.mrb[0].mxu0
        %1590 = vmatprep.mubr.f32.mxu0 0.0
        %1591 = vmatmul.mubr.f32.gmra.mrb[0].mxu0 %v744
        %v1592 = vpop.f32.mrb[0].mxu0
        %v1593 = vadd.f32 %v623, %v1592
        %v1594 = vpop.f32.mrb[0].mxu0
        %1595 = vdwg.mxu0
        %v1596 = vsel %vm827, %v1588, -inf
        %1597 = vmax.xlane.f32.xlu0 %v1596
        %v1598 = vpop.xlane.xlu0 %1597
        %v1599 = vsel %vm827, %v1593, -inf
        %1600 = vmax.xlane.f32.xlu0 %v1599
        %v1601 = vpop.xlane.xlu0 %1600
        %v1602 = vsub.f32 %v1588, %v1598
        %v1603 = vsub.f32 %v1593, %v1601
        %v1604 = vmul.f32 %v1602, 1.442695
        %v1605 = vpow.pop %v1604
        %v1606 = vmul.f32 %v1603, 1.442695
        %v1607 = vpow.pop %v1606
        %v1608 = vsel %vm827, %v1605, 0.0
        %1609 = vadd.xlane.f32.xlu0 %v1608
        %v1610 = vpop.xlane.xlu0 %1609
        %v1611 = vsel %vm827, %v1607, 0.0
        %1612 = vadd.xlane.f32.xlu0 %v1611
        %v1613 = vpop.xlane.xlu0 %1612
        %v1614 = vrcp.pop %v1610
        %v1615 = vrcp.pop %v1613
        %v1616 = vmul.f32 %v1605, %v1614
        %v1617 = vmul.f32 %v1607, %v1615
        %v1619 = vsel %vm827, %v1616, 0
        %v1622 = vsel %vm827, %v1617, 0
        %1624 = vmatprep.subr.mxu0 0.0
        %1625 = vmatpush1.msra.mxu0 %v1513
        %1626 = vmatprep.subr.mxu0 0.0
        %1627 = vmatpush1.msra.mxu0 %v1514
        %1628 = vmatprep.subr.mxu0 0.0
        %1629 = vmatpush1.msra.mxu0 0.0
        %1630 = vmatprep.subr.mxu0 0.0
        %1631 = vmatpush1.msra.mxu0 0.0
        %1632 = vmatprep.subr.mxu0 0.0
        %1633 = vmatpush1.msra.mxu0 0.0
        %1634 = vmatprep.subr.mxu0 0.0
        %1635 = vmatpush1.msra.mxu0 0.0
        %1636 = vmatprep.subr.mxu0 0.0
        %1637 = vmatpush1.msra.mxu0 0.0
        %1638 = vmatprep.subr.mxu0 0.0
        %1639 = vmatpush1.msra.mxu0 0.0
        %1640 = vmatprep.subr.mxu0 0.0
        %1641 = vmatpush1.msra.mxu0 0.0
        %1642 = vmatprep.subr.mxu0 0.0
        %1643 = vmatpush1.msra.mxu0 0.0
        %1644 = vmatprep.subr.mxu0 0.0
        %1645 = vmatpush1.msra.mxu0 0.0
        %1646 = vmatprep.subr.mxu0 0.0
        %1647 = vmatpush1.msra.mxu0 0.0
        %1648 = vmatprep.subr.mxu0 0.0
        %1649 = vmatpush1.msra.mxu0 0.0
        %1650 = vmatprep.subr.mxu0 0.0
        %1651 = vmatpush1.msra.mxu0 0.0
        %1652 = vmatprep.subr.mxu0 0.0
        %1653 = vmatpush1.msra.mxu0 0.0
        %1654 = vmatprep.subr.mxu0 0.0
        %1655 = vmatpush1.msra.mxu0 0.0
        %1656 = vmatprep.subr.mxu0 0.0
        %1657 = vmatpush1.msra.mxu0 0.0
        %1658 = vmatprep.subr.mxu0 0.0
        %1659 = vmatpush1.msra.mxu0 0.0
        %1660 = vmatprep.subr.mxu0 0.0
        %1661 = vmatpush1.msra.mxu0 0.0
        %1662 = vmatprep.subr.mxu0 0.0
        %1663 = vmatpush1.msra.mxu0 0.0
        %1664 = vmatprep.subr.mxu0 0.0
        %1665 = vmatpush1.msra.mxu0 0.0
        %1666 = vmatprep.subr.mxu0 0.0
        %1667 = vmatpush1.msra.mxu0 0.0
        %1668 = vmatprep.subr.mxu0 0.0
        %1669 = vmatpush1.msra.mxu0 0.0
        %1670 = vmatprep.subr.mxu0 0.0
        %1671 = vmatpush1.msra.mxu0 0.0
        %1672 = vmatprep.subr.mxu0 0.0
        %1673 = vmatpush1.msra.mxu0 0.0
        %1674 = vmatprep.subr.mxu0 0.0
        %1675 = vmatpush1.msra.mxu0 0.0
        %1676 = vmatprep.subr.mxu0 0.0
        %1677 = vmatpush1.msra.mxu0 0.0
        %1678 = vmatprep.subr.mxu0 0.0
        %1679 = vmatpush1.msra.mxu0 0.0
        %1680 = vmatprep.subr.mxu0 0.0
        %1681 = vmatpush1.msra.mxu0 0.0
        %1682 = vmatprep.subr.mxu0 0.0
        %1683 = vmatpush1.msra.mxu0 0.0
        %1684 = vmatprep.subr.mxu0 0.0
        %1685 = vmatpush1.msra.mxu0 0.0
        %1686 = vmatprep.subr.mxu0 0.0
        %1687 = vmatpush1.msra.mxu0 0.0
        %1688 = vmatprep.mubr.f32.mxu0 0.0
        %1689 = vmatmul.mubr.f32.gmra.mrb[0].mxu0 %v1619
        %v1690 = vpop.f32.mrb[0].mxu0
        %v1691 = vadd.f32 0.0, %v1690
        %v1692 = vpop.f32.mrb[0].mxu0
        %1693 = vmatprep.mubr.f32.mxu0 0.0
        %1694 = vmatmul.mubr.f32.gmra.mrb[0].mxu0 %v1622
        %v1695 = vpop.f32.mrb[0].mxu0
        %v1696 = vadd.f32 0.0, %v1695
        %v1697 = vpop.f32.mrb[0].mxu0
        %1698 = vdwg.mxu0
        %v1699 = vadd.f32 %v1506, %v1691
        %v1700 = vadd.f32 %v1507, %v1696
        %vm1701 = vcmp.ge.s32.totalorder %v621, 20
        %vm1702 = vcmp.lt.s32.totalorder %v621, 24
        %vm1703 = vmand %vm1701, %vm1702
        %v1704 = vsel %vm1703, %v727, 0.0
        %v1705 = vsel %vm1703, %v729, 0.0
        %v1706 = vsel %vm1703, %v735, 0.0
        %v1707 = vsel %vm1703, %v737, 0.0
        %v1709 = vsel %vm566, %v1704, 0
        %v1712 = vsel %vm566, %v1705, 0
        %1714 = vmatprep.subr.mxu0 0.0
        %1715 = vmatpush1.xpose.msra.mxu0 %v1709
        %1716 = vmatprep.subr.mxu0 0.0
        %1717 = vmatpush1.xpose.msra.mxu0 %v1712
        %1718 = vmatprep.subr.mxu0 0.0
        %1719 = vmatpush1.xpose.msra.mxu0 0.0
        %1720 = vmatprep.subr.mxu0 0.0
        %1721 = vmatpush1.xpose.msra.mxu0 0.0
        %1722 = vmatprep.subr.mxu0 0.0
        %1723 = vmatpush1.xpose.msra.mxu0 0.0
        %1724 = vmatprep.subr.mxu0 0.0
        %1725 = vmatpush1.xpose.msra.mxu0 0.0
        %1726 = vmatprep.subr.mxu0 0.0
        %1727 = vmatpush1.xpose.msra.mxu0 0.0
        %1728 = vmatprep.subr.mxu0 0.0
        %1729 = vmatpush1.xpose.msra.mxu0 0.0
        %1730 = vmatprep.subr.mxu0 0.0
        %1731 = vmatpush1.xpose.msra.mxu0 0.0
        %1732 = vmatprep.subr.mxu0 0.0
        %1733 = vmatpush1.xpose.msra.mxu0 0.0
        %1734 = vmatprep.subr.mxu0 0.0
        %1735 = vmatpush1.xpose.msra.mxu0 0.0
        %1736 = vmatprep.subr.mxu0 0.0
        %1737 = vmatpush1.xpose.msra.mxu0 0.0
        %1738 = vmatprep.subr.mxu0 0.0
        %1739 = vmatpush1.xpose.msra.mxu0 0.0
        %1740 = vmatprep.subr.mxu0 0.0
        %1741 = vmatpush1.xpose.msra.mxu0 0.0
        %1742 = vmatprep.subr.mxu0 0.0
        %1743 = vmatpush1.xpose.msra.mxu0 0.0
        %1744 = vmatprep.subr.mxu0 0.0
        %1745 = vmatpush1.xpose.msra.mxu0 0.0
        %1746 = vmatprep.subr.mxu0 0.0
        %1747 = vmatpush1.xpose.msra.mxu0 0.0
        %1748 = vmatprep.subr.mxu0 0.0
        %1749 = vmatpush1.xpose.msra.mxu0 0.0
        %1750 = vmatprep.subr.mxu0 0.0
        %1751 = vmatpush1.xpose.msra.mxu0 0.0
        %1752 = vmatprep.subr.mxu0 0.0
        %1753 = vmatpush1.xpose.msra.mxu0 0.0
        %1754 = vmatprep.subr.mxu0 0.0
        %1755 = vmatpush1.xpose.msra.mxu0 0.0
        %1756 = vmatprep.subr.mxu0 0.0
        %1757 = vmatpush1.xpose.msra.mxu0 0.0
        %1758 = vmatprep.subr.mxu0 0.0
        %1759 = vmatpush1.xpose.msra.mxu0 0.0
        %1760 = vmatprep.subr.mxu0 0.0
        %1761 = vmatpush1.xpose.msra.mxu0 0.0
        %1762 = vmatprep.subr.mxu0 0.0
        %1763 = vmatpush1.xpose.msra.mxu0 0.0
        %1764 = vmatprep.subr.mxu0 0.0
        %1765 = vmatpush1.xpose.msra.mxu0 0.0
        %1766 = vmatprep.subr.mxu0 0.0
        %1767 = vmatpush1.xpose.msra.mxu0 0.0
        %1768 = vmatprep.subr.mxu0 0.0
        %1769 = vmatpush1.xpose.msra.mxu0 0.0
        %1770 = vmatprep.subr.mxu0 0.0
        %1771 = vmatpush1.xpose.msra.mxu0 0.0
        %1772 = vmatprep.subr.mxu0 0.0
        %1773 = vmatpush1.xpose.msra.mxu0 0.0
        %1774 = vmatprep.subr.mxu0 0.0
        %1775 = vmatpush1.xpose.msra.mxu0 0.0
        %1776 = vmatprep.subr.mxu0 0.0
        %1777 = vmatpush1.xpose.msra.mxu0 0.0
        %1778 = vmatprep.mubr.f32.mxu0 0.0
        %1779 = vmatmul.mubr.f32.gmra.mrb[0].mxu0 %v742
        %v1780 = vpop.f32.mrb[0].mxu0
        %v1781 = vadd.f32 %v623, %v1780
        %v1782 = vpop.f32.mrb[0].mxu0
        %1783 = vmatprep.mubr.f32.mxu0 0.0
        %1784 = vmatmul.mubr.f32.gmra.mrb[0].mxu0 %v744
        %v1785 = vpop.f32.mrb[0].mxu0
        %v1786 = vadd.f32 %v623, %v1785
        %v1787 = vpop.f32.mrb[0].mxu0
        %1788 = vdwg.mxu0
        %v1789 = vsel %vm827, %v1781, -inf
        %1790 = vmax.xlane.f32.xlu0 %v1789
        %v1791 = vpop.xlane.xlu0 %1790
        %v1792 = vsel %vm827, %v1786, -inf
        %1793 = vmax.xlane.f32.xlu0 %v1792
        %v1794 = vpop.xlane.xlu0 %1793
        %v1795 = vsub.f32 %v1781, %v1791
        %v1796 = vsub.f32 %v1786, %v1794
        %v1797 = vmul.f32 %v1795, 1.442695
        %v1798 = vpow.pop %v1797
        %v1799 = vmul.f32 %v1796, 1.442695
        %v1800 = vpow.pop %v1799
        %v1801 = vsel %vm827, %v1798, 0.0
        %1802 = vadd.xlane.f32.xlu0 %v1801
        %v1803 = vpop.xlane.xlu0 %1802
        %v1804 = vsel %vm827, %v1800, 0.0
        %1805 = vadd.xlane.f32.xlu0 %v1804
        %v1806 = vpop.xlane.xlu0 %1805
        %v1807 = vrcp.pop %v1803
        %v1808 = vrcp.pop %v1806
        %v1809 = vmul.f32 %v1798, %v1807
        %v1810 = vmul.f32 %v1800, %v1808
        %v1812 = vsel %vm827, %v1809, 0
        %v1815 = vsel %vm827, %v1810, 0
        %1817 = vmatprep.subr.mxu0 0.0
        %1818 = vmatpush1.msra.mxu0 %v1706
        %1819 = vmatprep.subr.mxu0 0.0
        %1820 = vmatpush1.msra.mxu0 %v1707
        %1821 = vmatprep.subr.mxu0 0.0
        %1822 = vmatpush1.msra.mxu0 0.0
        %1823 = vmatprep.subr.mxu0 0.0
        %1824 = vmatpush1.msra.mxu0 0.0
        %1825 = vmatprep.subr.mxu0 0.0
        %1826 = vmatpush1.msra.mxu0 0.0
        %1827 = vmatprep.subr.mxu0 0.0
        %1828 = vmatpush1.msra.mxu0 0.0
        %1829 = vmatprep.subr.mxu0 0.0
        %1830 = vmatpush1.msra.mxu0 0.0
        %1831 = vmatprep.subr.mxu0 0.0
        %1832 = vmatpush1.msra.mxu0 0.0
        %1833 = vmatprep.subr.mxu0 0.0
        %1834 = vmatpush1.msra.mxu0 0.0
        %1835 = vmatprep.subr.mxu0 0.0
        %1836 = vmatpush1.msra.mxu0 0.0
        %1837 = vmatprep.subr.mxu0 0.0
        %1838 = vmatpush1.msra.mxu0 0.0
        %1839 = vmatprep.subr.mxu0 0.0
        %1840 = vmatpush1.msra.mxu0 0.0
        %1841 = vmatprep.subr.mxu0 0.0
        %1842 = vmatpush1.msra.mxu0 0.0
        %1843 = vmatprep.subr.mxu0 0.0
        %1844 = vmatpush1.msra.mxu0 0.0
        %1845 = vmatprep.subr.mxu0 0.0
        %1846 = vmatpush1.msra.mxu0 0.0
        %1847 = vmatprep.subr.mxu0 0.0
        %1848 = vmatpush1.msra.mxu0 0.0
        %1849 = vmatprep.subr.mxu0 0.0
        %1850 = vmatpush1.msra.mxu0 0.0
        %1851 = vmatprep.subr.mxu0 0.0
        %1852 = vmatpush1.msra.mxu0 0.0
        %1853 = vmatprep.subr.mxu0 0.0
        %1854 = vmatpush1.msra.mxu0 0.0
        %1855 = vmatprep.subr.mxu0 0.0
        %1856 = vmatpush1.msra.mxu0 0.0
        %1857 = vmatprep.subr.mxu0 0.0
        %1858 = vmatpush1.msra.mxu0 0.0
        %1859 = vmatprep.subr.mxu0 0.0
        %1860 = vmatpush1.msra.mxu0 0.0
        %1861 = vmatprep.subr.mxu0 0.0
        %1862 = vmatpush1.msra.mxu0 0.0
        %1863 = vmatprep.subr.mxu0 0.0
        %1864 = vmatpush1.msra.mxu0 0.0
        %1865 = vmatprep.subr.mxu0 0.0
        %1866 = vmatpush1.msra.mxu0 0.0
        %1867 = vmatprep.subr.mxu0 0.0
        %1868 = vmatpush1.msra.mxu0 0.0
        %1869 = vmatprep.subr.mxu0 0.0
        %1870 = vmatpush1.msra.mxu0 0.0
        %1871 = vmatprep.subr.mxu0 0.0
        %1872 = vmatpush1.msra.mxu0 0.0
        %1873 = vmatprep.subr.mxu0 0.0
        %1874 = vmatpush1.msra.mxu0 0.0
        %1875 = vmatprep.subr.mxu0 0.0
        %1876 = vmatpush1.msra.mxu0 0.0
        %1877 = vmatprep.subr.mxu0 0.0
        %1878 = vmatpush1.msra.mxu0 0.0
        %1879 = vmatprep.subr.mxu0 0.0
        %1880 = vmatpush1.msra.mxu0 0.0
        %1881 = vmatprep.mubr.f32.mxu0 0.0
        %1882 = vmatmul.mubr.f32.gmra.mrb[0].mxu0 %v1812
        %v1883 = vpop.f32.mrb[0].mxu0
        %v1884 = vadd.f32 0.0, %v1883
        %v1885 = vpop.f32.mrb[0].mxu0
        %1886 = vmatprep.mubr.f32.mxu0 0.0
        %1887 = vmatmul.mubr.f32.gmra.mrb[0].mxu0 %v1815
        %v1888 = vpop.f32.mrb[0].mxu0
        %v1889 = vadd.f32 0.0, %v1888
        %v1890 = vpop.f32.mrb[0].mxu0
        %1891 = vdwg.mxu0
        %v1892 = vadd.f32 %v1699, %v1884
        %v1893 = vadd.f32 %v1700, %v1889
        %vm1894 = vcmp.ge.s32.totalorder %v621, 24
        %vm1895 = vcmp.lt.s32.totalorder %v621, 28
        %vm1896 = vmand %vm1894, %vm1895
        %v1897 = vsel %vm1896, %v727, 0.0
        %v1898 = vsel %vm1896, %v729, 0.0
        %v1899 = vsel %vm1896, %v735, 0.0
        %v1900 = vsel %vm1896, %v737, 0.0
        %v1902 = vsel %vm566, %v1897, 0
        %v1905 = vsel %vm566, %v1898, 0
        %1907 = vmatprep.subr.mxu0 0.0
        %1908 = vmatpush1.xpose.msra.mxu0 %v1902
        %1909 = vmatprep.subr.mxu0 0.0
        %1910 = vmatpush1.xpose.msra.mxu0 %v1905
        %1911 = vmatprep.subr.mxu0 0.0
        %1912 = vmatpush1.xpose.msra.mxu0 0.0
        %1913 = vmatprep.subr.mxu0 0.0
        %1914 = vmatpush1.xpose.msra.mxu0 0.0
        %1915 = vmatprep.subr.mxu0 0.0
        %1916 = vmatpush1.xpose.msra.mxu0 0.0
        %1917 = vmatprep.subr.mxu0 0.0
        %1918 = vmatpush1.xpose.msra.mxu0 0.0
        %1919 = vmatprep.subr.mxu0 0.0
        %1920 = vmatpush1.xpose.msra.mxu0 0.0
        %1921 = vmatprep.subr.mxu0 0.0
        %1922 = vmatpush1.xpose.msra.mxu0 0.0
        %1923 = vmatprep.subr.mxu0 0.0
        %1924 = vmatpush1.xpose.msra.mxu0 0.0
        %1925 = vmatprep.subr.mxu0 0.0
        %1926 = vmatpush1.xpose.msra.mxu0 0.0
        %1927 = vmatprep.subr.mxu0 0.0
        %1928 = vmatpush1.xpose.msra.mxu0 0.0
        %1929 = vmatprep.subr.mxu0 0.0
        %1930 = vmatpush1.xpose.msra.mxu0 0.0
        %1931 = vmatprep.subr.mxu0 0.0
        %1932 = vmatpush1.xpose.msra.mxu0 0.0
        %1933 = vmatprep.subr.mxu0 0.0
        %1934 = vmatpush1.xpose.msra.mxu0 0.0
        %1935 = vmatprep.subr.mxu0 0.0
        %1936 = vmatpush1.xpose.msra.mxu0 0.0
        %1937 = vmatprep.subr.mxu0 0.0
        %1938 = vmatpush1.xpose.msra.mxu0 0.0
        %1939 = vmatprep.subr.mxu0 0.0
        %1940 = vmatpush1.xpose.msra.mxu0 0.0
        %1941 = vmatprep.subr.mxu0 0.0
        %1942 = vmatpush1.xpose.msra.mxu0 0.0
        %1943 = vmatprep.subr.mxu0 0.0
        %1944 = vmatpush1.xpose.msra.mxu0 0.0
        %1945 = vmatprep.subr.mxu0 0.0
        %1946 = vmatpush1.xpose.msra.mxu0 0.0
        %1947 = vmatprep.subr.mxu0 0.0
        %1948 = vmatpush1.xpose.msra.mxu0 0.0
        %1949 = vmatprep.subr.mxu0 0.0
        %1950 = vmatpush1.xpose.msra.mxu0 0.0
        %1951 = vmatprep.subr.mxu0 0.0
        %1952 = vmatpush1.xpose.msra.mxu0 0.0
        %1953 = vmatprep.subr.mxu0 0.0
        %1954 = vmatpush1.xpose.msra.mxu0 0.0
        %1955 = vmatprep.subr.mxu0 0.0
        %1956 = vmatpush1.xpose.msra.mxu0 0.0
        %1957 = vmatprep.subr.mxu0 0.0
        %1958 = vmatpush1.xpose.msra.mxu0 0.0
        %1959 = vmatprep.subr.mxu0 0.0
        %1960 = vmatpush1.xpose.msra.mxu0 0.0
        %1961 = vmatprep.subr.mxu0 0.0
        %1962 = vmatpush1.xpose.msra.mxu0 0.0
        %1963 = vmatprep.subr.mxu0 0.0
        %1964 = vmatpush1.xpose.msra.mxu0 0.0
        %1965 = vmatprep.subr.mxu0 0.0
        %1966 = vmatpush1.xpose.msra.mxu0 0.0
        %1967 = vmatprep.subr.mxu0 0.0
        %1968 = vmatpush1.xpose.msra.mxu0 0.0
        %1969 = vmatprep.subr.mxu0 0.0
        %1970 = vmatpush1.xpose.msra.mxu0 0.0
        %1971 = vmatprep.mubr.f32.mxu0 0.0
        %1972 = vmatmul.mubr.f32.gmra.mrb[0].mxu0 %v742
        %v1973 = vpop.f32.mrb[0].mxu0
        %v1974 = vadd.f32 %v623, %v1973
        %v1975 = vpop.f32.mrb[0].mxu0
        %1976 = vmatprep.mubr.f32.mxu0 0.0
        %1977 = vmatmul.mubr.f32.gmra.mrb[0].mxu0 %v744
        %v1978 = vpop.f32.mrb[0].mxu0
        %v1979 = vadd.f32 %v623, %v1978
        %v1980 = vpop.f32.mrb[0].mxu0
        %1981 = vdwg.mxu0
        %v1982 = vsel %vm827, %v1974, -inf
        %1983 = vmax.xlane.f32.xlu0 %v1982
        %v1984 = vpop.xlane.xlu0 %1983
        %v1985 = vsel %vm827, %v1979, -inf
        %1986 = vmax.xlane.f32.xlu0 %v1985
        %v1987 = vpop.xlane.xlu0 %1986
        %v1988 = vsub.f32 %v1974, %v1984
        %v1989 = vsub.f32 %v1979, %v1987
        %v1990 = vmul.f32 %v1988, 1.442695
        %v1991 = vpow.pop %v1990
        %v1992 = vmul.f32 %v1989, 1.442695
        %v1993 = vpow.pop %v1992
        %v1994 = vsel %vm827, %v1991, 0.0
        %1995 = vadd.xlane.f32.xlu0 %v1994
        %v1996 = vpop.xlane.xlu0 %1995
        %v1997 = vsel %vm827, %v1993, 0.0
        %1998 = vadd.xlane.f32.xlu0 %v1997
        %v1999 = vpop.xlane.xlu0 %1998
        %v2000 = vrcp.pop %v1996
        %v2001 = vrcp.pop %v1999
        %v2002 = vmul.f32 %v1991, %v2000
        %v2003 = vmul.f32 %v1993, %v2001
        %v2005 = vsel %vm827, %v2002, 0
        %v2008 = vsel %vm827, %v2003, 0
        %2010 = vmatprep.subr.mxu0 0.0
        %2011 = vmatpush1.msra.mxu0 %v1899
        %2012 = vmatprep.subr.mxu0 0.0
        %2013 = vmatpush1.msra.mxu0 %v1900
        %2014 = vmatprep.subr.mxu0 0.0
        %2015 = vmatpush1.msra.mxu0 0.0
        %2016 = vmatprep.subr.mxu0 0.0
        %2017 = vmatpush1.msra.mxu0 0.0
        %2018 = vmatprep.subr.mxu0 0.0
        %2019 = vmatpush1.msra.mxu0 0.0
        %2020 = vmatprep.subr.mxu0 0.0
        %2021 = vmatpush1.msra.mxu0 0.0
        %2022 = vmatprep.subr.mxu0 0.0
        %2023 = vmatpush1.msra.mxu0 0.0
        %2024 = vmatprep.subr.mxu0 0.0
        %2025 = vmatpush1.msra.mxu0 0.0
        %2026 = vmatprep.subr.mxu0 0.0
        %2027 = vmatpush1.msra.mxu0 0.0
        %2028 = vmatprep.subr.mxu0 0.0
        %2029 = vmatpush1.msra.mxu0 0.0
        %2030 = vmatprep.subr.mxu0 0.0
        %2031 = vmatpush1.msra.mxu0 0.0
        %2032 = vmatprep.subr.mxu0 0.0
        %2033 = vmatpush1.msra.mxu0 0.0
        %2034 = vmatprep.subr.mxu0 0.0
        %2035 = vmatpush1.msra.mxu0 0.0
        %2036 = vmatprep.subr.mxu0 0.0
        %2037 = vmatpush1.msra.mxu0 0.0
        %2038 = vmatprep.subr.mxu0 0.0
        %2039 = vmatpush1.msra.mxu0 0.0
        %2040 = vmatprep.subr.mxu0 0.0
        %2041 = vmatpush1.msra.mxu0 0.0
        %2042 = vmatprep.subr.mxu0 0.0
        %2043 = vmatpush1.msra.mxu0 0.0
        %2044 = vmatprep.subr.mxu0 0.0
        %2045 = vmatpush1.msra.mxu0 0.0
        %2046 = vmatprep.subr.mxu0 0.0
        %2047 = vmatpush1.msra.mxu0 0.0
        %2048 = vmatprep.subr.mxu0 0.0
        %2049 = vmatpush1.msra.mxu0 0.0
        %2050 = vmatprep.subr.mxu0 0.0
        %2051 = vmatpush1.msra.mxu0 0.0
        %2052 = vmatprep.subr.mxu0 0.0
        %2053 = vmatpush1.msra.mxu0 0.0
        %2054 = vmatprep.subr.mxu0 0.0
        %2055 = vmatpush1.msra.mxu0 0.0
        %2056 = vmatprep.subr.mxu0 0.0
        %2057 = vmatpush1.msra.mxu0 0.0
        %2058 = vmatprep.subr.mxu0 0.0
        %2059 = vmatpush1.msra.mxu0 0.0
        %2060 = vmatprep.subr.mxu0 0.0
        %2061 = vmatpush1.msra.mxu0 0.0
        %2062 = vmatprep.subr.mxu0 0.0
        %2063 = vmatpush1.msra.mxu0 0.0
        %2064 = vmatprep.subr.mxu0 0.0
        %2065 = vmatpush1.msra.mxu0 0.0
        %2066 = vmatprep.subr.mxu0 0.0
        %2067 = vmatpush1.msra.mxu0 0.0
        %2068 = vmatprep.subr.mxu0 0.0
        %2069 = vmatpush1.msra.mxu0 0.0
        %2070 = vmatprep.subr.mxu0 0.0
        %2071 = vmatpush1.msra.mxu0 0.0
        %2072 = vmatprep.subr.mxu0 0.0
        %2073 = vmatpush1.msra.mxu0 0.0
        %2074 = vmatprep.mubr.f32.mxu0 0.0
        %2075 = vmatmul.mubr.f32.gmra.mrb[0].mxu0 %v2005
        %v2076 = vpop.f32.mrb[0].mxu0
        %v2077 = vadd.f32 0.0, %v2076
        %v2078 = vpop.f32.mrb[0].mxu0
        %2079 = vmatprep.mubr.f32.mxu0 0.0
        %2080 = vmatmul.mubr.f32.gmra.mrb[0].mxu0 %v2008
        %v2081 = vpop.f32.mrb[0].mxu0
        %v2082 = vadd.f32 0.0, %v2081
        %v2083 = vpop.f32.mrb[0].mxu0
        %2084 = vdwg.mxu0
        %v2085 = vadd.f32 %v1892, %v2077
        %v2086 = vadd.f32 %v1893, %v2082
        %vm2087 = vcmp.ge.s32.totalorder %v621, 28
        %vm2088 = vcmp.lt.s32.totalorder %v621, 32
        %vm2089 = vmand %vm2087, %vm2088
        %v2090 = vsel %vm2089, %v727, 0.0
        %v2091 = vsel %vm2089, %v729, 0.0
        %v2092 = vsel %vm2089, %v735, 0.0
        %v2093 = vsel %vm2089, %v737, 0.0
        %v2095 = vsel %vm566, %v2090, 0
        %v2098 = vsel %vm566, %v2091, 0
        %2100 = vmatprep.subr.mxu0 0.0
        %2101 = vmatpush1.xpose.msra.mxu0 %v2095
        %2102 = vmatprep.subr.mxu0 0.0
        %2103 = vmatpush1.xpose.msra.mxu0 %v2098
        %2104 = vmatprep.subr.mxu0 0.0
        %2105 = vmatpush1.xpose.msra.mxu0 0.0
        %2106 = vmatprep.subr.mxu0 0.0
        %2107 = vmatpush1.xpose.msra.mxu0 0.0
        %2108 = vmatprep.subr.mxu0 0.0
        %2109 = vmatpush1.xpose.msra.mxu0 0.0
        %2110 = vmatprep.subr.mxu0 0.0
        %2111 = vmatpush1.xpose.msra.mxu0 0.0
        %2112 = vmatprep.subr.mxu0 0.0
        %2113 = vmatpush1.xpose.msra.mxu0 0.0
        %2114 = vmatprep.subr.mxu0 0.0
        %2115 = vmatpush1.xpose.msra.mxu0 0.0
        %2116 = vmatprep.subr.mxu0 0.0
        %2117 = vmatpush1.xpose.msra.mxu0 0.0
        %2118 = vmatprep.subr.mxu0 0.0
        %2119 = vmatpush1.xpose.msra.mxu0 0.0
        %2120 = vmatprep.subr.mxu0 0.0
        %2121 = vmatpush1.xpose.msra.mxu0 0.0
        %2122 = vmatprep.subr.mxu0 0.0
        %2123 = vmatpush1.xpose.msra.mxu0 0.0
        %2124 = vmatprep.subr.mxu0 0.0
        %2125 = vmatpush1.xpose.msra.mxu0 0.0
        %2126 = vmatprep.subr.mxu0 0.0
        %2127 = vmatpush1.xpose.msra.mxu0 0.0
        %2128 = vmatprep.subr.mxu0 0.0
        %2129 = vmatpush1.xpose.msra.mxu0 0.0
        %2130 = vmatprep.subr.mxu0 0.0
        %2131 = vmatpush1.xpose.msra.mxu0 0.0
        %2132 = vmatprep.subr.mxu0 0.0
        %2133 = vmatpush1.xpose.msra.mxu0 0.0
        %2134 = vmatprep.subr.mxu0 0.0
        %2135 = vmatpush1.xpose.msra.mxu0 0.0
        %2136 = vmatprep.subr.mxu0 0.0
        %2137 = vmatpush1.xpose.msra.mxu0 0.0
        %2138 = vmatprep.subr.mxu0 0.0
        %2139 = vmatpush1.xpose.msra.mxu0 0.0
        %2140 = vmatprep.subr.mxu0 0.0
        %2141 = vmatpush1.xpose.msra.mxu0 0.0
        %2142 = vmatprep.subr.mxu0 0.0
        %2143 = vmatpush1.xpose.msra.mxu0 0.0
        %2144 = vmatprep.subr.mxu0 0.0
        %2145 = vmatpush1.xpose.msra.mxu0 0.0
        %2146 = vmatprep.subr.mxu0 0.0
        %2147 = vmatpush1.xpose.msra.mxu0 0.0
        %2148 = vmatprep.subr.mxu0 0.0
        %2149 = vmatpush1.xpose.msra.mxu0 0.0
        %2150 = vmatprep.subr.mxu0 0.0
        %2151 = vmatpush1.xpose.msra.mxu0 0.0
        %2152 = vmatprep.subr.mxu0 0.0
        %2153 = vmatpush1.xpose.msra.mxu0 0.0
        %2154 = vmatprep.subr.mxu0 0.0
        %2155 = vmatpush1.xpose.msra.mxu0 0.0
        %2156 = vmatprep.subr.mxu0 0.0
        %2157 = vmatpush1.xpose.msra.mxu0 0.0
        %2158 = vmatprep.subr.mxu0 0.0
        %2159 = vmatpush1.xpose.msra.mxu0 0.0
        %2160 = vmatprep.subr.mxu0 0.0
        %2161 = vmatpush1.xpose.msra.mxu0 0.0
        %2162 = vmatprep.subr.mxu0 0.0
        %2163 = vmatpush1.xpose.msra.mxu0 0.0
        %2164 = vmatprep.mubr.f32.mxu0 0.0
        %2165 = vmatmul.mubr.f32.gmra.mrb[0].mxu0 %v742
        %v2166 = vpop.f32.mrb[0].mxu0
        %v2167 = vadd.f32 %v623, %v2166
        %v2168 = vpop.f32.mrb[0].mxu0
        %2169 = vmatprep.mubr.f32.mxu0 0.0
        %2170 = vmatmul.mubr.f32.gmra.mrb[0].mxu0 %v744
        %v2171 = vpop.f32.mrb[0].mxu0
        %v2172 = vadd.f32 %v623, %v2171
        %v2173 = vpop.f32.mrb[0].mxu0
        %2174 = vdwg.mxu0
        %v2175 = vsel %vm827, %v2167, -inf
        %2176 = vmax.xlane.f32.xlu0 %v2175
        %v2177 = vpop.xlane.xlu0 %2176
        %v2178 = vsel %vm827, %v2172, -inf
        %2179 = vmax.xlane.f32.xlu0 %v2178
        %v2180 = vpop.xlane.xlu0 %2179
        %v2181 = vsub.f32 %v2167, %v2177
        %v2182 = vsub.f32 %v2172, %v2180
        %v2183 = vmul.f32 %v2181, 1.442695
        %v2184 = vpow.pop %v2183
        %v2185 = vmul.f32 %v2182, 1.442695
        %v2186 = vpow.pop %v2185
        %v2187 = vsel %vm827, %v2184, 0.0
        %2188 = vadd.xlane.f32.xlu0 %v2187
        %v2189 = vpop.xlane.xlu0 %2188
        %v2190 = vsel %vm827, %v2186, 0.0
        %2191 = vadd.xlane.f32.xlu0 %v2190
        %v2192 = vpop.xlane.xlu0 %2191
        %v2193 = vrcp.pop %v2189
        %v2194 = vrcp.pop %v2192
        %v2195 = vmul.f32 %v2184, %v2193
        %v2196 = vmul.f32 %v2186, %v2194
        %v2198 = vsel %vm827, %v2195, 0
        %v2201 = vsel %vm827, %v2196, 0
        %2203 = vmatprep.subr.mxu0 0.0
        %2204 = vmatpush1.msra.mxu0 %v2092
        %2205 = vmatprep.subr.mxu0 0.0
        %2206 = vmatpush1.msra.mxu0 %v2093
        %2207 = vmatprep.subr.mxu0 0.0
        %2208 = vmatpush1.msra.mxu0 0.0
        %2209 = vmatprep.subr.mxu0 0.0
        %2210 = vmatpush1.msra.mxu0 0.0
        %2211 = vmatprep.subr.mxu0 0.0
        %2212 = vmatpush1.msra.mxu0 0.0
        %2213 = vmatprep.subr.mxu0 0.0
        %2214 = vmatpush1.msra.mxu0 0.0
        %2215 = vmatprep.subr.mxu0 0.0
        %2216 = vmatpush1.msra.mxu0 0.0
        %2217 = vmatprep.subr.mxu0 0.0
        %2218 = vmatpush1.msra.mxu0 0.0
        %2219 = vmatprep.subr.mxu0 0.0
        %2220 = vmatpush1.msra.mxu0 0.0
        %2221 = vmatprep.subr.mxu0 0.0
        %2222 = vmatpush1.msra.mxu0 0.0
        %2223 = vmatprep.subr.mxu0 0.0
        %2224 = vmatpush1.msra.mxu0 0.0
        %2225 = vmatprep.subr.mxu0 0.0
        %2226 = vmatpush1.msra.mxu0 0.0
        %2227 = vmatprep.subr.mxu0 0.0
        %2228 = vmatpush1.msra.mxu0 0.0
        %2229 = vmatprep.subr.mxu0 0.0
        %2230 = vmatpush1.msra.mxu0 0.0
        %2231 = vmatprep.subr.mxu0 0.0
        %2232 = vmatpush1.msra.mxu0 0.0
        %2233 = vmatprep.subr.mxu0 0.0
        %2234 = vmatpush1.msra.mxu0 0.0
        %2235 = vmatprep.subr.mxu0 0.0
        %2236 = vmatpush1.msra.mxu0 0.0
        %2237 = vmatprep.subr.mxu0 0.0
        %2238 = vmatpush1.msra.mxu0 0.0
        %2239 = vmatprep.subr.mxu0 0.0
        %2240 = vmatpush1.msra.mxu0 0.0
        %2241 = vmatprep.subr.mxu0 0.0
        %2242 = vmatpush1.msra.mxu0 0.0
        %2243 = vmatprep.subr.mxu0 0.0
        %2244 = vmatpush1.msra.mxu0 0.0
        %2245 = vmatprep.subr.mxu0 0.0
        %2246 = vmatpush1.msra.mxu0 0.0
        %2247 = vmatprep.subr.mxu0 0.0
        %2248 = vmatpush1.msra.mxu0 0.0
        %2249 = vmatprep.subr.mxu0 0.0
        %2250 = vmatpush1.msra.mxu0 0.0
        %2251 = vmatprep.subr.mxu0 0.0
        %2252 = vmatpush1.msra.mxu0 0.0
        %2253 = vmatprep.subr.mxu0 0.0
        %2254 = vmatpush1.msra.mxu0 0.0
        %2255 = vmatprep.subr.mxu0 0.0
        %2256 = vmatpush1.msra.mxu0 0.0
        %2257 = vmatprep.subr.mxu0 0.0
        %2258 = vmatpush1.msra.mxu0 0.0
        %2259 = vmatprep.subr.mxu0 0.0
        %2260 = vmatpush1.msra.mxu0 0.0
        %2261 = vmatprep.subr.mxu0 0.0
        %2262 = vmatpush1.msra.mxu0 0.0
        %2263 = vmatprep.subr.mxu0 0.0
        %2264 = vmatpush1.msra.mxu0 0.0
        %2265 = vmatprep.subr.mxu0 0.0
        %2266 = vmatpush1.msra.mxu0 0.0
        %2267 = vmatprep.mubr.f32.mxu0 0.0
        %2268 = vmatmul.mubr.f32.gmra.mrb[0].mxu0 %v2198
        %v2269 = vpop.f32.mrb[0].mxu0
        %v2270 = vadd.f32 0.0, %v2269
        %v2271 = vpop.f32.mrb[0].mxu0
        %2272 = vmatprep.mubr.f32.mxu0 0.0
        %2273 = vmatmul.mubr.f32.gmra.mrb[0].mxu0 %v2201
        %v2274 = vpop.f32.mrb[0].mxu0
        %v2275 = vadd.f32 0.0, %v2274
        %v2276 = vpop.f32.mrb[0].mxu0
        %2277 = vdwg.mxu0
        %v2278 = vadd.f32 %v2085, %v2270
        %v2279 = vadd.f32 %v2086, %v2275
        %v2280 = vld [vmem:[%s6] sm:$0xff]
        %v2281 = vld [vmem:[%s6 + $0x8] sm:$0xff]
        %v2282 = vld [vmem:[%s6 + $0x10] sm:$0xff]
        %v2283 = vld [vmem:[%s6 + $0x18] sm:$0xff]
        %v2284 = vld [vmem:[%s7] sm:$0x1]
        %v2286 = vlaneseq
        %v2287 = vshrl.u32 %v2286, 7
        %v2288 = vsub.s32 0, %v2287
        %v2289 = vrot.slane %v2284, %v2288
        %v2292 = vsel %vm566, %v2278, 0
        %v2295 = vsel %vm566, %v2279, 0
        %2297 = vmatprep.subr.mxu0 0.0
        %2298 = vmatpush1.msra.mxu0 %v2280
        %2299 = vmatprep.subr.mxu0 0.0
        %2300 = vmatpush1.msra.mxu0 %v2281
        %2301 = vmatprep.subr.mxu0 0.0
        %2302 = vmatpush1.msra.mxu0 %v2282
        %2303 = vmatprep.subr.mxu0 0.0
        %2304 = vmatpush1.msra.mxu0 %v2283
        %2305 = vmatprep.subr.mxu0 0.0
        %2306 = vmatpush1.msra.mxu0 0.0
        %2307 = vmatprep.subr.mxu0 0.0
        %2308 = vmatpush1.msra.mxu0 0.0
        %2309 = vmatprep.subr.mxu0 0.0
        %2310 = vmatpush1.msra.mxu0 0.0
        %2311 = vmatprep.subr.mxu0 0.0
        %2312 = vmatpush1.msra.mxu0 0.0
        %2313 = vmatprep.subr.mxu0 0.0
        %2314 = vmatpush1.msra.mxu0 0.0
        %2315 = vmatprep.subr.mxu0 0.0
        %2316 = vmatpush1.msra.mxu0 0.0
        %2317 = vmatprep.subr.mxu0 0.0
        %2318 = vmatpush1.msra.mxu0 0.0
        %2319 = vmatprep.subr.mxu0 0.0
        %2320 = vmatpush1.msra.mxu0 0.0
        %2321 = vmatprep.subr.mxu0 0.0
        %2322 = vmatpush1.msra.mxu0 0.0
        %2323 = vmatprep.subr.mxu0 0.0
        %2324 = vmatpush1.msra.mxu0 0.0
        %2325 = vmatprep.subr.mxu0 0.0
        %2326 = vmatpush1.msra.mxu0 0.0
        %2327 = vmatprep.subr.mxu0 0.0
        %2328 = vmatpush1.msra.mxu0 0.0
        %2329 = vmatprep.subr.mxu0 0.0
        %2330 = vmatpush1.msra.mxu0 0.0
        %2331 = vmatprep.subr.mxu0 0.0
        %2332 = vmatpush1.msra.mxu0 0.0
        %2333 = vmatprep.subr.mxu0 0.0
        %2334 = vmatpush1.msra.mxu0 0.0
        %2335 = vmatprep.subr.mxu0 0.0
        %2336 = vmatpush1.msra.mxu0 0.0
        %2337 = vmatprep.subr.mxu0 0.0
        %2338 = vmatpush1.msra.mxu0 0.0
        %2339 = vmatprep.subr.mxu0 0.0
        %2340 = vmatpush1.msra.mxu0 0.0
        %2341 = vmatprep.subr.mxu0 0.0
        %2342 = vmatpush1.msra.mxu0 0.0
        %2343 = vmatprep.subr.mxu0 0.0
        %2344 = vmatpush1.msra.mxu0 0.0
        %2345 = vmatprep.subr.mxu0 0.0
        %2346 = vmatpush1.msra.mxu0 0.0
        %2347 = vmatprep.subr.mxu0 0.0
        %2348 = vmatpush1.msra.mxu0 0.0
        %2349 = vmatprep.subr.mxu0 0.0
        %2350 = vmatpush1.msra.mxu0 0.0
        %2351 = vmatprep.subr.mxu0 0.0
        %2352 = vmatpush1.msra.mxu0 0.0
        %2353 = vmatprep.subr.mxu0 0.0
        %2354 = vmatpush1.msra.mxu0 0.0
        %2355 = vmatprep.subr.mxu0 0.0
        %2356 = vmatpush1.msra.mxu0 0.0
        %2357 = vmatprep.subr.mxu0 0.0
        %2358 = vmatpush1.msra.mxu0 0.0
        %2359 = vmatprep.subr.mxu0 0.0
        %2360 = vmatpush1.msra.mxu0 0.0
        %2361 = vmatprep.mubr.f32.mxu0 0.0
        %2362 = vmatmul.mubr.f32.gmra.mrb[0].mxu0 %v2292
        %v2363 = vpop.f32.mrb[0].mxu0
        %v2364 = vadd.f32 %v2289, %v2363
        %v2365 = vpop.f32.mrb[0].mxu0
        %2366 = vmatprep.mubr.f32.mxu0 0.0
        %2367 = vmatmul.mubr.f32.gmra.mrb[0].mxu0 %v2295
        %v2368 = vpop.f32.mrb[0].mxu0
        %v2369 = vadd.f32 %v2289, %v2368
        %v2370 = vpop.f32.mrb[0].mxu0
        %2371 = vdwg.mxu0
        %v2372 = vadd.f32 %v618, %v2364
        %v2373 = vadd.f32 %v619, %v2369
        %v2374 = vld [vmem:[%s8] sm:$0x1]
        %v2375 = vld [vmem:[%s9] sm:$0x1]
        %v2376 = vsel %vm566, %v2372, 0.0
        %2377 = vadd.xlane.f32.xlu0 %v2376
        %v2378 = vpop.xlane.xlu0 %2377
        %v2379 = vsel %vm566, %v2373, 0.0
        %2380 = vadd.xlane.f32.xlu0 %v2379
        %v2381 = vpop.xlane.xlu0 %2380
        %v2382 = vmul.f32 %v2378, %v583
        %v2383 = vmul.f32 %v2381, %v583
        %v2384 = vsub.f32 %v2372, %v2382
        %v2385 = vsub.f32 %v2373, %v2383
        %v2386 = vmul.f32 %v2384, %v2384
        %v2387 = vmul.f32 %v2385, %v2385
        %v2388 = vsel %vm566, %v2386, 0.0
        %2389 = vadd.xlane.f32.xlu0 %v2388
        %v2390 = vpop.xlane.xlu0 %2389
        %v2391 = vsel %vm566, %v2387, 0.0
        %2392 = vadd.xlane.f32.xlu0 %v2391
        %v2393 = vpop.xlane.xlu0 %2392
        %v2394 = vmul.f32 %v2390, %v583
        %v2395 = vmul.f32 %v2393, %v583
        %v2396 = vadd.f32 %v2394, 1e-05
        %v2397 = vadd.f32 %v2395, 1e-05
        %v2398 = vrsqrt.pop %v2396
        %v2399 = vrsqrt.pop %v2397
        %v2400 = vmul.f32 %v2384, %v2398
        %v2401 = vmul.f32 %v2385, %v2399
        %v2403 = vlaneseq
        %v2404 = vshrl.u32 %v2403, 7
        %v2405 = vsub.s32 0, %v2404
        %v2406 = vrot.slane %v2374, %v2405
        %v2408 = vmul.f32 %v2400, %v2406
        %v2409 = vmul.f32 %v2401, %v2406
        %v2411 = vlaneseq
        %v2412 = vshrl.u32 %v2411, 7
        %v2413 = vsub.s32 0, %v2412
        %v2414 = vrot.slane %v2375, %v2413
        %v2416 = vadd.f32 %v2408, %v2414
        %v2417 = vadd.f32 %v2409, %v2414
        %v2418 = vld [vmem:[%s10] sm:$0xff]
        %v2419 = vld [vmem:[%s10 + $0x8] sm:$0xff]
        %v2420 = vld [vmem:[%s10 + $0x10] sm:$0xff]
        %v2421 = vld [vmem:[%s10 + $0x18] sm:$0xff]
        %v2422 = vld [vmem:[%s11] sm:$0x1]
        %v2424 = vlaneseq
        %v2425 = vshrl.u32 %v2424, 7
        %v2426 = vsub.s32 0, %v2425
        %v2427 = vrot.slane %v2422, %v2426
        %v2430 = vsel %vm566, %v2416, 0
        %v2433 = vsel %vm566, %v2417, 0
        %2435 = vmatprep.subr.mxu0 0.0
        %2436 = vmatpush1.msra.mxu0 %v2418
        %2437 = vmatprep.subr.mxu0 0.0
        %2438 = vmatpush1.msra.mxu0 %v2419
        %2439 = vmatprep.subr.mxu0 0.0
        %2440 = vmatpush1.msra.mxu0 %v2420
        %2441 = vmatprep.subr.mxu0 0.0
        %2442 = vmatpush1.msra.mxu0 %v2421
        %2443 = vmatprep.subr.mxu0 0.0
        %2444 = vmatpush1.msra.mxu0 0.0
        %2445 = vmatprep.subr.mxu0 0.0
        %2446 = vmatpush1.msra.mxu0 0.0
        %2447 = vmatprep.subr.mxu0 0.0
        %2448 = vmatpush1.msra.mxu0 0.0
        %2449 = vmatprep.subr.mxu0 0.0
        %2450 = vmatpush1.msra.mxu0 0.0
        %2451 = vmatprep.subr.mxu0 0.0
        %2452 = vmatpush1.msra.mxu0 0.0
        %2453 = vmatprep.subr.mxu0 0.0
        %2454 = vmatpush1.msra.mxu0 0.0
        %2455 = vmatprep.subr.mxu0 0.0
        %2456 = vmatpush1.msra.mxu0 0.0
        %2457 = vmatprep.subr.mxu0 0.0
        %2458 = vmatpush1.msra.mxu0 0.0
        %2459 = vmatprep.subr.mxu0 0.0
        %2460 = vmatpush1.msra.mxu0 0.0
        %2461 = vmatprep.subr.mxu0 0.0
        %2462 = vmatpush1.msra.mxu0 0.0
        %2463 = vmatprep.subr.mxu0 0.0
        %2464 = vmatpush1.msra.mxu0 0.0
        %2465 = vmatprep.subr.mxu0 0.0
        %2466 = vmatpush1.msra.mxu0 0.0
        %2467 = vmatprep.subr.mxu0 0.0
        %2468 = vmatpush1.msra.mxu0 0.0
        %2469 = vmatprep.subr.mxu0 0.0
        %2470 = vmatpush1.msra.mxu0 0.0
        %2471 = vmatprep.subr.mxu0 0.0
        %2472 = vmatpush1.msra.mxu0 0.0
        %2473 = vmatprep.subr.mxu0 0.0
        %2474 = vmatpush1.msra.mxu0 0.0
        %2475 = vmatprep.subr.mxu0 0.0
        %2476 = vmatpush1.msra.mxu0 0.0
        %2477 = vmatprep.subr.mxu0 0.0
        %2478 = vmatpush1.msra.mxu0 0.0
        %2479 = vmatprep.subr.mxu0 0.0
        %2480 = vmatpush1.msra.mxu0 0.0
        %2481 = vmatprep.subr.mxu0 0.0
        %2482 = vmatpush1.msra.mxu0 0.0
        %2483 = vmatprep.subr.mxu0 0.0
        %2484 = vmatpush1.msra.mxu0 0.0
        %2485 = vmatprep.subr.mxu0 0.0
        %2486 = vmatpush1.msra.mxu0 0.0
        %2487 = vmatprep.subr.mxu0 0.0
        %2488 = vmatpush1.msra.mxu0 0.0
        %2489 = vmatprep.subr.mxu0 0.0
        %2490 = vmatpush1.msra.mxu0 0.0
        %2491 = vmatprep.subr.mxu0 0.0
        %2492 = vmatpush1.msra.mxu0 0.0
        %2493 = vmatprep.subr.mxu0 0.0
        %2494 = vmatpush1.msra.mxu0 0.0
        %2495 = vmatprep.subr.mxu0 0.0
        %2496 = vmatpush1.msra.mxu0 0.0
        %2497 = vmatprep.subr.mxu0 0.0
        %2498 = vmatpush1.msra.mxu0 0.0
        %2499 = vmatprep.mubr.f32.mxu0 0.0
        %2500 = vmatmul.mubr.f32.gmra.mrb[0].mxu0 %v2430
        %v2501 = vpop.f32.mrb[0].mxu0
        %v2502 = vadd.f32 %v2427, %v2501
        %v2503 = vpop.f32.mrb[0].mxu0
        %2504 = vmatprep.mubr.f32.mxu0 0.0
        %2505 = vmatmul.mubr.f32.gmra.mrb[0].mxu0 %v2433
        %v2506 = vpop.f32.mrb[0].mxu0
        %v2507 = vadd.f32 %v2427, %v2506
        %v2508 = vpop.f32.mrb[0].mxu0
        %2509 = vdwg.mxu0
        %v2510 = vmax.f32 %v2502, 0.0
        %v2511 = vmax.f32 %v2507, 0.0
        %v2512 = vld [vmem:[%s12] sm:$0xff]
        %v2513 = vld [vmem:[%s12 + $0x8] sm:$0xff]
        %v2514 = vld [vmem:[%s12 + $0x10] sm:$0xff]
        %v2515 = vld [vmem:[%s12 + $0x18] sm:$0xff]
        %v2516 = vld [vmem:[%s12 + $0x20] sm:$0xff]
        %v2517 = vld [vmem:[%s12 + $0x28] sm:$0xff]
        %v2518 = vld [vmem:[%s12 + $0x30] sm:$0xff]
        %v2519 = vld [vmem:[%s12 + $0x38] sm:$0xff]
        %v2520 = vld [vmem:[%s13] sm:$0x1]
        %v2522 = vlaneseq
        %v2523 = vshrl.u32 %v2522, 7
        %v2524 = vsub.s32 0, %v2523
        %v2525 = vrot.slane %v2520, %v2524
        %vm2527 = vcmask 523264
        %v2529 = vsel %vm2527, %v2510, 0
        %v2532 = vsel %vm2527, %v2511, 0
        %2534 = vmatprep.subr.mxu0 0.0
        %2535 = vmatpush1.msra.mxu0 %v2512
        %2536 = vmatprep.subr.mxu0 0.0
        %2537 = vmatpush1.msra.mxu0 %v2513
        %2538 = vmatprep.subr.mxu0 0.0
        %2539 = vmatpush1.msra.mxu0 %v2514
        %2540 = vmatprep.subr.mxu0 0.0
        %2541 = vmatpush1.msra.mxu0 %v2515
        %2542 = vmatprep.subr.mxu0 0.0
        %2543 = vmatpush1.msra.mxu0 %v2516
        %2544 = vmatprep.subr.mxu0 0.0
        %2545 = vmatpush1.msra.mxu0 %v2517
        %2546 = vmatprep.subr.mxu0 0.0
        %2547 = vmatpush1.msra.mxu0 %v2518
        %2548 = vmatprep.subr.mxu0 0.0
        %2549 = vmatpush1.msra.mxu0 %v2519
        %2550 = vmatprep.subr.mxu0 0.0
        %2551 = vmatpush1.msra.mxu0 0.0
        %2552 = vmatprep.subr.mxu0 0.0
        %2553 = vmatpush1.msra.mxu0 0.0
        %2554 = vmatprep.subr.mxu0 0.0
        %2555 = vmatpush1.msra.mxu0 0.0
        %2556 = vmatprep.subr.mxu0 0.0
        %2557 = vmatpush1.msra.mxu0 0.0
        %2558 = vmatprep.subr.mxu0 0.0
        %2559 = vmatpush1.msra.mxu0 0.0
        %2560 = vmatprep.subr.mxu0 0.0
        %2561 = vmatpush1.msra.mxu0 0.0
        %2562 = vmatprep.subr.mxu0 0.0
        %2563 = vmatpush1.msra.mxu0 0.0
        %2564 = vmatprep.subr.mxu0 0.0
        %2565 = vmatpush1.msra.mxu0 0.0
        %2566 = vmatprep.subr.mxu0 0.0
        %2567 = vmatpush1.msra.mxu0 0.0
        %2568 = vmatprep.subr.mxu0 0.0
        %2569 = vmatpush1.msra.mxu0 0.0
        %2570 = vmatprep.subr.mxu0 0.0
        %2571 = vmatpush1.msra.mxu0 0.0
        %2572 = vmatprep.subr.mxu0 0.0
        %2573 = vmatpush1.msra.mxu0 0.0
        %2574 = vmatprep.subr.mxu0 0.0
        %2575 = vmatpush1.msra.mxu0 0.0
        %2576 = vmatprep.subr.mxu0 0.0
        %2577 = vmatpush1.msra.mxu0 0.0
        %2578 = vmatprep.subr.mxu0 0.0
        %2579 = vmatpush1.msra.mxu0 0.0
        %2580 = vmatprep.subr.mxu0 0.0
        %2581 = vmatpush1.msra.mxu0 0.0
        %2582 = vmatprep.subr.mxu0 0.0
        %2583 = vmatpush1.msra.mxu0 0.0
        %2584 = vmatprep.subr.mxu0 0.0
        %2585 = vmatpush1.msra.mxu0 0.0
        %2586 = vmatprep.subr.mxu0 0.0
        %2587 = vmatpush1.msra.mxu0 0.0
        %2588 = vmatprep.subr.mxu0 0.0
        %2589 = vmatpush1.msra.mxu0 0.0
        %2590 = vmatprep.subr.mxu0 0.0
        %2591 = vmatpush1.msra.mxu0 0.0
        %2592 = vmatprep.subr.mxu0 0.0
        %2593 = vmatpush1.msra.mxu0 0.0
        %2594 = vmatprep.subr.mxu0 0.0
        %2595 = vmatpush1.msra.mxu0 0.0
        %2596 = vmatprep.subr.mxu0 0.0
        %2597 = vmatpush1.msra.mxu0 0.0
        %2598 = vmatprep.mubr.f32.mxu0 0.0
        %2599 = vmatmul.mubr.f32.gmra.mrb[0].mxu0 %v2529
        %v2600 = vpop.f32.mrb[0].mxu0
        %v2601 = vadd.f32 %v2525, %v2600
        %v2602 = vpop.f32.mrb[0].mxu0
        %2603 = vmatprep.mubr.f32.mxu0 0.0
        %2604 = vmatmul.mubr.f32.gmra.mrb[0].mxu0 %v2532
        %v2605 = vpop.f32.mrb[0].mxu0
        %v2606 = vadd.f32 %v2525, %v2605
        %v2607 = vpop.f32.mrb[0].mxu0
        %2608 = vdwg.mxu0
        %v2609 = vadd.f32 %v2416, %v2601
        %v2610 = vadd.f32 %v2417, %v2606
        %v2611 = vld [vmem:[%s14] sm:$0x1]
        %v2612 = vld [vmem:[%s15] sm:$0x1]
        %v2613 = vsel %vm566, %v2609, 0.0
        %2614 = vadd.xlane.f32.xlu0 %v2613
        %v2615 = vpop.xlane.xlu0 %2614
        %v2616 = vsel %vm566, %v2610, 0.0
        %2617 = vadd.xlane.f32.xlu0 %v2616
        %v2618 = vpop.xlane.xlu0 %2617
        %v2619 = vmul.f32 %v2615, %v583
        %v2620 = vmul.f32 %v2618, %v583
        %v2621 = vsub.f32 %v2609, %v2619
        %v2622 = vsub.f32 %v2610, %v2620
        %v2623 = vmul.f32 %v2621, %v2621
        %v2624 = vmul.f32 %v2622, %v2622
        %v2625 = vsel %vm566, %v2623, 0.0
        %2626 = vadd.xlane.f32.xlu0 %v2625
        %v2627 = vpop.xlane.xlu0 %2626
        %v2628 = vsel %vm566, %v2624, 0.0
        %2629 = vadd.xlane.f32.xlu0 %v2628
        %v2630 = vpop.xlane.xlu0 %2629
        %v2631 = vmul.f32 %v2627, %v583
        %v2632 = vmul.f32 %v2630, %v583
        %v2633 = vadd.f32 %v2631, 1e-05
        %v2634 = vadd.f32 %v2632, 1e-05
        %v2635 = vrsqrt.pop %v2633
        %v2636 = vrsqrt.pop %v2634
        %v2637 = vmul.f32 %v2621, %v2635
        %v2638 = vmul.f32 %v2622, %v2636
        %v2640 = vlaneseq
        %v2641 = vshrl.u32 %v2640, 7
        %v2642 = vsub.s32 0, %v2641
        %v2643 = vrot.slane %v2611, %v2642
        %v2645 = vmul.f32 %v2637, %v2643
        %v2646 = vmul.f32 %v2638, %v2643
        %v2648 = vlaneseq
        %v2649 = vshrl.u32 %v2648, 7
        %v2650 = vsub.s32 0, %v2649
        %v2651 = vrot.slane %v2612, %v2650
        %v2653 = vadd.f32 %v2645, %v2651
        %v2654 = vadd.f32 %v2646, %v2651
        %s2655 = scalar_lea.vmem %s4, 32
        %v2656 = vld [vmem:[%s2655] sm:$0xff]
        %v2657 = vld [vmem:[%s2655 + $0x8] sm:$0xff]
        %v2658 = vld [vmem:[%s2655 + $0x10] sm:$0xff]
        %v2659 = vld [vmem:[%s2655 + $0x18] sm:$0xff]
        %s2660 = scalar_lea.vmem %s5, 1
        %v2661 = vld [vmem:[%s2660] sm:$0x1]
        %v2663 = vlaneseq
        %v2664 = vshrl.u32 %v2663, 7
        %v2665 = vsub.s32 0, %v2664
        %v2666 = vrot.slane %v2661, %v2665
        %v2669 = vsel %vm566, %v2653, 0
        %v2672 = vsel %vm566, %v2654, 0
        %2674 = vmatprep.subr.mxu0 0.0
        %2675 = vmatpush1.msra.mxu0 %v2656
        %2676 = vmatprep.subr.mxu0 0.0
        %2677 = vmatpush1.msra.mxu0 %v2657
        %2678 = vmatprep.subr.mxu0 0.0
        %2679 = vmatpush1.msra.mxu0 %v2658
        %2680 = vmatprep.subr.mxu0 0.0
        %2681 = vmatpush1.msra.mxu0 %v2659
        %2682 = vmatprep.subr.mxu0 0.0
        %2683 = vmatpush1.msra.mxu0 0.0
        %2684 = vmatprep.subr.mxu0 0.0
        %2685 = vmatpush1.msra.mxu0 0.0
        %2686 = vmatprep.subr.mxu0 0.0
        %2687 = vmatpush1.msra.mxu0 0.0
        %2688 = vmatprep.subr.mxu0 0.0
        %2689 = vmatpush1.msra.mxu0 0.0
        %2690 = vmatprep.subr.mxu0 0.0
        %2691 = vmatpush1.msra.mxu0 0.0
        %2692 = vmatprep.subr.mxu0 0.0
        %2693 = vmatpush1.msra.mxu0 0.0
        %2694 = vmatprep.subr.mxu0 0.0
        %2695 = vmatpush1.msra.mxu0 0.0
        %2696 = vmatprep.subr.mxu0 0.0
        %2697 = vmatpush1.msra.mxu0 0.0
        %2698 = vmatprep.subr.mxu0 0.0
        %2699 = vmatpush1.msra.mxu0 0.0
        %2700 = vmatprep.subr.mxu0 0.0
        %2701 = vmatpush1.msra.mxu0 0.0
        %2702 = vmatprep.subr.mxu0 0.0
        %2703 = vmatpush1.msra.mxu0 0.0
        %2704 = vmatprep.subr.mxu0 0.0
        %2705 = vmatpush1.msra.mxu0 0.0
        %2706 = vmatprep.subr.mxu0 0.0
        %2707 = vmatpush1.msra.mxu0 0.0
        %2708 = vmatprep.subr.mxu0 0.0
        %2709 = vmatpush1.msra.mxu0 0.0
        %2710 = vmatprep.subr.mxu0 0.0
        %2711 = vmatpush1.msra.mxu0 0.0
        %2712 = vmatprep.subr.mxu0 0.0
        %2713 = vmatpush1.msra.mxu0 0.0
        %2714 = vmatprep.subr.mxu0 0.0
        %2715 = vmatpush1.msra.mxu0 0.0
        %2716 = vmatprep.subr.mxu0 0.0
        %2717 = vmatpush1.msra.mxu0 0.0
        %2718 = vmatprep.subr.mxu0 0.0
        %2719 = vmatpush1.msra.mxu0 0.0
        %2720 = vmatprep.subr.mxu0 0.0
        %2721 = vmatpush1.msra.mxu0 0.0
        %2722 = vmatprep.subr.mxu0 0.0
        %2723 = vmatpush1.msra.mxu0 0.0
        %2724 = vmatprep.subr.mxu0 0.0
        %2725 = vmatpush1.msra.mxu0 0.0
        %2726 = vmatprep.subr.mxu0 0.0
        %2727 = vmatpush1.msra.mxu0 0.0
        %2728 = vmatprep.subr.mxu0 0.0
        %2729 = vmatpush1.msra.mxu0 0.0
        %2730 = vmatprep.subr.mxu0 0.0
        %2731 = vmatpush1.msra.mxu0 0.0
        %2732 = vmatprep.subr.mxu0 0.0
        %2733 = vmatpush1.msra.mxu0 0.0
        %2734 = vmatprep.subr.mxu0 0.0
        %2735 = vmatpush1.msra.mxu0 0.0
        %2736 = vmatprep.subr.mxu0 0.0
        %2737 = vmatpush1.msra.mxu0 0.0
        %2738 = vmatprep.mubr.f32.mxu0 0.0
        %2739 = vmatmul.mubr.f32.gmra.mrb[0].mxu0 %v2669
        %v2740 = vpop.f32.mrb[0].mxu0
        %v2741 = vadd.f32 %v2666, %v2740
        %v2742 = vpop.f32.mrb[0].mxu0
        %2743 = vmatprep.mubr.f32.mxu0 0.0
        %2744 = vmatmul.mubr.f32.gmra.mrb[0].mxu0 %v2672
        %v2745 = vpop.f32.mrb[0].mxu0
        %v2746 = vadd.f32 %v2666, %v2745
        %v2747 = vpop.f32.mrb[0].mxu0
        %2748 = vdwg.mxu0
        %2749 = vst.msk [vmem:[#allocation3] sm:$0xff] %vm716, %v2741
        %2750 = vst.msk [vmem:[#allocation3 + $0x8] sm:$0xff] %vm716, %v2746
        %v2751 = vld [vmem:[#allocation3] sm:$0xff]
        %v2752 = vld [vmem:[#allocation3 + $0x8] sm:$0xff]
        %2755 = vrot.lane.b32.xlu0 %v2751, 96
        %v2756 = vpop.permute.xlu0 %2755
        %2757 = vrot.lane.b32.xlu0 %v2752, 96
        %v2758 = vpop.permute.xlu0 %2757
        %v2761 = vsel %vm723, %v2756, 0.0
        %v2762 = vsel %vm723, %v2758, 0.0
        %2763 = vrot.lane.b32.xlu0 %v2751, 64
        %v2764 = vpop.permute.xlu0 %2763
        %2765 = vrot.lane.b32.xlu0 %v2752, 64
        %v2766 = vpop.permute.xlu0 %2765
        %v2769 = vsel %vm723, %v2764, 0.0
        %v2770 = vsel %vm723, %v2766, 0.0
        %v2771 = vsel %vm566, %v2751, 0
        %v2773 = vsel %vm566, %v2752, 0
        %v2776 = vsel %vm566, %v2761, 0
        %v2779 = vsel %vm566, %v2762, 0
        %2781 = vmatprep.subr.mxu0 0.0
        %2782 = vmatpush1.xpose.msra.mxu0 %v2776
        %2783 = vmatprep.subr.mxu0 0.0
        %2784 = vmatpush1.xpose.msra.mxu0 %v2779
        %2785 = vmatprep.subr.mxu0 0.0
        %2786 = vmatpush1.xpose.msra.mxu0 0.0
        %2787 = vmatprep.subr.mxu0 0.0
        %2788 = vmatpush1.xpose.msra.mxu0 0.0
        %2789 = vmatprep.subr.mxu0 0.0
        %2790 = vmatpush1.xpose.msra.mxu0 0.0
        %2791 = vmatprep.subr.mxu0 0.0
        %2792 = vmatpush1.xpose.msra.mxu0 0.0
        %2793 = vmatprep.subr.mxu0 0.0
        %2794 = vmatpush1.xpose.msra.mxu0 0.0
        %2795 = vmatprep.subr.mxu0 0.0
        %2796 = vmatpush1.xpose.msra.mxu0 0.0
        %2797 = vmatprep.subr.mxu0 0.0
        %2798 = vmatpush1.xpose.msra.mxu0 0.0
        %2799 = vmatprep.subr.mxu0 0.0
        %2800 = vmatpush1.xpose.msra.mxu0 0.0
        %2801 = vmatprep.subr.mxu0 0.0
        %2802 = vmatpush1.xpose.msra.mxu0 0.0
        %2803 = vmatprep.subr.mxu0 0.0
        %2804 = vmatpush1.xpose.msra.mxu0 0.0
        %2805 = vmatprep.subr.mxu0 0.0
        %2806 = vmatpush1.xpose.msra.mxu0 0.0
        %2807 = vmatprep.subr.mxu0 0.0
        %2808 = vmatpush1.xpose.msra.mxu0 0.0
        %2809 = vmatprep.subr.mxu0 0.0
        %2810 = vmatpush1.xpose.msra.mxu0 0.0
        %2811 = vmatprep.subr.mxu0 0.0
        %2812 = vmatpush1.xpose.msra.mxu0 0.0
        %2813 = vmatprep.subr.mxu0 0.0
        %2814 = vmatpush1.xpose.msra.mxu0 0.0
        %2815 = vmatprep.subr.mxu0 0.0
        %2816 = vmatpush1.xpose.msra.mxu0 0.0
        %2817 = vmatprep.subr.mxu0 0.0
        %2818 = vmatpush1.xpose.msra.mxu0 0.0
        %2819 = vmatprep.subr.mxu0 0.0
        %2820 = vmatpush1.xpose.msra.mxu0 0.0
        %2821 = vmatprep.subr.mxu0 0.0
        %2822 = vmatpush1.xpose.msra.mxu0 0.0
        %2823 = vmatprep.subr.mxu0 0.0
        %2824 = vmatpush1.xpose.msra.mxu0 0.0
        %2825 = vmatprep.subr.mxu0 0.0
        %2826 = vmatpush1.xpose.msra.mxu0 0.0
        %2827 = vmatprep.subr.mxu0 0.0
        %2828 = vmatpush1.xpose.msra.mxu0 0.0
        %2829 = vmatprep.subr.mxu0 0.0
        %2830 = vmatpush1.xpose.msra.mxu0 0.0
        %2831 = vmatprep.subr.mxu0 0.0
        %2832 = vmatpush1.xpose.msra.mxu0 0.0
        %2833 = vmatprep.subr.mxu0 0.0
        %2834 = vmatpush1.xpose.msra.mxu0 0.0
        %2835 = vmatprep.subr.mxu0 0.0
        %2836 = vmatpush1.xpose.msra.mxu0 0.0
        %2837 = vmatprep.subr.mxu0 0.0
        %2838 = vmatpush1.xpose.msra.mxu0 0.0
        %2839 = vmatprep.subr.mxu0 0.0
        %2840 = vmatpush1.xpose.msra.mxu0 0.0
        %2841 = vmatprep.subr.mxu0 0.0
        %2842 = vmatpush1.xpose.msra.mxu0 0.0
        %2843 = vmatprep.subr.mxu0 0.0
        %2844 = vmatpush1.xpose.msra.mxu0 0.0
        %2845 = vmatprep.mubr.f32.mxu0 0.0
        %2846 = vmatmul.mubr.f32.gmra.mrb[0].mxu0 %v2771
        %v2847 = vpop.f32.mrb[0].mxu0
        %v2848 = vadd.f32 %v623, %v2847
        %v2849 = vpop.f32.mrb[0].mxu0
        %2850 = vmatprep.mubr.f32.mxu0 0.0
        %2851 = vmatmul.mubr.f32.gmra.mrb[0].mxu0 %v2773
        %v2852 = vpop.f32.mrb[0].mxu0
        %v2853 = vadd.f32 %v623, %v2852
        %v2854 = vpop.f32.mrb[0].mxu0
        %2855 = vdwg.mxu0
        %v2856 = vsel %vm827, %v2848, -inf
        %2857 = vmax.xlane.f32.xlu0 %v2856
        %v2858 = vpop.xlane.xlu0 %2857
        %v2859 = vsel %vm827, %v2853, -inf
        %2860 = vmax.xlane.f32.xlu0 %v2859
        %v2861 = vpop.xlane.xlu0 %2860
        %v2862 = vsub.f32 %v2848, %v2858
        %v2863 = vsub.f32 %v2853, %v2861
        %v2864 = vmul.f32 %v2862, 1.442695
        %v2865 = vpow.pop %v2864
        %v2866 = vmul.f32 %v2863, 1.442695
        %v2867 = vpow.pop %v2866
        %v2868 = vsel %vm827, %v2865, 0.0
        %2869 = vadd.xlane.f32.xlu0 %v2868
        %v2870 = vpop.xlane.xlu0 %2869
        %v2871 = vsel %vm827, %v2867, 0.0
        %2872 = vadd.xlane.f32.xlu0 %v2871
        %v2873 = vpop.xlane.xlu0 %2872
        %v2874 = vrcp.pop %v2870
        %v2875 = vrcp.pop %v2873
        %v2876 = vmul.f32 %v2865, %v2874
        %v2877 = vmul.f32 %v2867, %v2875
        %v2878 = vsel %vm852, %v2756, 0.0
        %v2879 = vsel %vm852, %v2758, 0.0
        %v2880 = vsel %vm852, %v2764, 0.0
        %v2881 = vsel %vm852, %v2766, 0.0
        %v2883 = vsel %vm566, %v2878, 0
        %v2886 = vsel %vm566, %v2879, 0
        %2888 = vmatprep.subr.mxu0 0.0
        %2889 = vmatpush1.xpose.msra.mxu0 %v2883
        %2890 = vmatprep.subr.mxu0 0.0
        %2891 = vmatpush1.xpose.msra.mxu0 %v2886
        %2892 = vmatprep.subr.mxu0 0.0
        %2893 = vmatpush1.xpose.msra.mxu0 0.0
        %2894 = vmatprep.subr.mxu0 0.0
        %2895 = vmatpush1.xpose.msra.mxu0 0.0
        %2896 = vmatprep.subr.mxu0 0.0
        %2897 = vmatpush1.xpose.msra.mxu0 0.0
        %2898 = vmatprep.subr.mxu0 0.0
        %2899 = vmatpush1.xpose.msra.mxu0 0.0
        %2900 = vmatprep.subr.mxu0 0.0
        %2901 = vmatpush1.xpose.msra.mxu0 0.0
        %2902 = vmatprep.subr.mxu0 0.0
        %2903 = vmatpush1.xpose.msra.mxu0 0.0
        %2904 = vmatprep.subr.mxu0 0.0
        %2905 = vmatpush1.xpose.msra.mxu0 0.0
        %2906 = vmatprep.subr.mxu0 0.0
        %2907 = vmatpush1.xpose.msra.mxu0 0.0
        %2908 = vmatprep.subr.mxu0 0.0
        %2909 = vmatpush1.xpose.msra.mxu0 0.0
        %2910 = vmatprep.subr.mxu0 0.0
        %2911 = vmatpush1.xpose.msra.mxu0 0.0
        %2912 = vmatprep.subr.mxu0 0.0
        %2913 = vmatpush1.xpose.msra.mxu0 0.0
        %2914 = vmatprep.subr.mxu0 0.0
        %2915 = vmatpush1.xpose.msra.mxu0 0.0
        %2916 = vmatprep.subr.mxu0 0.0
        %2917 = vmatpush1.xpose.msra.mxu0 0.0
        %2918 = vmatprep.subr.mxu0 0.0
        %2919 = vmatpush1.xpose.msra.mxu0 0.0
        %2920 = vmatprep.subr.mxu0 0.0
        %2921 = vmatpush1.xpose.msra.mxu0 0.0
        %2922 = vmatprep.subr.mxu0 0.0
        %2923 = vmatpush1.xpose.msra.mxu0 0.0
        %2924 = vmatprep.subr.mxu0 0.0
        %2925 = vmatpush1.xpose.msra.mxu0 0.0
        %2926 = vmatprep.subr.mxu0 0.0
        %2927 = vmatpush1.xpose.msra.mxu0 0.0
        %2928 = vmatprep.subr.mxu0 0.0
        %2929 = vmatpush1.xpose.msra.mxu0 0.0
        %2930 = vmatprep.subr.mxu0 0.0
        %2931 = vmatpush1.xpose.msra.mxu0 0.0
        %2932 = vmatprep.subr.mxu0 0.0
        %2933 = vmatpush1.xpose.msra.mxu0 0.0
        %2934 = vmatprep.subr.mxu0 0.0
        %2935 = vmatpush1.xpose.msra.mxu0 0.0
        %2936 = vmatprep.subr.mxu0 0.0
        %2937 = vmatpush1.xpose.msra.mxu0 0.0
        %2938 = vmatprep.subr.mxu0 0.0
        %2939 = vmatpush1.xpose.msra.mxu0 0.0
        %2940 = vmatprep.subr.mxu0 0.0
        %2941 = vmatpush1.xpose.msra.mxu0 0.0
        %2942 = vmatprep.subr.mxu0 0.0
        %2943 = vmatpush1.xpose.msra.mxu0 0.0
        %2944 = vmatprep.subr.mxu0 0.0
        %2945 = vmatpush1.xpose.msra.mxu0 0.0
        %2946 = vmatprep.subr.mxu0 0.0
        %2947 = vmatpush1.xpose.msra.mxu0 0.0
        %2948 = vmatprep.subr.mxu0 0.0
        %2949 = vmatpush1.xpose.msra.mxu0 0.0
        %2950 = vmatprep.subr.mxu0 0.0
        %2951 = vmatpush1.xpose.msra.mxu0 0.0
        %2952 = vmatprep.mubr.f32.mxu0 0.0
        %2953 = vmatmul.mubr.f32.gmra.mrb[0].mxu0 %v2771
        %v2954 = vpop.f32.mrb[0].mxu0
        %v2955 = vadd.f32 %v623, %v2954
        %v2956 = vpop.f32.mrb[0].mxu0
        %2957 = vmatprep.mubr.f32.mxu0 0.0
        %2958 = vmatmul.mubr.f32.gmra.mrb[0].mxu0 %v2773
        %v2959 = vpop.f32.mrb[0].mxu0
        %v2960 = vadd.f32 %v623, %v2959
        %v2961 = vpop.f32.mrb[0].mxu0
        %2962 = vdwg.mxu0
        %v2963 = vsel %vm827, %v2955, -inf
        %2964 = vmax.xlane.f32.xlu0 %v2963
        %v2965 = vpop.xlane.xlu0 %2964
        %v2966 = vsel %vm827, %v2960, -inf
        %2967 = vmax.xlane.f32.xlu0 %v2966
        %v2968 = vpop.xlane.xlu0 %2967
        %v2969 = vsub.f32 %v2955, %v2965
        %v2970 = vsub.f32 %v2960, %v2968
        %v2971 = vmul.f32 %v2969, 1.442695
        %v2972 = vpow.pop %v2971
        %v2973 = vmul.f32 %v2970, 1.442695
        %v2974 = vpow.pop %v2973
        %v2975 = vsel %vm827, %v2972, 0.0
        %2976 = vadd.xlane.f32.xlu0 %v2975
        %v2977 = vpop.xlane.xlu0 %2976
        %v2978 = vsel %vm827, %v2974, 0.0
        %2979 = vadd.xlane.f32.xlu0 %v2978
        %v2980 = vpop.xlane.xlu0 %2979
        %v2981 = vrcp.pop %v2977
        %v2982 = vrcp.pop %v2980
        %v2983 = vmul.f32 %v2972, %v2981
        %v2984 = vmul.f32 %v2974, %v2982
        %v2986 = vsel %vm827, %v2983, 0
        %v2989 = vsel %vm827, %v2984, 0
        %2991 = vmatprep.subr.mxu0 0.0
        %2992 = vmatpush1.msra.mxu0 %v2880
        %2993 = vmatprep.subr.mxu0 0.0
        %2994 = vmatpush1.msra.mxu0 %v2881
        %2995 = vmatprep.subr.mxu0 0.0
        %2996 = vmatpush1.msra.mxu0 0.0
        %2997 = vmatprep.subr.mxu0 0.0
        %2998 = vmatpush1.msra.mxu0 0.0
        %2999 = vmatprep.subr.mxu0 0.0
        %3000 = vmatpush1.msra.mxu0 0.0
        %3001 = vmatprep.subr.mxu0 0.0
        %3002 = vmatpush1.msra.mxu0 0.0
        %3003 = vmatprep.subr.mxu0 0.0
        %3004 = vmatpush1.msra.mxu0 0.0
        %3005 = vmatprep.subr.mxu0 0.0
        %3006 = vmatpush1.msra.mxu0 0.0
        %3007 = vmatprep.subr.mxu0 0.0
        %3008 = vmatpush1.msra.mxu0 0.0
        %3009 = vmatprep.subr.mxu0 0.0
        %3010 = vmatpush1.msra.mxu0 0.0
        %3011 = vmatprep.subr.mxu0 0.0
        %3012 = vmatpush1.msra.mxu0 0.0
        %3013 = vmatprep.subr.mxu0 0.0
        %3014 = vmatpush1.msra.mxu0 0.0
        %3015 = vmatprep.subr.mxu0 0.0
        %3016 = vmatpush1.msra.mxu0 0.0
        %3017 = vmatprep.subr.mxu0 0.0
        %3018 = vmatpush1.msra.mxu0 0.0
        %3019 = vmatprep.subr.mxu0 0.0
        %3020 = vmatpush1.msra.mxu0 0.0
        %3021 = vmatprep.subr.mxu0 0.0
        %3022 = vmatpush1.msra.mxu0 0.0
        %3023 = vmatprep.subr.mxu0 0.0
        %3024 = vmatpush1.msra.mxu0 0.0
        %3025 = vmatprep.subr.mxu0 0.0
        %3026 = vmatpush1.msra.mxu0 0.0
        %3027 = vmatprep.subr.mxu0 0.0
        %3028 = vmatpush1.msra.mxu0 0.0
        %3029 = vmatprep.subr.mxu0 0.0
        %3030 = vmatpush1.msra.mxu0 0.0
        %3031 = vmatprep.subr.mxu0 0.0
        %3032 = vmatpush1.msra.mxu0 0.0
        %3033 = vmatprep.subr.mxu0 0.0
        %3034 = vmatpush1.msra.mxu0 0.0
        %3035 = vmatprep.subr.mxu0 0.0
        %3036 = vmatpush1.msra.mxu0 0.0
        %3037 = vmatprep.subr.mxu0 0.0
        %3038 = vmatpush1.msra.mxu0 0.0
        %3039 = vmatprep.subr.mxu0 0.0
        %3040 = vmatpush1.msra.mxu0 0.0
        %3041 = vmatprep.subr.mxu0 0.0
        %3042 = vmatpush1.msra.mxu0 0.0
        %3043 = vmatprep.subr.mxu0 0.0
        %3044 = vmatpush1.msra.mxu0 0.0
        %3045 = vmatprep.subr.mxu0 0.0
        %3046 = vmatpush1.msra.mxu0 0.0
        %3047 = vmatprep.subr.mxu0 0.0
        %3048 = vmatpush1.msra.mxu0 0.0
        %3049 = vmatprep.subr.mxu0 0.0
        %3050 = vmatpush1.msra.mxu0 0.0
        %3051 = vmatprep.subr.mxu0 0.0
        %3052 = vmatpush1.msra.mxu0 0.0
        %3053 = vmatprep.subr.mxu0 0.0
        %3054 = vmatpush1.msra.mxu0 0.0
        %3055 = vmatprep.mubr.f32.mxu0 0.0
        %3056 = vmatmul.mubr.f32.gmra.mrb[0].mxu0 %v2986
        %v3057 = vpop.f32.mrb[0].mxu0
        %v3058 = vadd.f32 0.0, %v3057
        %v3059 = vpop.f32.mrb[0].mxu0
        %3060 = vmatprep.mubr.f32.mxu0 0.0
        %3061 = vmatmul.mubr.f32.gmra.mrb[0].mxu0 %v2989
        %v3062 = vpop.f32.mrb[0].mxu0
        %v3063 = vadd.f32 0.0, %v3062
        %v3064 = vpop.f32.mrb[0].mxu0
        %3065 = vdwg.mxu0
        %v3067 = vsel %vm827, %v2876, 0
        %v3070 = vsel %vm827, %v2877, 0
        %3072 = vmatprep.subr.mxu0 0.0
        %3073 = vmatpush1.msra.mxu0 %v2769
        %3074 = vmatprep.subr.mxu0 0.0
        %3075 = vmatpush1.msra.mxu0 %v2770
        %3076 = vmatprep.subr.mxu0 0.0
        %3077 = vmatpush1.msra.mxu0 0.0
        %3078 = vmatprep.subr.mxu0 0.0
        %3079 = vmatpush1.msra.mxu0 0.0
        %3080 = vmatprep.subr.mxu0 0.0
        %3081 = vmatpush1.msra.mxu0 0.0
        %3082 = vmatprep.subr.mxu0 0.0
        %3083 = vmatpush1.msra.mxu0 0.0
        %3084 = vmatprep.subr.mxu0 0.0
        %3085 = vmatpush1.msra.mxu0 0.0
        %3086 = vmatprep.subr.mxu0 0.0
        %3087 = vmatpush1.msra.mxu0 0.0
        %3088 = vmatprep.subr.mxu0 0.0
        %3089 = vmatpush1.msra.mxu0 0.0
        %3090 = vmatprep.subr.mxu0 0.0
        %3091 = vmatpush1.msra.mxu0 0.0
        %3092 = vmatprep.subr.mxu0 0.0
        %3093 = vmatpush1.msra.mxu0 0.0
        %3094 = vmatprep.subr.mxu0 0.0
        %3095 = vmatpush1.msra.mxu0 0.0
        %3096 = vmatprep.subr.mxu0 0.0
        %3097 = vmatpush1.msra.mxu0 0.0
        %3098 = vmatprep.subr.mxu0 0.0
        %3099 = vmatpush1.msra.mxu0 0.0
        %3100 = vmatprep.subr.mxu0 0.0
        %3101 = vmatpush1.msra.mxu0 0.0
        %3102 = vmatprep.subr.mxu0 0.0
        %3103 = vmatpush1.msra.mxu0 0.0
        %3104 = vmatprep.subr.mxu0 0.0
        %3105 = vmatpush1.msra.mxu0 0.0
        %3106 = vmatprep.subr.mxu0 0.0
        %3107 = vmatpush1.msra.mxu0 0.0
        %3108 = vmatprep.subr.mxu0 0.0
        %3109 = vmatpush1.msra.mxu0 0.0
        %3110 = vmatprep.subr.mxu0 0.0
        %3111 = vmatpush1.msra.mxu0 0.0
        %3112 = vmatprep.subr.mxu0 0.0
        %3113 = vmatpush1.msra.mxu0 0.0
        %3114 = vmatprep.subr.mxu0 0.0
        %3115 = vmatpush1.msra.mxu0 0.0
        %3116 = vmatprep.subr.mxu0 0.0
        %3117 = vmatpush1.msra.mxu0 0.0
        %3118 = vmatprep.subr.mxu0 0.0
        %3119 = vmatpush1.msra.mxu0 0.0
        %3120 = vmatprep.subr.mxu0 0.0
        %3121 = vmatpush1.msra.mxu0 0.0
        %3122 = vmatprep.subr.mxu0 0.0
        %3123 = vmatpush1.msra.mxu0 0.0
        %3124 = vmatprep.subr.mxu0 0.0
        %3125 = vmatpush1.msra.mxu0 0.0
        %3126 = vmatprep.subr.mxu0 0.0
        %3127 = vmatpush1.msra.mxu0 0.0
        %3128 = vmatprep.subr.mxu0 0.0
        %3129 = vmatpush1.msra.mxu0 0.0
        %3130 = vmatprep.subr.mxu0 0.0
        %3131 = vmatpush1.msra.mxu0 0.0
        %3132 = vmatprep.subr.mxu0 0.0
        %3133 = vmatpush1.msra.mxu0 0.0
        %3134 = vmatprep.subr.mxu0 0.0
        %3135 = vmatpush1.msra.mxu0 0.0
        %3136 = vmatprep.mubr.f32.mxu0 0.0
        %3137 = vmatmul.mubr.f32.gmra.mrb[0].mxu0 %v3067
        %v3138 = vpop.f32.mrb[0].mxu0
        %v3139 = vadd.f32 %v3058, %v3138
        %v3140 = vpop.f32.mrb[0].mxu0
        %3141 = vmatprep.mubr.f32.mxu0 0.0
        %3142 = vmatmul.mubr.f32.gmra.mrb[0].mxu0 %v3070
        %v3143 = vpop.f32.mrb[0].mxu0
        %v3144 = vadd.f32 %v3063, %v3143
        %v3145 = vpop.f32.mrb[0].mxu0
        %3146 = vdwg.mxu0
        %v3147 = vsel %vm1124, %v2756, 0.0
        %v3148 = vsel %vm1124, %v2758, 0.0
        %v3149 = vsel %vm1124, %v2764, 0.0
        %v3150 = vsel %vm1124, %v2766, 0.0
        %v3152 = vsel %vm566, %v3147, 0
        %v3155 = vsel %vm566, %v3148, 0
        %3157 = vmatprep.subr.mxu0 0.0
        %3158 = vmatpush1.xpose.msra.mxu0 %v3152
        %3159 = vmatprep.subr.mxu0 0.0
        %3160 = vmatpush1.xpose.msra.mxu0 %v3155
        %3161 = vmatprep.subr.mxu0 0.0
        %3162 = vmatpush1.xpose.msra.mxu0 0.0
        %3163 = vmatprep.subr.mxu0 0.0
        %3164 = vmatpush1.xpose.msra.mxu0 0.0
        %3165 = vmatprep.subr.mxu0 0.0
        %3166 = vmatpush1.xpose.msra.mxu0 0.0
        %3167 = vmatprep.subr.mxu0 0.0
        %3168 = vmatpush1.xpose.msra.mxu0 0.0
        %3169 = vmatprep.subr.mxu0 0.0
        %3170 = vmatpush1.xpose.msra.mxu0 0.0
        %3171 = vmatprep.subr.mxu0 0.0
        %3172 = vmatpush1.xpose.msra.mxu0 0.0
        %3173 = vmatprep.subr.mxu0 0.0
        %3174 = vmatpush1.xpose.msra.mxu0 0.0
        %3175 = vmatprep.subr.mxu0 0.0
        %3176 = vmatpush1.xpose.msra.mxu0 0.0
        %3177 = vmatprep.subr.mxu0 0.0
        %3178 = vmatpush1.xpose.msra.mxu0 0.0
        %3179 = vmatprep.subr.mxu0 0.0
        %3180 = vmatpush1.xpose.msra.mxu0 0.0
        %3181 = vmatprep.subr.mxu0 0.0
        %3182 = vmatpush1.xpose.msra.mxu0 0.0
        %3183 = vmatprep.subr.mxu0 0.0
        %3184 = vmatpush1.xpose.msra.mxu0 0.0
        %3185 = vmatprep.subr.mxu0 0.0
        %3186 = vmatpush1.xpose.msra.mxu0 0.0
        %3187 = vmatprep.subr.mxu0 0.0
        %3188 = vmatpush1.xpose.msra.mxu0 0.0
        %3189 = vmatprep.subr.mxu0 0.0
        %3190 = vmatpush1.xpose.msra.mxu0 0.0
        %3191 = vmatprep.subr.mxu0 0.0
        %3192 = vmatpush1.xpose.msra.mxu0 0.0
        %3193 = vmatprep.subr.mxu0 0.0
        %3194 = vmatpush1.xpose.msra.mxu0 0.0
        %3195 = vmatprep.subr.mxu0 0.0
        %3196 = vmatpush1.xpose.msra.mxu0 0.0
        %3197 = vmatprep.subr.mxu0 0.0
        %3198 = vmatpush1.xpose.msra.mxu0 0.0
        %3199 = vmatprep.subr.mxu0 0.0
        %3200 = vmatpush1.xpose.msra.mxu0 0.0
        %3201 = vmatprep.subr.mxu0 0.0
        %3202 = vmatpush1.xpose.msra.mxu0 0.0
        %3203 = vmatprep.subr.mxu0 0.0
        %3204 = vmatpush1.xpose.msra.mxu0 0.0
        %3205 = vmatprep.subr.mxu0 0.0
        %3206 = vmatpush1.xpose.msra.mxu0 0.0
        %3207 = vmatprep.subr.mxu0 0.0
        %3208 = vmatpush1.xpose.msra.mxu0 0.0
        %3209 = vmatprep.subr.mxu0 0.0
        %3210 = vmatpush1.xpose.msra.mxu0 0.0
        %3211 = vmatprep.subr.mxu0 0.0
        %3212 = vmatpush1.xpose.msra.mxu0 0.0
        %3213 = vmatprep.subr.mxu0 0.0
        %3214 = vmatpush1.xpose.msra.mxu0 0.0
        %3215 = vmatprep.subr.mxu0 0.0
        %3216 = vmatpush1.xpose.msra.mxu0 0.0
        %3217 = vmatprep.subr.mxu0 0.0
        %3218 = vmatpush1.xpose.msra.mxu0 0.0
        %3219 = vmatprep.subr.mxu0 0.0
        %3220 = vmatpush1.xpose.msra.mxu0 0.0
        %3221 = vmatprep.mubr.f32.mxu0 0.0
        %3222 = vmatmul.mubr.f32.gmra.mrb[0].mxu0 %v2771
        %v3223 = vpop.f32.mrb[0].mxu0
        %v3224 = vadd.f32 %v623, %v3223
        %v3225 = vpop.f32.mrb[0].mxu0
        %3226 = vmatprep.mubr.f32.mxu0 0.0
        %3227 = vmatmul.mubr.f32.gmra.mrb[0].mxu0 %v2773
        %v3228 = vpop.f32.mrb[0].mxu0
        %v3229 = vadd.f32 %v623, %v3228
        %v3230 = vpop.f32.mrb[0].mxu0
        %3231 = vdwg.mxu0
        %v3232 = vsel %vm827, %v3224, -inf
        %3233 = vmax.xlane.f32.xlu0 %v3232
        %v3234 = vpop.xlane.xlu0 %3233
        %v3235 = vsel %vm827, %v3229, -inf
        %3236 = vmax.xlane.f32.xlu0 %v3235
        %v3237 = vpop.xlane.xlu0 %3236
        %v3238 = vsub.f32 %v3224, %v3234
        %v3239 = vsub.f32 %v3229, %v3237
        %v3240 = vmul.f32 %v3238, 1.442695
        %v3241 = vpow.pop %v3240
        %v3242 = vmul.f32 %v3239, 1.442695
        %v3243 = vpow.pop %v3242
        %v3244 = vsel %vm827, %v3241, 0.0
        %3245 = vadd.xlane.f32.xlu0 %v3244
        %v3246 = vpop.xlane.xlu0 %3245
        %v3247 = vsel %vm827, %v3243, 0.0
        %3248 = vadd.xlane.f32.xlu0 %v3247
        %v3249 = vpop.xlane.xlu0 %3248
        %v3250 = vrcp.pop %v3246
        %v3251 = vrcp.pop %v3249
        %v3252 = vmul.f32 %v3241, %v3250
        %v3253 = vmul.f32 %v3243, %v3251
        %v3255 = vsel %vm827, %v3252, 0
        %v3258 = vsel %vm827, %v3253, 0
        %3260 = vmatprep.subr.mxu0 0.0
        %3261 = vmatpush1.msra.mxu0 %v3149
        %3262 = vmatprep.subr.mxu0 0.0
        %3263 = vmatpush1.msra.mxu0 %v3150
        %3264 = vmatprep.subr.mxu0 0.0
        %3265 = vmatpush1.msra.mxu0 0.0
        %3266 = vmatprep.subr.mxu0 0.0
        %3267 = vmatpush1.msra.mxu0 0.0
        %3268 = vmatprep.subr.mxu0 0.0
        %3269 = vmatpush1.msra.mxu0 0.0
        %3270 = vmatprep.subr.mxu0 0.0
        %3271 = vmatpush1.msra.mxu0 0.0
        %3272 = vmatprep.subr.mxu0 0.0
        %3273 = vmatpush1.msra.mxu0 0.0
        %3274 = vmatprep.subr.mxu0 0.0
        %3275 = vmatpush1.msra.mxu0 0.0
        %3276 = vmatprep.subr.mxu0 0.0
        %3277 = vmatpush1.msra.mxu0 0.0
        %3278 = vmatprep.subr.mxu0 0.0
        %3279 = vmatpush1.msra.mxu0 0.0
        %3280 = vmatprep.subr.mxu0 0.0
        %3281 = vmatpush1.msra.mxu0 0.0
        %3282 = vmatprep.subr.mxu0 0.0
        %3283 = vmatpush1.msra.mxu0 0.0
        %3284 = vmatprep.subr.mxu0 0.0
        %3285 = vmatpush1.msra.mxu0 0.0
        %3286 = vmatprep.subr.mxu0 0.0
        %3287 = vmatpush1.msra.mxu0 0.0
        %3288 = vmatprep.subr.mxu0 0.0
        %3289 = vmatpush1.msra.mxu0 0.0
        %3290 = vmatprep.subr.mxu0 0.0
        %3291 = vmatpush1.msra.mxu0 0.0
        %3292 = vmatprep.subr.mxu0 0.0
        %3293 = vmatpush1.msra.mxu0 0.0
        %3294 = vmatprep.subr.mxu0 0.0
        %3295 = vmatpush1.msra.mxu0 0.0
        %3296 = vmatprep.subr.mxu0 0.0
        %3297 = vmatpush1.msra.mxu0 0.0
        %3298 = vmatprep.subr.mxu0 0.0
        %3299 = vmatpush1.msra.mxu0 0.0
        %3300 = vmatprep.subr.mxu0 0.0
        %3301 = vmatpush1.msra.mxu0 0.0
        %3302 = vmatprep.subr.mxu0 0.0
        %3303 = vmatpush1.msra.mxu0 0.0
        %3304 = vmatprep.subr.mxu0 0.0
        %3305 = vmatpush1.msra.mxu0 0.0
        %3306 = vmatprep.subr.mxu0 0.0
        %3307 = vmatpush1.msra.mxu0 0.0
        %3308 = vmatprep.subr.mxu0 0.0
        %3309 = vmatpush1.msra.mxu0 0.0
        %3310 = vmatprep.subr.mxu0 0.0
        %3311 = vmatpush1.msra.mxu0 0.0
        %3312 = vmatprep.subr.mxu0 0.0
        %3313 = vmatpush1.msra.mxu0 0.0
        %3314 = vmatprep.subr.mxu0 0.0
        %3315 = vmatpush1.msra.mxu0 0.0
        %3316 = vmatprep.subr.mxu0 0.0
        %3317 = vmatpush1.msra.mxu0 0.0
        %3318 = vmatprep.subr.mxu0 0.0
        %3319 = vmatpush1.msra.mxu0 0.0
        %3320 = vmatprep.subr.mxu0 0.0
        %3321 = vmatpush1.msra.mxu0 0.0
        %3322 = vmatprep.subr.mxu0 0.0
        %3323 = vmatpush1.msra.mxu0 0.0
        %3324 = vmatprep.mubr.f32.mxu0 0.0
        %3325 = vmatmul.mubr.f32.gmra.mrb[0].mxu0 %v3255
        %v3326 = vpop.f32.mrb[0].mxu0
        %v3327 = vadd.f32 0.0, %v3326
        %v3328 = vpop.f32.mrb[0].mxu0
        %3329 = vmatprep.mubr.f32.mxu0 0.0
        %3330 = vmatmul.mubr.f32.gmra.mrb[0].mxu0 %v3258
        %v3331 = vpop.f32.mrb[0].mxu0
        %v3332 = vadd.f32 0.0, %v3331
        %v3333 = vpop.f32.mrb[0].mxu0
        %3334 = vdwg.mxu0
        %v3335 = vadd.f32 %v3139, %v3327
        %v3336 = vadd.f32 %v3144, %v3332
        %v3337 = vsel %vm1317, %v2756, 0.0
        %v3338 = vsel %vm1317, %v2758, 0.0
        %v3339 = vsel %vm1317, %v2764, 0.0
        %v3340 = vsel %vm1317, %v2766, 0.0
        %v3342 = vsel %vm566, %v3337, 0
        %v3345 = vsel %vm566, %v3338, 0
        %3347 = vmatprep.subr.mxu0 0.0
        %3348 = vmatpush1.xpose.msra.mxu0 %v3342
        %3349 = vmatprep.subr.mxu0 0.0
        %3350 = vmatpush1.xpose.msra.mxu0 %v3345
        %3351 = vmatprep.subr.mxu0 0.0
        %3352 = vmatpush1.xpose.msra.mxu0 0.0
        %3353 = vmatprep.subr.mxu0 0.0
        %3354 = vmatpush1.xpose.msra.mxu0 0.0
        %3355 = vmatprep.subr.mxu0 0.0
        %3356 = vmatpush1.xpose.msra.mxu0 0.0
        %3357 = vmatprep.subr.mxu0 0.0
        %3358 = vmatpush1.xpose.msra.mxu0 0.0
        %3359 = vmatprep.subr.mxu0 0.0
        %3360 = vmatpush1.xpose.msra.mxu0 0.0
        %3361 = vmatprep.subr.mxu0 0.0
        %3362 = vmatpush1.xpose.msra.mxu0 0.0
        %3363 = vmatprep.subr.mxu0 0.0
        %3364 = vmatpush1.xpose.msra.mxu0 0.0
        %3365 = vmatprep.subr.mxu0 0.0
        %3366 = vmatpush1.xpose.msra.mxu0 0.0
        %3367 = vmatprep.subr.mxu0 0.0
        %3368 = vmatpush1.xpose.msra.mxu0 0.0
        %3369 = vmatprep.subr.mxu0 0.0
        %3370 = vmatpush1.xpose.msra.mxu0 0.0
        %3371 = vmatprep.subr.mxu0 0.0
        %3372 = vmatpush1.xpose.msra.mxu0 0.0
        %3373 = vmatprep.subr.mxu0 0.0
        %3374 = vmatpush1.xpose.msra.mxu0 0.0
        %3375 = vmatprep.subr.mxu0 0.0
        %3376 = vmatpush1.xpose.msra.mxu0 0.0
        %3377 = vmatprep.subr.mxu0 0.0
        %3378 = vmatpush1.xpose.msra.mxu0 0.0
        %3379 = vmatprep.subr.mxu0 0.0
        %3380 = vmatpush1.xpose.msra.mxu0 0.0
        %3381 = vmatprep.subr.mxu0 0.0
        %3382 = vmatpush1.xpose.msra.mxu0 0.0
        %3383 = vmatprep.subr.mxu0 0.0
        %3384 = vmatpush1.xpose.msra.mxu0 0.0
        %3385 = vmatprep.subr.mxu0 0.0
        %3386 = vmatpush1.xpose.msra.mxu0 0.0
        %3387 = vmatprep.subr.mxu0 0.0
        %3388 = vmatpush1.xpose.msra.mxu0 0.0
        %3389 = vmatprep.subr.mxu0 0.0
        %3390 = vmatpush1.xpose.msra.mxu0 0.0
        %3391 = vmatprep.subr.mxu0 0.0
        %3392 = vmatpush1.xpose.msra.mxu0 0.0
        %3393 = vmatprep.subr.mxu0 0.0
        %3394 = vmatpush1.xpose.msra.mxu0 0.0
        %3395 = vmatprep.subr.mxu0 0.0
        %3396 = vmatpush1.xpose.msra.mxu0 0.0
        %3397 = vmatprep.subr.mxu0 0.0
        %3398 = vmatpush1.xpose.msra.mxu0 0.0
        %3399 = vmatprep.subr.mxu0 0.0
        %3400 = vmatpush1.xpose.msra.mxu0 0.0
        %3401 = vmatprep.subr.mxu0 0.0
        %3402 = vmatpush1.xpose.msra.mxu0 0.0
        %3403 = vmatprep.subr.mxu0 0.0
        %3404 = vmatpush1.xpose.msra.mxu0 0.0
        %3405 = vmatprep.subr.mxu0 0.0
        %3406 = vmatpush1.xpose.msra.mxu0 0.0
        %3407 = vmatprep.subr.mxu0 0.0
        %3408 = vmatpush1.xpose.msra.mxu0 0.0
        %3409 = vmatprep.subr.mxu0 0.0
        %3410 = vmatpush1.xpose.msra.mxu0 0.0
        %3411 = vmatprep.mubr.f32.mxu0 0.0
        %3412 = vmatmul.mubr.f32.gmra.mrb[0].mxu0 %v2771
        %v3413 = vpop.f32.mrb[0].mxu0
        %v3414 = vadd.f32 %v623, %v3413
        %v3415 = vpop.f32.mrb[0].mxu0
        %3416 = vmatprep.mubr.f32.mxu0 0.0
        %3417 = vmatmul.mubr.f32.gmra.mrb[0].mxu0 %v2773
        %v3418 = vpop.f32.mrb[0].mxu0
        %v3419 = vadd.f32 %v623, %v3418
        %v3420 = vpop.f32.mrb[0].mxu0
        %3421 = vdwg.mxu0
        %v3422 = vsel %vm827, %v3414, -inf
        %3423 = vmax.xlane.f32.xlu0 %v3422
        %v3424 = vpop.xlane.xlu0 %3423
        %v3425 = vsel %vm827, %v3419, -inf
        %3426 = vmax.xlane.f32.xlu0 %v3425
        %v3427 = vpop.xlane.xlu0 %3426
        %v3428 = vsub.f32 %v3414, %v3424
        %v3429 = vsub.f32 %v3419, %v3427
        %v3430 = vmul.f32 %v3428, 1.442695
        %v3431 = vpow.pop %v3430
        %v3432 = vmul.f32 %v3429, 1.442695
        %v3433 = vpow.pop %v3432
        %v3434 = vsel %vm827, %v3431, 0.0
        %3435 = vadd.xlane.f32.xlu0 %v3434
        %v3436 = vpop.xlane.xlu0 %3435
        %v3437 = vsel %vm827, %v3433, 0.0
        %3438 = vadd.xlane.f32.xlu0 %v3437
        %v3439 = vpop.xlane.xlu0 %3438
        %v3440 = vrcp.pop %v3436
        %v3441 = vrcp.pop %v3439
        %v3442 = vmul.f32 %v3431, %v3440
        %v3443 = vmul.f32 %v3433, %v3441
        %v3445 = vsel %vm827, %v3442, 0
        %v3448 = vsel %vm827, %v3443, 0
        %3450 = vmatprep.subr.mxu0 0.0
        %3451 = vmatpush1.msra.mxu0 %v3339
        %3452 = vmatprep.subr.mxu0 0.0
        %3453 = vmatpush1.msra.mxu0 %v3340
        %3454 = vmatprep.subr.mxu0 0.0
        %3455 = vmatpush1.msra.mxu0 0.0
        %3456 = vmatprep.subr.mxu0 0.0
        %3457 = vmatpush1.msra.mxu0 0.0
        %3458 = vmatprep.subr.mxu0 0.0
        %3459 = vmatpush1.msra.mxu0 0.0
        %3460 = vmatprep.subr.mxu0 0.0
        %3461 = vmatpush1.msra.mxu0 0.0
        %3462 = vmatprep.subr.mxu0 0.0
        %3463 = vmatpush1.msra.mxu0 0.0
        %3464 = vmatprep.subr.mxu0 0.0
        %3465 = vmatpush1.msra.mxu0 0.0
        %3466 = vmatprep.subr.mxu0 0.0
        %3467 = vmatpush1.msra.mxu0 0.0
        %3468 = vmatprep.subr.mxu0 0.0
        %3469 = vmatpush1.msra.mxu0 0.0
        %3470 = vmatprep.subr.mxu0 0.0
        %3471 = vmatpush1.msra.mxu0 0.0
        %3472 = vmatprep.subr.mxu0 0.0
        %3473 = vmatpush1.msra.mxu0 0.0
        %3474 = vmatprep.subr.mxu0 0.0
        %3475 = vmatpush1.msra.mxu0 0.0
        %3476 = vmatprep.subr.mxu0 0.0
        %3477 = vmatpush1.msra.mxu0 0.0
        %3478 = vmatprep.subr.mxu0 0.0
        %3479 = vmatpush1.msra.mxu0 0.0
        %3480 = vmatprep.subr.mxu0 0.0
        %3481 = vmatpush1.msra.mxu0 0.0
        %3482 = vmatprep.subr.mxu0 0.0
        %3483 = vmatpush1.msra.mxu0 0.0
        %3484 = vmatprep.subr.mxu0 0.0
        %3485 = vmatpush1.msra.mxu0 0.0
        %3486 = vmatprep.subr.mxu0 0.0
        %3487 = vmatpush1.msra.mxu0 0.0
        %3488 = vmatprep.subr.mxu0 0.0
        %3489 = vmatpush1.msra.mxu0 0.0
        %3490 = vmatprep.subr.mxu0 0.0
        %3491 = vmatpush1.msra.mxu0 0.0
        %3492 = vmatprep.subr.mxu0 0.0
        %3493 = vmatpush1.msra.mxu0 0.0
        %3494 = vmatprep.subr.mxu0 0.0
        %3495 = vmatpush1.msra.mxu0 0.0
        %3496 = vmatprep.subr.mxu0 0.0
        %3497 = vmatpush1.msra.mxu0 0.0
        %3498 = vmatprep.subr.mxu0 0.0
        %3499 = vmatpush1.msra.mxu0 0.0
        %3500 = vmatprep.subr.mxu0 0.0
        %3501 = vmatpush1.msra.mxu0 0.0
        %3502 = vmatprep.subr.mxu0 0.0
        %3503 = vmatpush1.msra.mxu0 0.0
        %3504 = vmatprep.subr.mxu0 0.0
        %3505 = vmatpush1.msra.mxu0 0.0
        %3506 = vmatprep.subr.mxu0 0.0
        %3507 = vmatpush1.msra.mxu0 0.0
        %3508 = vmatprep.subr.mxu0 0.0
        %3509 = vmatpush1.msra.mxu0 0.0
        %3510 = vmatprep.subr.mxu0 0.0
        %3511 = vmatpush1.msra.mxu0 0.0
        %3512 = vmatprep.subr.mxu0 0.0
        %3513 = vmatpush1.msra.mxu0 0.0
        %3514 = vmatprep.mubr.f32.mxu0 0.0
        %3515 = vmatmul.mubr.f32.gmra.mrb[0].mxu0 %v3445
        %v3516 = vpop.f32.mrb[0].mxu0
        %v3517 = vadd.f32 0.0, %v3516
        %v3518 = vpop.f32.mrb[0].mxu0
        %3519 = vmatprep.mubr.f32.mxu0 0.0
        %3520 = vmatmul.mubr.f32.gmra.mrb[0].mxu0 %v3448
        %v3521 = vpop.f32.mrb[0].mxu0
        %v3522 = vadd.f32 0.0, %v3521
        %v3523 = vpop.f32.mrb[0].mxu0
        %3524 = vdwg.mxu0
        %v3525 = vadd.f32 %v3335, %v3517
        %v3526 = vadd.f32 %v3336, %v3522
        %v3527 = vsel %vm1510, %v2756, 0.0
        %v3528 = vsel %vm1510, %v2758, 0.0
        %v3529 = vsel %vm1510, %v2764, 0.0
        %v3530 = vsel %vm1510, %v2766, 0.0
        %v3532 = vsel %vm566, %v3527, 0
        %v3535 = vsel %vm566, %v3528, 0
        %3537 = vmatprep.subr.mxu0 0.0
        %3538 = vmatpush1.xpose.msra.mxu0 %v3532
        %3539 = vmatprep.subr.mxu0 0.0
        %3540 = vmatpush1.xpose.msra.mxu0 %v3535
        %3541 = vmatprep.subr.mxu0 0.0
        %3542 = vmatpush1.xpose.msra.mxu0 0.0
        %3543 = vmatprep.subr.mxu0 0.0
        %3544 = vmatpush1.xpose.msra.mxu0 0.0
        %3545 = vmatprep.subr.mxu0 0.0
        %3546 = vmatpush1.xpose.msra.mxu0 0.0
        %3547 = vmatprep.subr.mxu0 0.0
        %3548 = vmatpush1.xpose.msra.mxu0 0.0
        %3549 = vmatprep.subr.mxu0 0.0
        %3550 = vmatpush1.xpose.msra.mxu0 0.0
        %3551 = vmatprep.subr.mxu0 0.0
        %3552 = vmatpush1.xpose.msra.mxu0 0.0
        %3553 = vmatprep.subr.mxu0 0.0
        %3554 = vmatpush1.xpose.msra.mxu0 0.0
        %3555 = vmatprep.subr.mxu0 0.0
        %3556 = vmatpush1.xpose.msra.mxu0 0.0
        %3557 = vmatprep.subr.mxu0 0.0
        %3558 = vmatpush1.xpose.msra.mxu0 0.0
        %3559 = vmatprep.subr.mxu0 0.0
        %3560 = vmatpush1.xpose.msra.mxu0 0.0
        %3561 = vmatprep.subr.mxu0 0.0
        %3562 = vmatpush1.xpose.msra.mxu0 0.0
        %3563 = vmatprep.subr.mxu0 0.0
        %3564 = vmatpush1.xpose.msra.mxu0 0.0
        %3565 = vmatprep.subr.mxu0 0.0
        %3566 = vmatpush1.xpose.msra.mxu0 0.0
        %3567 = vmatprep.subr.mxu0 0.0
        %3568 = vmatpush1.xpose.msra.mxu0 0.0
        %3569 = vmatprep.subr.mxu0 0.0
        %3570 = vmatpush1.xpose.msra.mxu0 0.0
        %3571 = vmatprep.subr.mxu0 0.0
        %3572 = vmatpush1.xpose.msra.mxu0 0.0
        %3573 = vmatprep.subr.mxu0 0.0
        %3574 = vmatpush1.xpose.msra.mxu0 0.0
        %3575 = vmatprep.subr.mxu0 0.0
        %3576 = vmatpush1.xpose.msra.mxu0 0.0
        %3577 = vmatprep.subr.mxu0 0.0
        %3578 = vmatpush1.xpose.msra.mxu0 0.0
        %3579 = vmatprep.subr.mxu0 0.0
        %3580 = vmatpush1.xpose.msra.mxu0 0.0
        %3581 = vmatprep.subr.mxu0 0.0
        %3582 = vmatpush1.xpose.msra.mxu0 0.0
        %3583 = vmatprep.subr.mxu0 0.0
        %3584 = vmatpush1.xpose.msra.mxu0 0.0
        %3585 = vmatprep.subr.mxu0 0.0
        %3586 = vmatpush1.xpose.msra.mxu0 0.0
        %3587 = vmatprep.subr.mxu0 0.0
        %3588 = vmatpush1.xpose.msra.mxu0 0.0
        %3589 = vmatprep.subr.mxu0 0.0
        %3590 = vmatpush1.xpose.msra.mxu0 0.0
        %3591 = vmatprep.subr.mxu0 0.0
        %3592 = vmatpush1.xpose.msra.mxu0 0.0
        %3593 = vmatprep.subr.mxu0 0.0
        %3594 = vmatpush1.xpose.msra.mxu0 0.0
        %3595 = vmatprep.subr.mxu0 0.0
        %3596 = vmatpush1.xpose.msra.mxu0 0.0
        %3597 = vmatprep.subr.mxu0 0.0
        %3598 = vmatpush1.xpose.msra.mxu0 0.0
        %3599 = vmatprep.subr.mxu0 0.0
        %3600 = vmatpush1.xpose.msra.mxu0 0.0
        %3601 = vmatprep.mubr.f32.mxu0 0.0
        %3602 = vmatmul.mubr.f32.gmra.mrb[0].mxu0 %v2771
        %v3603 = vpop.f32.mrb[0].mxu0
        %v3604 = vadd.f32 %v623, %v3603
        %v3605 = vpop.f32.mrb[0].mxu0
        %3606 = vmatprep.mubr.f32.mxu0 0.0
        %3607 = vmatmul.mubr.f32.gmra.mrb[0].mxu0 %v2773
        %v3608 = vpop.f32.mrb[0].mxu0
        %v3609 = vadd.f32 %v623, %v3608
        %v3610 = vpop.f32.mrb[0].mxu0
        %3611 = vdwg.mxu0
        %v3612 = vsel %vm827, %v3604, -inf
        %3613 = vmax.xlane.f32.xlu0 %v3612
        %v3614 = vpop.xlane.xlu0 %3613
        %v3615 = vsel %vm827, %v3609, -inf
        %3616 = vmax.xlane.f32.xlu0 %v3615
        %v3617 = vpop.xlane.xlu0 %3616
        %v3618 = vsub.f32 %v3604, %v3614
        %v3619 = vsub.f32 %v3609, %v3617
        %v3620 = vmul.f32 %v3618, 1.442695
        %v3621 = vpow.pop %v3620
        %v3622 = vmul.f32 %v3619, 1.442695
        %v3623 = vpow.pop %v3622
        %v3624 = vsel %vm827, %v3621, 0.0
        %3625 = vadd.xlane.f32.xlu0 %v3624
        %v3626 = vpop.xlane.xlu0 %3625
        %v3627 = vsel %vm827, %v3623, 0.0
        %3628 = vadd.xlane.f32.xlu0 %v3627
        %v3629 = vpop.xlane.xlu0 %3628
        %v3630 = vrcp.pop %v3626
        %v3631 = vrcp.pop %v3629
        %v3632 = vmul.f32 %v3621, %v3630
        %v3633 = vmul.f32 %v3623, %v3631
        %v3635 = vsel %vm827, %v3632, 0
        %v3638 = vsel %vm827, %v3633, 0
        %3640 = vmatprep.subr.mxu0 0.0
        %3641 = vmatpush1.msra.mxu0 %v3529
        %3642 = vmatprep.subr.mxu0 0.0
        %3643 = vmatpush1.msra.mxu0 %v3530
        %3644 = vmatprep.subr.mxu0 0.0
        %3645 = vmatpush1.msra.mxu0 0.0
        %3646 = vmatprep.subr.mxu0 0.0
        %3647 = vmatpush1.msra.mxu0 0.0
        %3648 = vmatprep.subr.mxu0 0.0
        %3649 = vmatpush1.msra.mxu0 0.0
        %3650 = vmatprep.subr.mxu0 0.0
        %3651 = vmatpush1.msra.mxu0 0.0
        %3652 = vmatprep.subr.mxu0 0.0
        %3653 = vmatpush1.msra.mxu0 0.0
        %3654 = vmatprep.subr.mxu0 0.0
        %3655 = vmatpush1.msra.mxu0 0.0
        %3656 = vmatprep.subr.mxu0 0.0
        %3657 = vmatpush1.msra.mxu0 0.0
        %3658 = vmatprep.subr.mxu0 0.0
        %3659 = vmatpush1.msra.mxu0 0.0
        %3660 = vmatprep.subr.mxu0 0.0
        %3661 = vmatpush1.msra.mxu0 0.0
        %3662 = vmatprep.subr.mxu0 0.0
        %3663 = vmatpush1.msra.mxu0 0.0
        %3664 = vmatprep.subr.mxu0 0.0
        %3665 = vmatpush1.msra.mxu0 0.0
        %3666 = vmatprep.subr.mxu0 0.0
        %3667 = vmatpush1.msra.mxu0 0.0
        %3668 = vmatprep.subr.mxu0 0.0
        %3669 = vmatpush1.msra.mxu0 0.0
        %3670 = vmatprep.subr.mxu0 0.0
        %3671 = vmatpush1.msra.mxu0 0.0
        %3672 = vmatprep.subr.mxu0 0.0
        %3673 = vmatpush1.msra.mxu0 0.0
        %3674 = vmatprep.subr.mxu0 0.0
        %3675 = vmatpush1.msra.mxu0 0.0
        %3676 = vmatprep.subr.mxu0 0.0
        %3677 = vmatpush1.msra.mxu0 0.0
        %3678 = vmatprep.subr.mxu0 0.0
        %3679 = vmatpush1.msra.mxu0 0.0
        %3680 = vmatprep.subr.mxu0 0.0
        %3681 = vmatpush1.msra.mxu0 0.0
        %3682 = vmatprep.subr.mxu0 0.0
        %3683 = vmatpush1.msra.mxu0 0.0
        %3684 = vmatprep.subr.mxu0 0.0
        %3685 = vmatpush1.msra.mxu0 0.0
        %3686 = vmatprep.subr.mxu0 0.0
        %3687 = vmatpush1.msra.mxu0 0.0
        %3688 = vmatprep.subr.mxu0 0.0
        %3689 = vmatpush1.msra.mxu0 0.0
        %3690 = vmatprep.subr.mxu0 0.0
        %3691 = vmatpush1.msra.mxu0 0.0
        %3692 = vmatprep.subr.mxu0 0.0
        %3693 = vmatpush1.msra.mxu0 0.0
        %3694 = vmatprep.subr.mxu0 0.0
        %3695 = vmatpush1.msra.mxu0 0.0
        %3696 = vmatprep.subr.mxu0 0.0
        %3697 = vmatpush1.msra.mxu0 0.0
        %3698 = vmatprep.subr.mxu0 0.0
        %3699 = vmatpush1.msra.mxu0 0.0
        %3700 = vmatprep.subr.mxu0 0.0
        %3701 = vmatpush1.msra.mxu0 0.0
        %3702 = vmatprep.subr.mxu0 0.0
        %3703 = vmatpush1.msra.mxu0 0.0
        %3704 = vmatprep.mubr.f32.mxu0 0.0
        %3705 = vmatmul.mubr.f32.gmra.mrb[0].mxu0 %v3635
        %v3706 = vpop.f32.mrb[0].mxu0
        %v3707 = vadd.f32 0.0, %v3706
        %v3708 = vpop.f32.mrb[0].mxu0
        %3709 = vmatprep.mubr.f32.mxu0 0.0
        %3710 = vmatmul.mubr.f32.gmra.mrb[0].mxu0 %v3638
        %v3711 = vpop.f32.mrb[0].mxu0
        %v3712 = vadd.f32 0.0, %v3711
        %v3713 = vpop.f32.mrb[0].mxu0
        %3714 = vdwg.mxu0
        %v3715 = vadd.f32 %v3525, %v3707
        %v3716 = vadd.f32 %v3526, %v3712
        %v3717 = vsel %vm1703, %v2756, 0.0
        %v3718 = vsel %vm1703, %v2758, 0.0
        %v3719 = vsel %vm1703, %v2764, 0.0
        %v3720 = vsel %vm1703, %v2766, 0.0
        %v3722 = vsel %vm566, %v3717, 0
        %v3725 = vsel %vm566, %v3718, 0
        %3727 = vmatprep.subr.mxu0 0.0
        %3728 = vmatpush1.xpose.msra.mxu0 %v3722
        %3729 = vmatprep.subr.mxu0 0.0
        %3730 = vmatpush1.xpose.msra.mxu0 %v3725
        %3731 = vmatprep.subr.mxu0 0.0
        %3732 = vmatpush1.xpose.msra.mxu0 0.0
        %3733 = vmatprep.subr.mxu0 0.0
        %3734 = vmatpush1.xpose.msra.mxu0 0.0
        %3735 = vmatprep.subr.mxu0 0.0
        %3736 = vmatpush1.xpose.msra.mxu0 0.0
        %3737 = vmatprep.subr.mxu0 0.0
        %3738 = vmatpush1.xpose.msra.mxu0 0.0
        %3739 = vmatprep.subr.mxu0 0.0
        %3740 = vmatpush1.xpose.msra.mxu0 0.0
        %3741 = vmatprep.subr.mxu0 0.0
        %3742 = vmatpush1.xpose.msra.mxu0 0.0
        %3743 = vmatprep.subr.mxu0 0.0
        %3744 = vmatpush1.xpose.msra.mxu0 0.0
        %3745 = vmatprep.subr.mxu0 0.0
        %3746 = vmatpush1.xpose.msra.mxu0 0.0
        %3747 = vmatprep.subr.mxu0 0.0
        %3748 = vmatpush1.xpose.msra.mxu0 0.0
        %3749 = vmatprep.subr.mxu0 0.0
        %3750 = vmatpush1.xpose.msra.mxu0 0.0
        %3751 = vmatprep.subr.mxu0 0.0
        %3752 = vmatpush1.xpose.msra.mxu0 0.0
        %3753 = vmatprep.subr.mxu0 0.0
        %3754 = vmatpush1.xpose.msra.mxu0 0.0
        %3755 = vmatprep.subr.mxu0 0.0
        %3756 = vmatpush1.xpose.msra.mxu0 0.0
        %3757 = vmatprep.subr.mxu0 0.0
        %3758 = vmatpush1.xpose.msra.mxu0 0.0
        %3759 = vmatprep.subr.mxu0 0.0
        %3760 = vmatpush1.xpose.msra.mxu0 0.0
        %3761 = vmatprep.subr.mxu0 0.0
        %3762 = vmatpush1.xpose.msra.mxu0 0.0
        %3763 = vmatprep.subr.mxu0 0.0
        %3764 = vmatpush1.xpose.msra.mxu0 0.0
        %3765 = vmatprep.subr.mxu0 0.0
        %3766 = vmatpush1.xpose.msra.mxu0 0.0
        %3767 = vmatprep.subr.mxu0 0.0
        %3768 = vmatpush1.xpose.msra.mxu0 0.0
        %3769 = vmatprep.subr.mxu0 0.0
        %3770 = vmatpush1.xpose.msra.mxu0 0.0
        %3771 = vmatprep.subr.mxu0 0.0
        %3772 = vmatpush1.xpose.msra.mxu0 0.0
        %3773 = vmatprep.subr.mxu0 0.0
        %3774 = vmatpush1.xpose.msra.mxu0 0.0
        %3775 = vmatprep.subr.mxu0 0.0
        %3776 = vmatpush1.xpose.msra.mxu0 0.0
        %3777 = vmatprep.subr.mxu0 0.0
        %3778 = vmatpush1.xpose.msra.mxu0 0.0
        %3779 = vmatprep.subr.mxu0 0.0
        %3780 = vmatpush1.xpose.msra.mxu0 0.0
        %3781 = vmatprep.subr.mxu0 0.0
        %3782 = vmatpush1.xpose.msra.mxu0 0.0
        %3783 = vmatprep.subr.mxu0 0.0
        %3784 = vmatpush1.xpose.msra.mxu0 0.0
        %3785 = vmatprep.subr.mxu0 0.0
        %3786 = vmatpush1.xpose.msra.mxu0 0.0
        %3787 = vmatprep.subr.mxu0 0.0
        %3788 = vmatpush1.xpose.msra.mxu0 0.0
        %3789 = vmatprep.subr.mxu0 0.0
        %3790 = vmatpush1.xpose.msra.mxu0 0.0
        %3791 = vmatprep.mubr.f32.mxu0 0.0
        %3792 = vmatmul.mubr.f32.gmra.mrb[0].mxu0 %v2771
        %v3793 = vpop.f32.mrb[0].mxu0
        %v3794 = vadd.f32 %v623, %v3793
        %v3795 = vpop.f32.mrb[0].mxu0
        %3796 = vmatprep.mubr.f32.mxu0 0.0
        %3797 = vmatmul.mubr.f32.gmra.mrb[0].mxu0 %v2773
        %v3798 = vpop.f32.mrb[0].mxu0
        %v3799 = vadd.f32 %v623, %v3798
        %v3800 = vpop.f32.mrb[0].mxu0
        %3801 = vdwg.mxu0
        %v3802 = vsel %vm827, %v3794, -inf
        %3803 = vmax.xlane.f32.xlu0 %v3802
        %v3804 = vpop.xlane.xlu0 %3803
        %v3805 = vsel %vm827, %v3799, -inf
        %3806 = vmax.xlane.f32.xlu0 %v3805
        %v3807 = vpop.xlane.xlu0 %3806
        %v3808 = vsub.f32 %v3794, %v3804
        %v3809 = vsub.f32 %v3799, %v3807
        %v3810 = vmul.f32 %v3808, 1.442695
        %v3811 = vpow.pop %v3810
        %v3812 = vmul.f32 %v3809, 1.442695
        %v3813 = vpow.pop %v3812
        %v3814 = vsel %vm827, %v3811, 0.0
        %3815 = vadd.xlane.f32.xlu0 %v3814
        %v3816 = vpop.xlane.xlu0 %3815
        %v3817 = vsel %vm827, %v3813, 0.0
        %3818 = vadd.xlane.f32.xlu0 %v3817
        %v3819 = vpop.xlane.xlu0 %3818
        %v3820 = vrcp.pop %v3816
        %v3821 = vrcp.pop %v3819
        %v3822 = vmul.f32 %v3811, %v3820
        %v3823 = vmul.f32 %v3813, %v3821
        %v3825 = vsel %vm827, %v3822, 0
        %v3828 = vsel %vm827, %v3823, 0
        %3830 = vmatprep.subr.mxu0 0.0
        %3831 = vmatpush1.msra.mxu0 %v3719
        %3832 = vmatprep.subr.mxu0 0.0
        %3833 = vmatpush1.msra.mxu0 %v3720
        %3834 = vmatprep.subr.mxu0 0.0
        %3835 = vmatpush1.msra.mxu0 0.0
        %3836 = vmatprep.subr.mxu0 0.0
        %3837 = vmatpush1.msra.mxu0 0.0
        %3838 = vmatprep.subr.mxu0 0.0
        %3839 = vmatpush1.msra.mxu0 0.0
        %3840 = vmatprep.subr.mxu0 0.0
        %3841 = vmatpush1.msra.mxu0 0.0
        %3842 = vmatprep.subr.mxu0 0.0
        %3843 = vmatpush1.msra.mxu0 0.0
        %3844 = vmatprep.subr.mxu0 0.0
        %3845 = vmatpush1.msra.mxu0 0.0
        %3846 = vmatprep.subr.mxu0 0.0
        %3847 = vmatpush1.msra.mxu0 0.0
        %3848 = vmatprep.subr.mxu0 0.0
        %3849 = vmatpush1.msra.mxu0 0.0
        %3850 = vmatprep.subr.mxu0 0.0
        %3851 = vmatpush1.msra.mxu0 0.0
        %3852 = vmatprep.subr.mxu0 0.0
        %3853 = vmatpush1.msra.mxu0 0.0
        %3854 = vmatprep.subr.mxu0 0.0
        %3855 = vmatpush1.msra.mxu0 0.0
        %3856 = vmatprep.subr.mxu0 0.0
        %3857 = vmatpush1.msra.mxu0 0.0
        %3858 = vmatprep.subr.mxu0 0.0
        %3859 = vmatpush1.msra.mxu0 0.0
        %3860 = vmatprep.subr.mxu0 0.0
        %3861 = vmatpush1.msra.mxu0 0.0
        %3862 = vmatprep.subr.mxu0 0.0
        %3863 = vmatpush1.msra.mxu0 0.0
        %3864 = vmatprep.subr.mxu0 0.0
        %3865 = vmatpush1.msra.mxu0 0.0
        %3866 = vmatprep.subr.mxu0 0.0
        %3867 = vmatpush1.msra.mxu0 0.0
        %3868 = vmatprep.subr.mxu0 0.0
        %3869 = vmatpush1.msra.mxu0 0.0
        %3870 = vmatprep.subr.mxu0 0.0
        %3871 = vmatpush1.msra.mxu0 0.0
        %3872 = vmatprep.subr.mxu0 0.0
        %3873 = vmatpush1.msra.mxu0 0.0
        %3874 = vmatprep.subr.mxu0 0.0
        %3875 = vmatpush1.msra.mxu0 0.0
        %3876 = vmatprep.subr.mxu0 0.0
        %3877 = vmatpush1.msra.mxu0 0.0
        %3878 = vmatprep.subr.mxu0 0.0
        %3879 = vmatpush1.msra.mxu0 0.0
        %3880 = vmatprep.subr.mxu0 0.0
        %3881 = vmatpush1.msra.mxu0 0.0
        %3882 = vmatprep.subr.mxu0 0.0
        %3883 = vmatpush1.msra.mxu0 0.0
        %3884 = vmatprep.subr.mxu0 0.0
        %3885 = vmatpush1.msra.mxu0 0.0
        %3886 = vmatprep.subr.mxu0 0.0
        %3887 = vmatpush1.msra.mxu0 0.0
        %3888 = vmatprep.subr.mxu0 0.0
        %3889 = vmatpush1.msra.mxu0 0.0
        %3890 = vmatprep.subr.mxu0 0.0
        %3891 = vmatpush1.msra.mxu0 0.0
        %3892 = vmatprep.subr.mxu0 0.0
        %3893 = vmatpush1.msra.mxu0 0.0
        %3894 = vmatprep.mubr.f32.mxu0 0.0
        %3895 = vmatmul.mubr.f32.gmra.mrb[0].mxu0 %v3825
        %v3896 = vpop.f32.mrb[0].mxu0
        %v3897 = vadd.f32 0.0, %v3896
        %v3898 = vpop.f32.mrb[0].mxu0
        %3899 = vmatprep.mubr.f32.mxu0 0.0
        %3900 = vmatmul.mubr.f32.gmra.mrb[0].mxu0 %v3828
        %v3901 = vpop.f32.mrb[0].mxu0
        %v3902 = vadd.f32 0.0, %v3901
        %v3903 = vpop.f32.mrb[0].mxu0
        %3904 = vdwg.mxu0
        %v3905 = vadd.f32 %v3715, %v3897
        %v3906 = vadd.f32 %v3716, %v3902
        %v3907 = vsel %vm1896, %v2756, 0.0
        %v3908 = vsel %vm1896, %v2758, 0.0
        %v3909 = vsel %vm1896, %v2764, 0.0
        %v3910 = vsel %vm1896, %v2766, 0.0
        %v3912 = vsel %vm566, %v3907, 0
        %v3915 = vsel %vm566, %v3908, 0
        %3917 = vmatprep.subr.mxu0 0.0
        %3918 = vmatpush1.xpose.msra.mxu0 %v3912
        %3919 = vmatprep.subr.mxu0 0.0
        %3920 = vmatpush1.xpose.msra.mxu0 %v3915
        %3921 = vmatprep.subr.mxu0 0.0
        %3922 = vmatpush1.xpose.msra.mxu0 0.0
        %3923 = vmatprep.subr.mxu0 0.0
        %3924 = vmatpush1.xpose.msra.mxu0 0.0
        %3925 = vmatprep.subr.mxu0 0.0
        %3926 = vmatpush1.xpose.msra.mxu0 0.0
        %3927 = vmatprep.subr.mxu0 0.0
        %3928 = vmatpush1.xpose.msra.mxu0 0.0
        %3929 = vmatprep.subr.mxu0 0.0
        %3930 = vmatpush1.xpose.msra.mxu0 0.0
        %3931 = vmatprep.subr.mxu0 0.0
        %3932 = vmatpush1.xpose.msra.mxu0 0.0
        %3933 = vmatprep.subr.mxu0 0.0
        %3934 = vmatpush1.xpose.msra.mxu0 0.0
        %3935 = vmatprep.subr.mxu0 0.0
        %3936 = vmatpush1.xpose.msra.mxu0 0.0
        %3937 = vmatprep.subr.mxu0 0.0
        %3938 = vmatpush1.xpose.msra.mxu0 0.0
        %3939 = vmatprep.subr.mxu0 0.0
        %3940 = vmatpush1.xpose.msra.mxu0 0.0
        %3941 = vmatprep.subr.mxu0 0.0
        %3942 = vmatpush1.xpose.msra.mxu0 0.0
        %3943 = vmatprep.subr.mxu0 0.0
        %3944 = vmatpush1.xpose.msra.mxu0 0.0
        %3945 = vmatprep.subr.mxu0 0.0
        %3946 = vmatpush1.xpose.msra.mxu0 0.0
        %3947 = vmatprep.subr.mxu0 0.0
        %3948 = vmatpush1.xpose.msra.mxu0 0.0
        %3949 = vmatprep.subr.mxu0 0.0
        %3950 = vmatpush1.xpose.msra.mxu0 0.0
        %3951 = vmatprep.subr.mxu0 0.0
        %3952 = vmatpush1.xpose.msra.mxu0 0.0
        %3953 = vmatprep.subr.mxu0 0.0
        %3954 = vmatpush1.xpose.msra.mxu0 0.0
        %3955 = vmatprep.subr.mxu0 0.0
        %3956 = vmatpush1.xpose.msra.mxu0 0.0
        %3957 = vmatprep.subr.mxu0 0.0
        %3958 = vmatpush1.xpose.msra.mxu0 0.0
        %3959 = vmatprep.subr.mxu0 0.0
        %3960 = vmatpush1.xpose.msra.mxu0 0.0
        %3961 = vmatprep.subr.mxu0 0.0
        %3962 = vmatpush1.xpose.msra.mxu0 0.0
        %3963 = vmatprep.subr.mxu0 0.0
        %3964 = vmatpush1.xpose.msra.mxu0 0.0
        %3965 = vmatprep.subr.mxu0 0.0
        %3966 = vmatpush1.xpose.msra.mxu0 0.0
        %3967 = vmatprep.subr.mxu0 0.0
        %3968 = vmatpush1.xpose.msra.mxu0 0.0
        %3969 = vmatprep.subr.mxu0 0.0
        %3970 = vmatpush1.xpose.msra.mxu0 0.0
        %3971 = vmatprep.subr.mxu0 0.0
        %3972 = vmatpush1.xpose.msra.mxu0 0.0
        %3973 = vmatprep.subr.mxu0 0.0
        %3974 = vmatpush1.xpose.msra.mxu0 0.0
        %3975 = vmatprep.subr.mxu0 0.0
        %3976 = vmatpush1.xpose.msra.mxu0 0.0
        %3977 = vmatprep.subr.mxu0 0.0
        %3978 = vmatpush1.xpose.msra.mxu0 0.0
        %3979 = vmatprep.subr.mxu0 0.0
        %3980 = vmatpush1.xpose.msra.mxu0 0.0
        %3981 = vmatprep.mubr.f32.mxu0 0.0
        %3982 = vmatmul.mubr.f32.gmra.mrb[0].mxu0 %v2771
        %v3983 = vpop.f32.mrb[0].mxu0
        %v3984 = vadd.f32 %v623, %v3983
        %v3985 = vpop.f32.mrb[0].mxu0
        %3986 = vmatprep.mubr.f32.mxu0 0.0
        %3987 = vmatmul.mubr.f32.gmra.mrb[0].mxu0 %v2773
        %v3988 = vpop.f32.mrb[0].mxu0
        %v3989 = vadd.f32 %v623, %v3988
        %v3990 = vpop.f32.mrb[0].mxu0
        %3991 = vdwg.mxu0
        %v3992 = vsel %vm827, %v3984, -inf
        %3993 = vmax.xlane.f32.xlu0 %v3992
        %v3994 = vpop.xlane.xlu0 %3993
        %v3995 = vsel %vm827, %v3989, -inf
        %3996 = vmax.xlane.f32.xlu0 %v3995
        %v3997 = vpop.xlane.xlu0 %3996
        %v3998 = vsub.f32 %v3984, %v3994
        %v3999 = vsub.f32 %v3989, %v3997
        %v4000 = vmul.f32 %v3998, 1.442695
        %v4001 = vpow.pop %v4000
        %v4002 = vmul.f32 %v3999, 1.442695
        %v4003 = vpow.pop %v4002
        %v4004 = vsel %vm827, %v4001, 0.0
        %4005 = vadd.xlane.f32.xlu0 %v4004
        %v4006 = vpop.xlane.xlu0 %4005
        %v4007 = vsel %vm827, %v4003, 0.0
        %4008 = vadd.xlane.f32.xlu0 %v4007
        %v4009 = vpop.xlane.xlu0 %4008
        %v4010 = vrcp.pop %v4006
        %v4011 = vrcp.pop %v4009
        %v4012 = vmul.f32 %v4001, %v4010
        %v4013 = vmul.f32 %v4003, %v4011
        %v4015 = vsel %vm827, %v4012, 0
        %v4018 = vsel %vm827, %v4013, 0
        %4020 = vmatprep.subr.mxu0 0.0
        %4021 = vmatpush1.msra.mxu0 %v3909
        %4022 = vmatprep.subr.mxu0 0.0
        %4023 = vmatpush1.msra.mxu0 %v3910
        %4024 = vmatprep.subr.mxu0 0.0
        %4025 = vmatpush1.msra.mxu0 0.0
        %4026 = vmatprep.subr.mxu0 0.0
        %4027 = vmatpush1.msra.mxu0 0.0
        %4028 = vmatprep.subr.mxu0 0.0
        %4029 = vmatpush1.msra.mxu0 0.0
        %4030 = vmatprep.subr.mxu0 0.0
        %4031 = vmatpush1.msra.mxu0 0.0
        %4032 = vmatprep.subr.mxu0 0.0
        %4033 = vmatpush1.msra.mxu0 0.0
        %4034 = vmatprep.subr.mxu0 0.0
        %4035 = vmatpush1.msra.mxu0 0.0
        %4036 = vmatprep.subr.mxu0 0.0
        %4037 = vmatpush1.msra.mxu0 0.0
        %4038 = vmatprep.subr.mxu0 0.0
        %4039 = vmatpush1.msra.mxu0 0.0
        %4040 = vmatprep.subr.mxu0 0.0
        %4041 = vmatpush1.msra.mxu0 0.0
        %4042 = vmatprep.subr.mxu0 0.0
        %4043 = vmatpush1.msra.mxu0 0.0
        %4044 = vmatprep.subr.mxu0 0.0
        %4045 = vmatpush1.msra.mxu0 0.0
        %4046 = vmatprep.subr.mxu0 0.0
        %4047 = vmatpush1.msra.mxu0 0.0
        %4048 = vmatprep.subr.mxu0 0.0
        %4049 = vmatpush1.msra.mxu0 0.0
        %4050 = vmatprep.subr.mxu0 0.0
        %4051 = vmatpush1.msra.mxu0 0.0
        %4052 = vmatprep.subr.mxu0 0.0
        %4053 = vmatpush1.msra.mxu0 0.0
        %4054 = vmatprep.subr.mxu0 0.0
        %4055 = vmatpush1.msra.mxu0 0.0
        %4056 = vmatprep.subr.mxu0 0.0
        %4057 = vmatpush1.msra.mxu0 0.0
        %4058 = vmatprep.subr.mxu0 0.0
        %4059 = vmatpush1.msra.mxu0 0.0
        %4060 = vmatprep.subr.mxu0 0.0
        %4061 = vmatpush1.msra.mxu0 0.0
        %4062 = vmatprep.subr.mxu0 0.0
        %4063 = vmatpush1.msra.mxu0 0.0
        %4064 = vmatprep.subr.mxu0 0.0
        %4065 = vmatpush1.msra.mxu0 0.0
        %4066 = vmatprep.subr.mxu0 0.0
        %4067 = vmatpush1.msra.mxu0 0.0
        %4068 = vmatprep.subr.mxu0 0.0
        %4069 = vmatpush1.msra.mxu0 0.0
        %4070 = vmatprep.subr.mxu0 0.0
        %4071 = vmatpush1.msra.mxu0 0.0
        %4072 = vmatprep.subr.mxu0 0.0
        %4073 = vmatpush1.msra.mxu0 0.0
        %4074 = vmatprep.subr.mxu0 0.0
        %4075 = vmatpush1.msra.mxu0 0.0
        %4076 = vmatprep.subr.mxu0 0.0
        %4077 = vmatpush1.msra.mxu0 0.0
        %4078 = vmatprep.subr.mxu0 0.0
        %4079 = vmatpush1.msra.mxu0 0.0
        %4080 = vmatprep.subr.mxu0 0.0
        %4081 = vmatpush1.msra.mxu0 0.0
        %4082 = vmatprep.subr.mxu0 0.0
        %4083 = vmatpush1.msra.mxu0 0.0
        %4084 = vmatprep.mubr.f32.mxu0 0.0
        %4085 = vmatmul.mubr.f32.gmra.mrb[0].mxu0 %v4015
        %v4086 = vpop.f32.mrb[0].mxu0
        %v4087 = vadd.f32 0.0, %v4086
        %v4088 = vpop.f32.mrb[0].mxu0
        %4089 = vmatprep.mubr.f32.mxu0 0.0
        %4090 = vmatmul.mubr.f32.gmra.mrb[0].mxu0 %v4018
        %v4091 = vpop.f32.mrb[0].mxu0
        %v4092 = vadd.f32 0.0, %v4091
        %v4093 = vpop.f32.mrb[0].mxu0
        %4094 = vdwg.mxu0
        %v4095 = vadd.f32 %v3905, %v4087
        %v4096 = vadd.f32 %v3906, %v4092
        %v4097 = vsel %vm2089, %v2756, 0.0
        %v4098 = vsel %vm2089, %v2758, 0.0
        %v4099 = vsel %vm2089, %v2764, 0.0
        %v4100 = vsel %vm2089, %v2766, 0.0
        %v4102 = vsel %vm566, %v4097, 0
        %v4105 = vsel %vm566, %v4098, 0
        %4107 = vmatprep.subr.mxu0 0.0
        %4108 = vmatpush1.xpose.msra.mxu0 %v4102
        %4109 = vmatprep.subr.mxu0 0.0
        %4110 = vmatpush1.xpose.msra.mxu0 %v4105
        %4111 = vmatprep.subr.mxu0 0.0
        %4112 = vmatpush1.xpose.msra.mxu0 0.0
        %4113 = vmatprep.subr.mxu0 0.0
        %4114 = vmatpush1.xpose.msra.mxu0 0.0
        %4115 = vmatprep.subr.mxu0 0.0
        %4116 = vmatpush1.xpose.msra.mxu0 0.0
        %4117 = vmatprep.subr.mxu0 0.0
        %4118 = vmatpush1.xpose.msra.mxu0 0.0
        %4119 = vmatprep.subr.mxu0 0.0
        %4120 = vmatpush1.xpose.msra.mxu0 0.0
        %4121 = vmatprep.subr.mxu0 0.0
        %4122 = vmatpush1.xpose.msra.mxu0 0.0
        %4123 = vmatprep.subr.mxu0 0.0
        %4124 = vmatpush1.xpose.msra.mxu0 0.0
        %4125 = vmatprep.subr.mxu0 0.0
        %4126 = vmatpush1.xpose.msra.mxu0 0.0
        %4127 = vmatprep.subr.mxu0 0.0
        %4128 = vmatpush1.xpose.msra.mxu0 0.0
        %4129 = vmatprep.subr.mxu0 0.0
        %4130 = vmatpush1.xpose.msra.mxu0 0.0
        %4131 = vmatprep.subr.mxu0 0.0
        %4132 = vmatpush1.xpose.msra.mxu0 0.0
        %4133 = vmatprep.subr.mxu0 0.0
        %4134 = vmatpush1.xpose.msra.mxu0 0.0
        %4135 = vmatprep.subr.mxu0 0.0
        %4136 = vmatpush1.xpose.msra.mxu0 0.0
        %4137 = vmatprep.subr.mxu0 0.0
        %4138 = vmatpush1.xpose.msra.mxu0 0.0
        %4139 = vmatprep.subr.mxu0 0.0
        %4140 = vmatpush1.xpose.msra.mxu0 0.0
        %4141 = vmatprep.subr.mxu0 0.0
        %4142 = vmatpush1.xpose.msra.mxu0 0.0
        %4143 = vmatprep.subr.mxu0 0.0
        %4144 = vmatpush1.xpose.msra.mxu0 0.0
        %4145 = vmatprep.subr.mxu0 0.0
        %4146 = vmatpush1.xpose.msra.mxu0 0.0
        %4147 = vmatprep.subr.mxu0 0.0
        %4148 = vmatpush1.xpose.msra.mxu0 0.0
        %4149 = vmatprep.subr.mxu0 0.0
        %4150 = vmatpush1.xpose.msra.mxu0 0.0
        %4151 = vmatprep.subr.mxu0 0.0
        %4152 = vmatpush1.xpose.msra.mxu0 0.0
        %4153 = vmatprep.subr.mxu0 0.0
        %4154 = vmatpush1.xpose.msra.mxu0 0.0
        %4155 = vmatprep.subr.mxu0 0.0
        %4156 = vmatpush1.xpose.msra.mxu0 0.0
        %4157 = vmatprep.subr.mxu0 0.0
        %4158 = vmatpush1.xpose.msra.mxu0 0.0
        %4159 = vmatprep.subr.mxu0 0.0
        %4160 = vmatpush1.xpose.msra.mxu0 0.0
        %4161 = vmatprep.subr.mxu0 0.0
        %4162 = vmatpush1.xpose.msra.mxu0 0.0
        %4163 = vmatprep.subr.mxu0 0.0
        %4164 = vmatpush1.xpose.msra.mxu0 0.0
        %4165 = vmatprep.subr.mxu0 0.0
        %4166 = vmatpush1.xpose.msra.mxu0 0.0
        %4167 = vmatprep.subr.mxu0 0.0
        %4168 = vmatpush1.xpose.msra.mxu0 0.0
        %4169 = vmatprep.subr.mxu0 0.0
        %4170 = vmatpush1.xpose.msra.mxu0 0.0
        %4171 = vmatprep.mubr.f32.mxu0 0.0
        %4172 = vmatmul.mubr.f32.gmra.mrb[0].mxu0 %v2771
        %v4173 = vpop.f32.mrb[0].mxu0
        %v4174 = vadd.f32 %v623, %v4173
        %v4175 = vpop.f32.mrb[0].mxu0
        %4176 = vmatprep.mubr.f32.mxu0 0.0
        %4177 = vmatmul.mubr.f32.gmra.mrb[0].mxu0 %v2773
        %v4178 = vpop.f32.mrb[0].mxu0
        %v4179 = vadd.f32 %v623, %v4178
        %v4180 = vpop.f32.mrb[0].mxu0
        %4181 = vdwg.mxu0
        %v4182 = vsel %vm827, %v4174, -inf
        %4183 = vmax.xlane.f32.xlu0 %v4182
        %v4184 = vpop.xlane.xlu0 %4183
        %v4185 = vsel %vm827, %v4179, -inf
        %4186 = vmax.xlane.f32.xlu0 %v4185
        %v4187 = vpop.xlane.xlu0 %4186
        %v4188 = vsub.f32 %v4174, %v4184
        %v4189 = vsub.f32 %v4179, %v4187
        %v4190 = vmul.f32 %v4188, 1.442695
        %v4191 = vpow.pop %v4190
        %v4192 = vmul.f32 %v4189, 1.442695
        %v4193 = vpow.pop %v4192
        %v4194 = vsel %vm827, %v4191, 0.0
        %4195 = vadd.xlane.f32.xlu0 %v4194
        %v4196 = vpop.xlane.xlu0 %4195
        %v4197 = vsel %vm827, %v4193, 0.0
        %4198 = vadd.xlane.f32.xlu0 %v4197
        %v4199 = vpop.xlane.xlu0 %4198
        %v4200 = vrcp.pop %v4196
        %v4201 = vrcp.pop %v4199
        %v4202 = vmul.f32 %v4191, %v4200
        %v4203 = vmul.f32 %v4193, %v4201
        %v4205 = vsel %vm827, %v4202, 0
        %v4208 = vsel %vm827, %v4203, 0
        %4210 = vmatprep.subr.mxu0 0.0
        %4211 = vmatpush1.msra.mxu0 %v4099
        %4212 = vmatprep.subr.mxu0 0.0
        %4213 = vmatpush1.msra.mxu0 %v4100
        %4214 = vmatprep.subr.mxu0 0.0
        %4215 = vmatpush1.msra.mxu0 0.0
        %4216 = vmatprep.subr.mxu0 0.0
        %4217 = vmatpush1.msra.mxu0 0.0
        %4218 = vmatprep.subr.mxu0 0.0
        %4219 = vmatpush1.msra.mxu0 0.0
        %4220 = vmatprep.subr.mxu0 0.0
        %4221 = vmatpush1.msra.mxu0 0.0
        %4222 = vmatprep.subr.mxu0 0.0
        %4223 = vmatpush1.msra.mxu0 0.0
        %4224 = vmatprep.subr.mxu0 0.0
        %4225 = vmatpush1.msra.mxu0 0.0
        %4226 = vmatprep.subr.mxu0 0.0
        %4227 = vmatpush1.msra.mxu0 0.0
        %4228 = vmatprep.subr.mxu0 0.0
        %4229 = vmatpush1.msra.mxu0 0.0
        %4230 = vmatprep.subr.mxu0 0.0
        %4231 = vmatpush1.msra.mxu0 0.0
        %4232 = vmatprep.subr.mxu0 0.0
        %4233 = vmatpush1.msra.mxu0 0.0
        %4234 = vmatprep.subr.mxu0 0.0
        %4235 = vmatpush1.msra.mxu0 0.0
        %4236 = vmatprep.subr.mxu0 0.0
        %4237 = vmatpush1.msra.mxu0 0.0
        %4238 = vmatprep.subr.mxu0 0.0
        %4239 = vmatpush1.msra.mxu0 0.0
        %4240 = vmatprep.subr.mxu0 0.0
        %4241 = vmatpush1.msra.mxu0 0.0
        %4242 = vmatprep.subr.mxu0 0.0
        %4243 = vmatpush1.msra.mxu0 0.0
        %4244 = vmatprep.subr.mxu0 0.0
        %4245 = vmatpush1.msra.mxu0 0.0
        %4246 = vmatprep.subr.mxu0 0.0
        %4247 = vmatpush1.msra.mxu0 0.0
        %4248 = vmatprep.subr.mxu0 0.0
        %4249 = vmatpush1.msra.mxu0 0.0
        %4250 = vmatprep.subr.mxu0 0.0
        %4251 = vmatpush1.msra.mxu0 0.0
        %4252 = vmatprep.subr.mxu0 0.0
        %4253 = vmatpush1.msra.mxu0 0.0
        %4254 = vmatprep.subr.mxu0 0.0
        %4255 = vmatpush1.msra.mxu0 0.0
        %4256 = vmatprep.subr.mxu0 0.0
        %4257 = vmatpush1.msra.mxu0 0.0
        %4258 = vmatprep.subr.mxu0 0.0
        %4259 = vmatpush1.msra.mxu0 0.0
        %4260 = vmatprep.subr.mxu0 0.0
        %4261 = vmatpush1.msra.mxu0 0.0
        %4262 = vmatprep.subr.mxu0 0.0
        %4263 = vmatpush1.msra.mxu0 0.0
        %4264 = vmatprep.subr.mxu0 0.0
        %4265 = vmatpush1.msra.mxu0 0.0
        %4266 = vmatprep.subr.mxu0 0.0
        %4267 = vmatpush1.msra.mxu0 0.0
        %4268 = vmatprep.subr.mxu0 0.0
        %4269 = vmatpush1.msra.mxu0 0.0
        %4270 = vmatprep.subr.mxu0 0.0
        %4271 = vmatpush1.msra.mxu0 0.0
        %4272 = vmatprep.subr.mxu0 0.0
        %4273 = vmatpush1.msra.mxu0 0.0
        %4274 = vmatprep.mubr.f32.mxu0 0.0
        %4275 = vmatmul.mubr.f32.gmra.mrb[0].mxu0 %v4205
        %v4276 = vpop.f32.mrb[0].mxu0
        %v4277 = vadd.f32 0.0, %v4276
        %v4278 = vpop.f32.mrb[0].mxu0
        %4279 = vmatprep.mubr.f32.mxu0 0.0
        %4280 = vmatmul.mubr.f32.gmra.mrb[0].mxu0 %v4208
        %v4281 = vpop.f32.mrb[0].mxu0
        %v4282 = vadd.f32 0.0, %v4281
        %v4283 = vpop.f32.mrb[0].mxu0
        %4284 = vdwg.mxu0
        %v4285 = vadd.f32 %v4095, %v4277
        %v4286 = vadd.f32 %v4096, %v4282
        %s4287 = scalar_lea.vmem %s6, 32
        %v4288 = vld [vmem:[%s4287] sm:$0xff]
        %v4289 = vld [vmem:[%s4287 + $0x8] sm:$0xff]
        %v4290 = vld [vmem:[%s4287 + $0x10] sm:$0xff]
        %v4291 = vld [vmem:[%s4287 + $0x18] sm:$0xff]
        %s4292 = scalar_lea.vmem %s7, 1
        %v4293 = vld [vmem:[%s4292] sm:$0x1]
        %v4295 = vlaneseq
        %v4296 = vshrl.u32 %v4295, 7
        %v4297 = vsub.s32 0, %v4296
        %v4298 = vrot.slane %v4293, %v4297
        %v4301 = vsel %vm566, %v4285, 0
        %v4304 = vsel %vm566, %v4286, 0
        %4306 = vmatprep.subr.mxu0 0.0
        %4307 = vmatpush1.msra.mxu0 %v4288
        %4308 = vmatprep.subr.mxu0 0.0
        %4309 = vmatpush1.msra.mxu0 %v4289
        %4310 = vmatprep.subr.mxu0 0.0
        %4311 = vmatpush1.msra.mxu0 %v4290
        %4312 = vmatprep.subr.mxu0 0.0
        %4313 = vmatpush1.msra.mxu0 %v4291
        %4314 = vmatprep.subr.mxu0 0.0
        %4315 = vmatpush1.msra.mxu0 0.0
        %4316 = vmatprep.subr.mxu0 0.0
        %4317 = vmatpush1.msra.mxu0 0.0
        %4318 = vmatprep.subr.mxu0 0.0
        %4319 = vmatpush1.msra.mxu0 0.0
        %4320 = vmatprep.subr.mxu0 0.0
        %4321 = vmatpush1.msra.mxu0 0.0
        %4322 = vmatprep.subr.mxu0 0.0
        %4323 = vmatpush1.msra.mxu0 0.0
        %4324 = vmatprep.subr.mxu0 0.0
        %4325 = vmatpush1.msra.mxu0 0.0
        %4326 = vmatprep.subr.mxu0 0.0
        %4327 = vmatpush1.msra.mxu0 0.0
        %4328 = vmatprep.subr.mxu0 0.0
        %4329 = vmatpush1.msra.mxu0 0.0
        %4330 = vmatprep.subr.mxu0 0.0
        %4331 = vmatpush1.msra.mxu0 0.0
        %4332 = vmatprep.subr.mxu0 0.0
        %4333 = vmatpush1.msra.mxu0 0.0
        %4334 = vmatprep.subr.mxu0 0.0
        %4335 = vmatpush1.msra.mxu0 0.0
        %4336 = vmatprep.subr.mxu0 0.0
        %4337 = vmatpush1.msra.mxu0 0.0
        %4338 = vmatprep.subr.mxu0 0.0
        %4339 = vmatpush1.msra.mxu0 0.0
        %4340 = vmatprep.subr.mxu0 0.0
        %4341 = vmatpush1.msra.mxu0 0.0
        %4342 = vmatprep.subr.mxu0 0.0
        %4343 = vmatpush1.msra.mxu0 0.0
        %4344 = vmatprep.subr.mxu0 0.0
        %4345 = vmatpush1.msra.mxu0 0.0
        %4346 = vmatprep.subr.mxu0 0.0
        %4347 = vmatpush1.msra.mxu0 0.0
        %4348 = vmatprep.subr.mxu0 0.0
        %4349 = vmatpush1.msra.mxu0 0.0
        %4350 = vmatprep.subr.mxu0 0.0
        %4351 = vmatpush1.msra.mxu0 0.0
        %4352 = vmatprep.subr.mxu0 0.0
        %4353 = vmatpush1.msra.mxu0 0.0
        %4354 = vmatprep.subr.mxu0 0.0
        %4355 = vmatpush1.msra.mxu0 0.0
        %4356 = vmatprep.subr.mxu0 0.0
        %4357 = vmatpush1.msra.mxu0 0.0
        %4358 = vmatprep.subr.mxu0 0.0
        %4359 = vmatpush1.msra.mxu0 0.0
        %4360 = vmatprep.subr.mxu0 0.0
        %4361 = vmatpush1.msra.mxu0 0.0
        %4362 = vmatprep.subr.mxu0 0.0
        %4363 = vmatpush1.msra.mxu0 0.0
        %4364 = vmatprep.subr.mxu0 0.0
        %4365 = vmatpush1.msra.mxu0 0.0
        %4366 = vmatprep.subr.mxu0 0.0
        %4367 = vmatpush1.msra.mxu0 0.0
        %4368 = vmatprep.subr.mxu0 0.0
        %4369 = vmatpush1.msra.mxu0 0.0
        %4370 = vmatprep.mubr.f32.mxu0 0.0
        %4371 = vmatmul.mubr.f32.gmra.mrb[0].mxu0 %v4301
        %v4372 = vpop.f32.mrb[0].mxu0
        %v4373 = vadd.f32 %v4298, %v4372
        %v4374 = vpop.f32.mrb[0].mxu0
        %4375 = vmatprep.mubr.f32.mxu0 0.0
        %4376 = vmatmul.mubr.f32.gmra.mrb[0].mxu0 %v4304
        %v4377 = vpop.f32.mrb[0].mxu0
        %v4378 = vadd.f32 %v4298, %v4377
        %v4379 = vpop.f32.mrb[0].mxu0
        %4380 = vdwg.mxu0
        %v4381 = vadd.f32 %v2653, %v4373
        %v4382 = vadd.f32 %v2654, %v4378
        %s4383 = scalar_lea.vmem %s8, 1
        %v4384 = vld [vmem:[%s4383] sm:$0x1]
        %s4385 = scalar_lea.vmem %s9, 1
        %v4386 = vld [vmem:[%s4385] sm:$0x1]
        %v4387 = vsel %vm566, %v4381, 0.0
        %4388 = vadd.xlane.f32.xlu0 %v4387
        %v4389 = vpop.xlane.xlu0 %4388
        %v4390 = vsel %vm566, %v4382, 0.0
        %4391 = vadd.xlane.f32.xlu0 %v4390
        %v4392 = vpop.xlane.xlu0 %4391
        %v4393 = vmul.f32 %v4389, %v583
        %v4394 = vmul.f32 %v4392, %v583
        %v4395 = vsub.f32 %v4381, %v4393
        %v4396 = vsub.f32 %v4382, %v4394
        %v4397 = vmul.f32 %v4395, %v4395
        %v4398 = vmul.f32 %v4396, %v4396
        %v4399 = vsel %vm566, %v4397, 0.0
        %4400 = vadd.xlane.f32.xlu0 %v4399
        %v4401 = vpop.xlane.xlu0 %4400
        %v4402 = vsel %vm566, %v4398, 0.0
        %4403 = vadd.xlane.f32.xlu0 %v4402
        %v4404 = vpop.xlane.xlu0 %4403
        %v4405 = vmul.f32 %v4401, %v583
        %v4406 = vmul.f32 %v4404, %v583
        %v4407 = vadd.f32 %v4405, 1e-05
        %v4408 = vadd.f32 %v4406, 1e-05
        %v4409 = vrsqrt.pop %v4407
        %v4410 = vrsqrt.pop %v4408
        %v4411 = vmul.f32 %v4395, %v4409
        %v4412 = vmul.f32 %v4396, %v4410
        %v4414 = vlaneseq
        %v4415 = vshrl.u32 %v4414, 7
        %v4416 = vsub.s32 0, %v4415
        %v4417 = vrot.slane %v4384, %v4416
        %v4419 = vmul.f32 %v4411, %v4417
        %v4420 = vmul.f32 %v4412, %v4417
        %v4422 = vlaneseq
        %v4423 = vshrl.u32 %v4422, 7
        %v4424 = vsub.s32 0, %v4423
        %v4425 = vrot.slane %v4386, %v4424
        %v4427 = vadd.f32 %v4419, %v4425
        %v4428 = vadd.f32 %v4420, %v4425
        %s4429 = scalar_lea.vmem %s10, 32
        %v4430 = vld [vmem:[%s4429] sm:$0xff]
        %v4431 = vld [vmem:[%s4429 + $0x8] sm:$0xff]
        %v4432 = vld [vmem:[%s4429 + $0x10] sm:$0xff]
        %v4433 = vld [vmem:[%s4429 + $0x18] sm:$0xff]
        %s4434 = scalar_lea.vmem %s11, 1
        %v4435 = vld [vmem:[%s4434] sm:$0x1]
        %v4437 = vlaneseq
        %v4438 = vshrl.u32 %v4437, 7
        %v4439 = vsub.s32 0, %v4438
        %v4440 = vrot.slane %v4435, %v4439
        %v4443 = vsel %vm566, %v4427, 0
        %v4446 = vsel %vm566, %v4428, 0
        %4448 = vmatprep.subr.mxu0 0.0
        %4449 = vmatpush1.msra.mxu0 %v4430
        %4450 = vmatprep.subr.mxu0 0.0
        %4451 = vmatpush1.msra.mxu0 %v4431
        %4452 = vmatprep.subr.mxu0 0.0
        %4453 = vmatpush1.msra.mxu0 %v4432
        %4454 = vmatprep.subr.mxu0 0.0
        %4455 = vmatpush1.msra.mxu0 %v4433
        %4456 = vmatprep.subr.mxu0 0.0
        %4457 = vmatpush1.msra.mxu0 0.0
        %4458 = vmatprep.subr.mxu0 0.0
        %4459 = vmatpush1.msra.mxu0 0.0
        %4460 = vmatprep.subr.mxu0 0.0
        %4461 = vmatpush1.msra.mxu0 0.0
        %4462 = vmatprep.subr.mxu0 0.0
        %4463 = vmatpush1.msra.mxu0 0.0
        %4464 = vmatprep.subr.mxu0 0.0
        %4465 = vmatpush1.msra.mxu0 0.0
        %4466 = vmatprep.subr.mxu0 0.0
        %4467 = vmatpush1.msra.mxu0 0.0
        %4468 = vmatprep.subr.mxu0 0.0
        %4469 = vmatpush1.msra.mxu0 0.0
        %4470 = vmatprep.subr.mxu0 0.0
        %4471 = vmatpush1.msra.mxu0 0.0
        %4472 = vmatprep.subr.mxu0 0.0
        %4473 = vmatpush1.msra.mxu0 0.0
        %4474 = vmatprep.subr.mxu0 0.0
        %4475 = vmatpush1.msra.mxu0 0.0
        %4476 = vmatprep.subr.mxu0 0.0
        %4477 = vmatpush1.msra.mxu0 0.0
        %4478 = vmatprep.subr.mxu0 0.0
        %4479 = vmatpush1.msra.mxu0 0.0
        %4480 = vmatprep.subr.mxu0 0.0
        %4481 = vmatpush1.msra.mxu0 0.0
        %4482 = vmatprep.subr.mxu0 0.0
        %4483 = vmatpush1.msra.mxu0 0.0
        %4484 = vmatprep.subr.mxu0 0.0
        %4485 = vmatpush1.msra.mxu0 0.0
        %4486 = vmatprep.subr.mxu0 0.0
        %4487 = vmatpush1.msra.mxu0 0.0
        %4488 = vmatprep.subr.mxu0 0.0
        %4489 = vmatpush1.msra.mxu0 0.0
        %4490 = vmatprep.subr.mxu0 0.0
        %4491 = vmatpush1.msra.mxu0 0.0
        %4492 = vmatprep.subr.mxu0 0.0
        %4493 = vmatpush1.msra.mxu0 0.0
        %4494 = vmatprep.subr.mxu0 0.0
        %4495 = vmatpush1.msra.mxu0 0.0
        %4496 = vmatprep.subr.mxu0 0.0
        %4497 = vmatpush1.msra.mxu0 0.0
        %4498 = vmatprep.subr.mxu0 0.0
        %4499 = vmatpush1.msra.mxu0 0.0
        %4500 = vmatprep.subr.mxu0 0.0
        %4501 = vmatpush1.msra.mxu0 0.0
        %4502 = vmatprep.subr.mxu0 0.0
        %4503 = vmatpush1.msra.mxu0 0.0
        %4504 = vmatprep.subr.mxu0 0.0
        %4505 = vmatpush1.msra.mxu0 0.0
        %4506 = vmatprep.subr.mxu0 0.0
        %4507 = vmatpush1.msra.mxu0 0.0
        %4508 = vmatprep.subr.mxu0 0.0
        %4509 = vmatpush1.msra.mxu0 0.0
        %4510 = vmatprep.subr.mxu0 0.0
        %4511 = vmatpush1.msra.mxu0 0.0
        %4512 = vmatprep.mubr.f32.mxu0 0.0
        %4513 = vmatmul.mubr.f32.gmra.mrb[0].mxu0 %v4443
        %v4514 = vpop.f32.mrb[0].mxu0
        %v4515 = vadd.f32 %v4440, %v4514
        %v4516 = vpop.f32.mrb[0].mxu0
        %4517 = vmatprep.mubr.f32.mxu0 0.0
        %4518 = vmatmul.mubr.f32.gmra.mrb[0].mxu0 %v4446
        %v4519 = vpop.f32.mrb[0].mxu0
        %v4520 = vadd.f32 %v4440, %v4519
        %v4521 = vpop.f32.mrb[0].mxu0
        %4522 = vdwg.mxu0
        %v4523 = vmax.f32 %v4515, 0.0
        %v4524 = vmax.f32 %v4520, 0.0
        %s4525 = scalar_lea.vmem %s12, 64
        %v4526 = vld [vmem:[%s4525] sm:$0xff]
        %v4527 = vld [vmem:[%s4525 + $0x8] sm:$0xff]
        %v4528 = vld [vmem:[%s4525 + $0x10] sm:$0xff]
        %v4529 = vld [vmem:[%s4525 + $0x18] sm:$0xff]
        %v4530 = vld [vmem:[%s4525 + $0x20] sm:$0xff]
        %v4531 = vld [vmem:[%s4525 + $0x28] sm:$0xff]
        %v4532 = vld [vmem:[%s4525 + $0x30] sm:$0xff]
        %v4533 = vld [vmem:[%s4525 + $0x38] sm:$0xff]
        %s4534 = scalar_lea.vmem %s13, 1
        %v4535 = vld [vmem:[%s4534] sm:$0x1]
        %v4537 = vlaneseq
        %v4538 = vshrl.u32 %v4537, 7
        %v4539 = vsub.s32 0, %v4538
        %v4540 = vrot.slane %v4535, %v4539
        %v4543 = vsel %vm2527, %v4523, 0
        %v4546 = vsel %vm2527, %v4524, 0
        %4548 = vmatprep.subr.mxu0 0.0
        %4549 = vmatpush1.msra.mxu0 %v4526
        %4550 = vmatprep.subr.mxu0 0.0
        %4551 = vmatpush1.msra.mxu0 %v4527
        %4552 = vmatprep.subr.mxu0 0.0
        %4553 = vmatpush1.msra.mxu0 %v4528
        %4554 = vmatprep.subr.mxu0 0.0
        %4555 = vmatpush1.msra.mxu0 %v4529
        %4556 = vmatprep.subr.mxu0 0.0
        %4557 = vmatpush1.msra.mxu0 %v4530
        %4558 = vmatprep.subr.mxu0 0.0
        %4559 = vmatpush1.msra.mxu0 %v4531
        %4560 = vmatprep.subr.mxu0 0.0
        %4561 = vmatpush1.msra.mxu0 %v4532
        %4562 = vmatprep.subr.mxu0 0.0
        %4563 = vmatpush1.msra.mxu0 %v4533
        %4564 = vmatprep.subr.mxu0 0.0
        %4565 = vmatpush1.msra.mxu0 0.0
        %4566 = vmatprep.subr.mxu0 0.0
        %4567 = vmatpush1.msra.mxu0 0.0
        %4568 = vmatprep.subr.mxu0 0.0
        %4569 = vmatpush1.msra.mxu0 0.0
        %4570 = vmatprep.subr.mxu0 0.0
        %4571 = vmatpush1.msra.mxu0 0.0
        %4572 = vmatprep.subr.mxu0 0.0
        %4573 = vmatpush1.msra.mxu0 0.0
        %4574 = vmatprep.subr.mxu0 0.0
        %4575 = vmatpush1.msra.mxu0 0.0
        %4576 = vmatprep.subr.mxu0 0.0
        %4577 = vmatpush1.msra.mxu0 0.0
        %4578 = vmatprep.subr.mxu0 0.0
        %4579 = vmatpush1.msra.mxu0 0.0
        %4580 = vmatprep.subr.mxu0 0.0
        %4581 = vmatpush1.msra.mxu0 0.0
        %4582 = vmatprep.subr.mxu0 0.0
        %4583 = vmatpush1.msra.mxu0 0.0
        %4584 = vmatprep.subr.mxu0 0.0
        %4585 = vmatpush1.msra.mxu0 0.0
        %4586 = vmatprep.subr.mxu0 0.0
        %4587 = vmatpush1.msra.mxu0 0.0
        %4588 = vmatprep.subr.mxu0 0.0
        %4589 = vmatpush1.msra.mxu0 0.0
        %4590 = vmatprep.subr.mxu0 0.0
        %4591 = vmatpush1.msra.mxu0 0.0
        %4592 = vmatprep.subr.mxu0 0.0
        %4593 = vmatpush1.msra.mxu0 0.0
        %4594 = vmatprep.subr.mxu0 0.0
        %4595 = vmatpush1.msra.mxu0 0.0
        %4596 = vmatprep.subr.mxu0 0.0
        %4597 = vmatpush1.msra.mxu0 0.0
        %4598 = vmatprep.subr.mxu0 0.0
        %4599 = vmatpush1.msra.mxu0 0.0
        %4600 = vmatprep.subr.mxu0 0.0
        %4601 = vmatpush1.msra.mxu0 0.0
        %4602 = vmatprep.subr.mxu0 0.0
        %4603 = vmatpush1.msra.mxu0 0.0
        %4604 = vmatprep.subr.mxu0 0.0
        %4605 = vmatpush1.msra.mxu0 0.0
        %4606 = vmatprep.subr.mxu0 0.0
        %4607 = vmatpush1.msra.mxu0 0.0
        %4608 = vmatprep.subr.mxu0 0.0
        %4609 = vmatpush1.msra.mxu0 0.0
        %4610 = vmatprep.subr.mxu0 0.0
        %4611 = vmatpush1.msra.mxu0 0.0
        %4612 = vmatprep.mubr.f32.mxu0 0.0
        %4613 = vmatmul.mubr.f32.gmra.mrb[0].mxu0 %v4543
        %v4614 = vpop.f32.mrb[0].mxu0
        %v4615 = vadd.f32 %v4540, %v4614
        %v4616 = vpop.f32.mrb[0].mxu0
        %4617 = vmatprep.mubr.f32.mxu0 0.0
        %4618 = vmatmul.mubr.f32.gmra.mrb[0].mxu0 %v4546
        %v4619 = vpop.f32.mrb[0].mxu0
        %v4620 = vadd.f32 %v4540, %v4619
        %v4621 = vpop.f32.mrb[0].mxu0
        %4622 = vdwg.mxu0
        %v4623 = vadd.f32 %v4427, %v4615
        %v4624 = vadd.f32 %v4428, %v4620
        %s4625 = scalar_lea.vmem %s14, 1
        %v4626 = vld [vmem:[%s4625] sm:$0x1]
        %s4627 = scalar_lea.vmem %s15, 1
        %v4628 = vld [vmem:[%s4627] sm:$0x1]
        %v4629 = vsel %vm566, %v4623, 0.0
        %4630 = vadd.xlane.f32.xlu0 %v4629
        %v4631 = vpop.xlane.xlu0 %4630
        %v4632 = vsel %vm566, %v4624, 0.0
        %4633 = vadd.xlane.f32.xlu0 %v4632
        %v4634 = vpop.xlane.xlu0 %4633
        %v4635 = vmul.f32 %v4631, %v583
        %v4636 = vmul.f32 %v4634, %v583
        %v4637 = vsub.f32 %v4623, %v4635
        %v4638 = vsub.f32 %v4624, %v4636
        %v4639 = vmul.f32 %v4637, %v4637
        %v4640 = vmul.f32 %v4638, %v4638
        %v4641 = vsel %vm566, %v4639, 0.0
        %4642 = vadd.xlane.f32.xlu0 %v4641
        %v4643 = vpop.xlane.xlu0 %4642
        %v4644 = vsel %vm566, %v4640, 0.0
        %4645 = vadd.xlane.f32.xlu0 %v4644
        %v4646 = vpop.xlane.xlu0 %4645
        %v4647 = vmul.f32 %v4643, %v583
        %v4648 = vmul.f32 %v4646, %v583
        %v4649 = vadd.f32 %v4647, 1e-05
        %v4650 = vadd.f32 %v4648, 1e-05
        %v4651 = vrsqrt.pop %v4649
        %v4652 = vrsqrt.pop %v4650
        %v4653 = vmul.f32 %v4637, %v4651
        %v4654 = vmul.f32 %v4638, %v4652
        %v4656 = vlaneseq
        %v4657 = vshrl.u32 %v4656, 7
        %v4658 = vsub.s32 0, %v4657
        %v4659 = vrot.slane %v4626, %v4658
        %v4661 = vmul.f32 %v4653, %v4659
        %v4662 = vmul.f32 %v4654, %v4659
        %v4664 = vlaneseq
        %v4665 = vshrl.u32 %v4664, 7
        %v4666 = vsub.s32 0, %v4665
        %v4667 = vrot.slane %v4628, %v4666
        %v4669 = vadd.f32 %v4661, %v4667
        %v4670 = vadd.f32 %v4662, %v4667
        %4671 = vst.msk [vmem:[%s563] sm:$0xff] %vm566, %v4669
        %4672 = vst.msk [vmem:[%s563 + $0x8] sm:$0xff] %vm566, %v4670
        %s4673 = sand.u32 %s383, 1
        %s4674 = scalar_lea.sflag [#allocation6], %s4673
        %s4675 = sand.u32 %s383, 1
        %s4676 = smul.addr %s4675, 16
        %s4677 = scalar_lea.vmem [#allocation10], %s4676
        // Predicated region
        $region97: #{tpu_custom_call.1} parent=83 // pred_check
          %p4678 = pneg %p393
        $region98: #{tpu_custom_call.1} parent=83 // pred_check_branch
          %4680 = sbr.rel (%p4678) target = $region100
        $region99: #{tpu_custom_call.1} parent=83 // pred_region
          %s4682 = ssub.s32 256, 256
          %4683 = vsyncadd %s4674, %s4682
          %s4684 = smul.addr %s34, 2
          %s4685 = smul.addr %s4684, 128
          %s4686 = scalar_lea.hbm %s16, %s4685
          %s4687 = sshll.u32 %s4677, 4
          %s4688 = int_to_ptr.vmem [resolvable:$true] %s4687
          %4693 = dma.vmem_to_hbm [thread:$0]  %s4688, 256, %s4686, %s4674, 128, 128, 8
        $region100: #{tpu_custom_call.1} parent=83 // pred_fallthru
          _
      $region84: #{tpu_custom_call.1} parent=5 // pred_fallthru
        _
      %p4694 = scmp.le.s32.totalorder 2, %s29
      // Predicated region
      $region101: #{tpu_custom_call.1} parent=5 // pred_check
        %p4695 = pneg %p4694
      $region102: #{tpu_custom_call.1} parent=5 // pred_check_branch
        %4697 = sbr.rel (%p4695) target = $region104
      $region103: #{tpu_custom_call.1} parent=5 // pred_region
        %s4698 = ssub.s32 %s29, 2
        // Predicated region
        $region105: #{tpu_custom_call.1} parent=103 // pred_check
          %p4699 = pneg %p399
        $region106: #{tpu_custom_call.1} parent=103 // pred_check_branch
          %4701 = sbr.rel (%p4699) target = $region108
        $region107: #{tpu_custom_call.1} parent=103 // pred_region
          %s4702 = sand.u32 %s384, 1
          %s4703 = scalar_lea.sflag [#allocation6], %s4702
          %s4704 = sand.u32 %s384, 1
          %s4705 = smul.addr %s4704, 16
          %s4706 = scalar_lea.vmem [#allocation10], %s4705
          %4707 = dma.done %s4703, 256
        $region108: #{tpu_custom_call.1} parent=103 // pred_fallthru
          _
      $region104: #{tpu_custom_call.1} parent=5 // pred_fallthru
        _
    $region6: #{tpu_custom_call.1} parent=1 // loop_footer
      %s33 = sadd.s32 1, %s29
    $region7: #{tpu_custom_call.1} parent=1 // loop_footer_branch
      %28 = sbr.rel target = $region3
    $region8: #{tpu_custom_call.1} parent=1 // loop_exit
      _
    %4708 = vsyncpa [#allocation5], 1
    %s4709 = scalar_lea.sflag [#allocation5], 1
    %4710 = vsyncpa %s4709, 1
    %4711 = vsyncpa [#allocation8], 1
    %4712 = vsyncpa [#allocation6], 1
    %s4713 = scalar_lea.sflag [#allocation6], 1
    %4714 = vsyncpa %s4713, 1

</llo_original>
